<compile_context>
chip_gen: v7x
topology: tpu7x:2x2x1
jax: 0.10.0
libtpu: 0.0.40
codegen_flags: <defaults>
</compile_context>

<pallas_src>
import functools
import math

import jax
import jax.numpy as jnp
from jax.experimental import pallas as pl
from jax.experimental.pallas import tpu as pltpu


def _conv3x3_sigmoid(x, w_ref, b_ref, masks_ref, shifts):
    """Fused 3x3 / stride-1 / pad-1 conv + sigmoid on a lane-dense slab.

    x:         (Cin, L) float32, L = N*H*W (batch folded into lanes)
    w_ref:     (9, Cout, Cin) VMEM ref, tap-major weights (dh outer, dw inner)
    b_ref:     (Cout, 1) VMEM ref
    masks_ref: (9, 1, L) VMEM ref, precomputed 0/1 validity mask per tap
    shifts:    tuple of 9 static lane-roll amounts (jnp.roll convention)
    """
    cout = w_ref.shape[1]
    L = x.shape[1]
    acc = jnp.zeros((cout, L), dtype=jnp.float32)
    # Per-tap accumulation: live set is {x, one shifted tap, acc}; avoids the
    # sublane-misaligned 9*Cin im2col concatenate.
    for t, shift in enumerate(shifts):
        shifted = pltpu.roll(x, shift=shift, axis=1)       # XLU lane rotate
        tap = shifted * masks_ref[t]                       # zero padding / cross-image taps
        acc = acc + jnp.dot(w_ref[t], tap, preferred_element_type=jnp.float32)
    return jax.nn.sigmoid(acc + b_ref[...])                # bias broadcasts over lanes


def _fused_model_kernel(x_ref, masks_ref, w1_ref, b1_ref, w2_ref, b2_ref,
                        o_ref, *, shifts):
    """conv1 -> sigmoid -> conv2 -> sigmoid, whole batch, all in VMEM."""
    x = x_ref[...].astype(jnp.float32)                     # (Cin, L)
    t2 = _conv3x3_sigmoid(x, w1_ref, b1_ref, masks_ref, shifts)
    t4 = _conv3x3_sigmoid(t2, w2_ref, b2_ref, masks_ref, shifts)
    o_ref[...] = t4.astype(o_ref.dtype)


def model_forward(x_nchw, params):
    """Reproduces Model.forward.  Input is NCHW (PyTorch convention)."""
    w1_oihw, b1, w2_oihw, b2 = params
    N, Cin, H, W = x_nchw.shape
    HW = H * W
    L = N * HW
    Cout1 = w1_oihw.shape[0]
    Cout2 = w2_oihw.shape[0]

    # Batch folded into the lane axis -> (Cin, N*H*W).  Only wrapper layout op
    # is this tiny (N, Cin) transpose (a few KiB).
    x2d = jnp.transpose(x_nchw, (1, 0, 2, 3)).reshape(Cin, L)

    # Tap-major weights: (Cout, Cin, kh, kw) -> (kh, kw, Cout, Cin) -> (9, Cout, Cin)
    w1 = jnp.transpose(w1_oihw, (2, 3, 0, 1)).reshape(9, Cout1, Cin)
    w2 = jnp.transpose(w2_oihw, (2, 3, 0, 1)).reshape(9, Cout2, w2_oihw.shape[1])
    b1c = b1.reshape(Cout1, 1)
    b2c = b2.reshape(Cout2, 1)

    # Precompute the 9 validity masks once (resident VMEM input).  Positions
    # are taken modulo H*W so taps that wrap across an image boundary on the
    # folded lane axis are zeroed exactly like padding taps.
    pos = jnp.arange(L, dtype=jnp.int32) % HW
    hh = pos // W
    ww = pos % W
    mask_rows = []
    shifts = []
    for dh in (-1, 0, 1):
        for dw in (-1, 0, 1):
            s = dh * W + dw                                # flat lane offset of this tap
            shifts.append((-s) % L)                        # jnp.roll convention: out[p] = in[p+s]
            valid = ((hh + dh >= 0) & (hh + dh < H) &
                     (ww + dw >= 0) & (ww + dw < W))
            mask_rows.append(valid.astype(jnp.float32))
    masks = jnp.stack(mask_rows, axis=0).reshape(9, 1, L)

    flops = 2 * 9 * L * (Cout1 * Cin + Cout2 * Cout1)
    transcendentals = L * (Cout1 + Cout2)                  # one exp per sigmoid element
    bytes_accessed = 4 * (Cin * L + masks.size + w1.size + w2.size +
                          b1c.size + b2c.size + Cout2 * L)

    kernel = functools.partial(_fused_model_kernel, shifts=tuple(shifts))
    out2d = pl.pallas_call(
        kernel,
        out_shape=jax.ShapeDtypeStruct((Cout2, L), jnp.float32),
        grid=(1,),
        in_specs=[
            pl.BlockSpec((Cin, L), lambda i: (0, 0)),
            pl.BlockSpec((9, 1, L), lambda i: (0, 0, 0)),
            pl.BlockSpec(w1.shape, lambda i: (0, 0, 0)),
            pl.BlockSpec(b1c.shape, lambda i: (0, 0)),
            pl.BlockSpec(w2.shape, lambda i: (0, 0, 0)),
            pl.BlockSpec(b2c.shape, lambda i: (0, 0)),
        ],
        out_specs=pl.BlockSpec((Cout2, L), lambda i: (0, 0)),
        compiler_params=pltpu.CompilerParams(
            dimension_semantics=("arbitrary",)),
        cost_estimate=pl.CostEstimate(
            flops=flops, transcendentals=transcendentals,
            bytes_accessed=bytes_accessed),
    )(x2d, masks, w1, b1c, w2, b2c)

    # (Cout, N*H*W) -> (N, Cout, H, W): tiny wrapper transpose.
    return out2d.reshape(Cout2, N, H, W).transpose(1, 0, 2, 3)


def reference_forward(x, params):
    """Pure-JAX reference (lax convs + sigmoid) for correctness checking."""
    w1, b1, w2, b2 = params
    dn = ("NCHW", "OIHW", "NCHW")
    t1 = jax.lax.conv_general_dilated(
        x, w1, window_strides=(1, 1), padding=((1, 1), (1, 1)),
        dimension_numbers=dn, precision=jax.lax.Precision.HIGHEST)
    t2 = jax.nn.sigmoid(t1 + b1.reshape(1, -1, 1, 1))
    t3 = jax.lax.conv_general_dilated(
        t2, w2, window_strides=(1, 1), padding=((1, 1), (1, 1)),
        dimension_numbers=dn, precision=jax.lax.Precision.HIGHEST)
    return jax.nn.sigmoid(t3 + b2.reshape(1, -1, 1, 1))


def init_params(key):
    """Deterministic init matching PyTorch Conv2d shapes (OIHW weights)."""
    k1, k2, k3, k4 = jax.random.split(key, 4)

    def uniform_init(k, shape, fan_in):
        bound = 1.0 / math.sqrt(fan_in)
        return jax.random.uniform(k, shape, jnp.float32, -bound, bound)

    cin1, cout1 = 3, 4
    cin2, cout2 = 4, 4   # conv2 in_channels fixed to 4 (see module-level note)

    w1 = uniform_init(k1, (cout1, cin1, 3, 3), cin1 * 9)
    b1 = uniform_init(k2, (cout1,), cin1 * 9)
    w2 = uniform_init(k3, (cout2, cin2, 3, 3), cin2 * 9)
    b2 = uniform_init(k4, (cout2,), cin2 * 9)
    return (w1, b1, w2, b2)


if __name__ == "__main__":
    key = jax.random.PRNGKey(0)
    pkey, xkey = jax.random.split(key)

    params = init_params(pkey)
    x = jax.random.normal(xkey, (2, 3, 16, 16), jnp.float32)   # NCHW

    out = jax.jit(model_forward)(x, params)
    out = jax.block_until_ready(out)

    assert out.shape == (2, 4, 16, 16), out.shape
    assert bool(jnp.all(jnp.isfinite(out)))
    assert bool(jnp.all((out >= 0.0) & (out <= 1.0)))  # sigmoid range sanity

    ref = reference_forward(x, params)
    max_err = float(jnp.max(jnp.abs(out - ref)))
    assert max_err < 5e-3, f"max abs error vs pure-JAX reference: {max_err}"

    print("KERNEL_OK")
</pallas_src>

<mosaic_0001>
module attributes {stable_mosaic.version = 11 : i64} {
  func.func @_fused_model_kernel(%arg0: i32, %arg1: memref<3x512xf32, #tpu.memory_space<vmem>>, %arg2: memref<9x1x512xf32, #tpu.memory_space<vmem>>, %arg3: memref<9x4x3xf32, #tpu.memory_space<vmem>>, %arg4: memref<4x1xf32, #tpu.memory_space<vmem>>, %arg5: memref<9x4x4xf32, #tpu.memory_space<vmem>>, %arg6: memref<4x1xf32, #tpu.memory_space<vmem>>, %arg7: memref<4x512xf32, #tpu.memory_space<vmem>>) attributes {dimension_semantics = [#tpu.dimension_semantics<arbitrary>], iteration_bounds = array<i64: 1>, scalar_prefetch = 0 : i64, scratch_operands = 0 : i64, tpu.core_type = #tpu.core_type<tc>, window_params = [{pipeline_mode = #tpu.pipeline_mode<synchronous>, transform_indices = @transform_0, window_bounds = array<i64: 3, 512>}, {pipeline_mode = #tpu.pipeline_mode<synchronous>, transform_indices = @transform_1, window_bounds = array<i64: 9, 1, 512>}, {pipeline_mode = #tpu.pipeline_mode<synchronous>, transform_indices = @transform_2, window_bounds = array<i64: 9, 4, 3>}, {pipeline_mode = #tpu.pipeline_mode<synchronous>, transform_indices = @transform_3, window_bounds = array<i64: 4, 1>}, {pipeline_mode = #tpu.pipeline_mode<synchronous>, transform_indices = @transform_4, window_bounds = array<i64: 9, 4, 4>}, {pipeline_mode = #tpu.pipeline_mode<synchronous>, transform_indices = @transform_5, window_bounds = array<i64: 4, 1>}, {pipeline_mode = #tpu.pipeline_mode<synchronous>, transform_indices = @transform_6, window_bounds = array<i64: 4, 512>}]} {
    %c0 = arith.constant 0 : index
    %c0_0 = arith.constant 0 : index
    %0 = vector.load %arg1[%c0, %c0_0] : memref<3x512xf32, #tpu.memory_space<vmem>>, vector<3x512xf32>
    %cst = arith.constant 0.000000e+00 : f32
    %1 = vector.broadcast %cst : f32 to vector<4x512xf32>
    %c17_i32 = arith.constant 17 : i32
    %2 = tpu.dynamic_rotate %0 by %c17_i32 dim 1 : vector<3x512xf32>, i32 -> vector<3x512xf32>
    %c0_1 = arith.constant 0 : index
    %c0_2 = arith.constant 0 : index
    %c0_3 = arith.constant 0 : index
    %3 = vector.load %arg2[%c0_1, %c0_2, %c0_3] : memref<9x1x512xf32, #tpu.memory_space<vmem>>, vector<1x1x512xf32>
    %4 = vector.shape_cast %3 : vector<1x1x512xf32> to vector<1x512xf32>
    %5 = vector.broadcast %4 : vector<1x512xf32> to vector<3x512xf32>
    %6 = arith.mulf %2, %5 : vector<3x512xf32>
    %c0_4 = arith.constant 0 : index
    %c0_5 = arith.constant 0 : index
    %c0_6 = arith.constant 0 : index
    %7 = vector.load %arg3[%c0_4, %c0_5, %c0_6] : memref<9x4x3xf32, #tpu.memory_space<vmem>>, vector<1x4x3xf32>
    %8 = vector.shape_cast %7 : vector<1x4x3xf32> to vector<4x3xf32>
    %cst_7 = arith.constant dense<0.000000e+00> : vector<4x512xf32>
    %9 = tpu.matmul %8, %6, %cst_7 {dimension_numbers = #tpu.dot_dimension_numbers<[1], [0], [0], [1], [0, 0, 1, 1], [], []>} : vector<4x3xf32>, vector<3x512xf32>, vector<4x512xf32> -> vector<4x512xf32>
    %10 = arith.addf %1, %9 : vector<4x512xf32>
    %c16_i32 = arith.constant 16 : i32
    %11 = tpu.dynamic_rotate %0 by %c16_i32 dim 1 : vector<3x512xf32>, i32 -> vector<3x512xf32>
    %c1 = arith.constant 1 : index
    %c0_8 = arith.constant 0 : index
    %c0_9 = arith.constant 0 : index
    %12 = vector.load %arg2[%c1, %c0_8, %c0_9] : memref<9x1x512xf32, #tpu.memory_space<vmem>>, vector<1x1x512xf32>
    %13 = vector.shape_cast %12 : vector<1x1x512xf32> to vector<1x512xf32>
    %14 = vector.broadcast %13 : vector<1x512xf32> to vector<3x512xf32>
    %15 = arith.mulf %11, %14 : vector<3x512xf32>
    %c1_10 = arith.constant 1 : index
    %c0_11 = arith.constant 0 : index
    %c0_12 = arith.constant 0 : index
    %16 = vector.load %arg3[%c1_10, %c0_11, %c0_12] : memref<9x4x3xf32, #tpu.memory_space<vmem>>, vector<1x4x3xf32>
    %17 = vector.shape_cast %16 : vector<1x4x3xf32> to vector<4x3xf32>
    %cst_13 = arith.constant dense<0.000000e+00> : vector<4x512xf32>
    %18 = tpu.matmul %17, %15, %cst_13 {dimension_numbers = #tpu.dot_dimension_numbers<[1], [0], [0], [1], [0, 0, 1, 1], [], []>} : vector<4x3xf32>, vector<3x512xf32>, vector<4x512xf32> -> vector<4x512xf32>
    %19 = arith.addf %10, %18 : vector<4x512xf32>
    %c15_i32 = arith.constant 15 : i32
    %20 = tpu.dynamic_rotate %0 by %c15_i32 dim 1 : vector<3x512xf32>, i32 -> vector<3x512xf32>
    %c2 = arith.constant 2 : index
    %c0_14 = arith.constant 0 : index
    %c0_15 = arith.constant 0 : index
    %21 = vector.load %arg2[%c2, %c0_14, %c0_15] : memref<9x1x512xf32, #tpu.memory_space<vmem>>, vector<1x1x512xf32>
    %22 = vector.shape_cast %21 : vector<1x1x512xf32> to vector<1x512xf32>
    %23 = vector.broadcast %22 : vector<1x512xf32> to vector<3x512xf32>
    %24 = arith.mulf %20, %23 : vector<3x512xf32>
    %c2_16 = arith.constant 2 : index
    %c0_17 = arith.constant 0 : index
    %c0_18 = arith.constant 0 : index
    %25 = vector.load %arg3[%c2_16, %c0_17, %c0_18] : memref<9x4x3xf32, #tpu.memory_space<vmem>>, vector<1x4x3xf32>
    %26 = vector.shape_cast %25 : vector<1x4x3xf32> to vector<4x3xf32>
    %cst_19 = arith.constant dense<0.000000e+00> : vector<4x512xf32>
    %27 = tpu.matmul %26, %24, %cst_19 {dimension_numbers = #tpu.dot_dimension_numbers<[1], [0], [0], [1], [0, 0, 1, 1], [], []>} : vector<4x3xf32>, vector<3x512xf32>, vector<4x512xf32> -> vector<4x512xf32>
    %28 = arith.addf %19, %27 : vector<4x512xf32>
    %c1_i32 = arith.constant 1 : i32
    %29 = tpu.dynamic_rotate %0 by %c1_i32 dim 1 : vector<3x512xf32>, i32 -> vector<3x512xf32>
    %c3 = arith.constant 3 : index
    %c0_20 = arith.constant 0 : index
    %c0_21 = arith.constant 0 : index
    %30 = vector.load %arg2[%c3, %c0_20, %c0_21] : memref<9x1x512xf32, #tpu.memory_space<vmem>>, vector<1x1x512xf32>
    %31 = vector.shape_cast %30 : vector<1x1x512xf32> to vector<1x512xf32>
    %32 = vector.broadcast %31 : vector<1x512xf32> to vector<3x512xf32>
    %33 = arith.mulf %29, %32 : vector<3x512xf32>
    %c3_22 = arith.constant 3 : index
    %c0_23 = arith.constant 0 : index
    %c0_24 = arith.constant 0 : index
    %34 = vector.load %arg3[%c3_22, %c0_23, %c0_24] : memref<9x4x3xf32, #tpu.memory_space<vmem>>, vector<1x4x3xf32>
    %35 = vector.shape_cast %34 : vector<1x4x3xf32> to vector<4x3xf32>
    %cst_25 = arith.constant dense<0.000000e+00> : vector<4x512xf32>
    %36 = tpu.matmul %35, %33, %cst_25 {dimension_numbers = #tpu.dot_dimension_numbers<[1], [0], [0], [1], [0, 0, 1, 1], [], []>} : vector<4x3xf32>, vector<3x512xf32>, vector<4x512xf32> -> vector<4x512xf32>
    %37 = arith.addf %28, %36 : vector<4x512xf32>
    %c0_i32 = arith.constant 0 : i32
    %38 = tpu.dynamic_rotate %0 by %c0_i32 dim 1 : vector<3x512xf32>, i32 -> vector<3x512xf32>
    %c4 = arith.constant 4 : index
    %c0_26 = arith.constant 0 : index
    %c0_27 = arith.constant 0 : index
    %39 = vector.load %arg2[%c4, %c0_26, %c0_27] : memref<9x1x512xf32, #tpu.memory_space<vmem>>, vector<1x1x512xf32>
    %40 = vector.shape_cast %39 : vector<1x1x512xf32> to vector<1x512xf32>
    %41 = vector.broadcast %40 : vector<1x512xf32> to vector<3x512xf32>
    %42 = arith.mulf %38, %41 : vector<3x512xf32>
    %c4_28 = arith.constant 4 : index
    %c0_29 = arith.constant 0 : index
    %c0_30 = arith.constant 0 : index
    %43 = vector.load %arg3[%c4_28, %c0_29, %c0_30] : memref<9x4x3xf32, #tpu.memory_space<vmem>>, vector<1x4x3xf32>
    %44 = vector.shape_cast %43 : vector<1x4x3xf32> to vector<4x3xf32>
    %cst_31 = arith.constant dense<0.000000e+00> : vector<4x512xf32>
    %45 = tpu.matmul %44, %42, %cst_31 {dimension_numbers = #tpu.dot_dimension_numbers<[1], [0], [0], [1], [0, 0, 1, 1], [], []>} : vector<4x3xf32>, vector<3x512xf32>, vector<4x512xf32> -> vector<4x512xf32>
    %46 = arith.addf %37, %45 : vector<4x512xf32>
    %c511_i32 = arith.constant 511 : i32
    %47 = tpu.dynamic_rotate %0 by %c511_i32 dim 1 : vector<3x512xf32>, i32 -> vector<3x512xf32>
    %c5 = arith.constant 5 : index
    %c0_32 = arith.constant 0 : index
    %c0_33 = arith.constant 0 : index
    %48 = vector.load %arg2[%c5, %c0_32, %c0_33] : memref<9x1x512xf32, #tpu.memory_space<vmem>>, vector<1x1x512xf32>
    %49 = vector.shape_cast %48 : vector<1x1x512xf32> to vector<1x512xf32>
    %50 = vector.broadcast %49 : vector<1x512xf32> to vector<3x512xf32>
    %51 = arith.mulf %47, %50 : vector<3x512xf32>
    %c5_34 = arith.constant 5 : index
    %c0_35 = arith.constant 0 : index
    %c0_36 = arith.constant 0 : index
    %52 = vector.load %arg3[%c5_34, %c0_35, %c0_36] : memref<9x4x3xf32, #tpu.memory_space<vmem>>, vector<1x4x3xf32>
    %53 = vector.shape_cast %52 : vector<1x4x3xf32> to vector<4x3xf32>
    %cst_37 = arith.constant dense<0.000000e+00> : vector<4x512xf32>
    %54 = tpu.matmul %53, %51, %cst_37 {dimension_numbers = #tpu.dot_dimension_numbers<[1], [0], [0], [1], [0, 0, 1, 1], [], []>} : vector<4x3xf32>, vector<3x512xf32>, vector<4x512xf32> -> vector<4x512xf32>
    %55 = arith.addf %46, %54 : vector<4x512xf32>
    %c497_i32 = arith.constant 497 : i32
    %56 = tpu.dynamic_rotate %0 by %c497_i32 dim 1 : vector<3x512xf32>, i32 -> vector<3x512xf32>
    %c6 = arith.constant 6 : index
    %c0_38 = arith.constant 0 : index
    %c0_39 = arith.constant 0 : index
    %57 = vector.load %arg2[%c6, %c0_38, %c0_39] : memref<9x1x512xf32, #tpu.memory_space<vmem>>, vector<1x1x512xf32>
    %58 = vector.shape_cast %57 : vector<1x1x512xf32> to vector<1x512xf32>
    %59 = vector.broadcast %58 : vector<1x512xf32> to vector<3x512xf32>
    %60 = arith.mulf %56, %59 : vector<3x512xf32>
    %c6_40 = arith.constant 6 : index
    %c0_41 = arith.constant 0 : index
    %c0_42 = arith.constant 0 : index
    %61 = vector.load %arg3[%c6_40, %c0_41, %c0_42] : memref<9x4x3xf32, #tpu.memory_space<vmem>>, vector<1x4x3xf32>
    %62 = vector.shape_cast %61 : vector<1x4x3xf32> to vector<4x3xf32>
    %cst_43 = arith.constant dense<0.000000e+00> : vector<4x512xf32>
    %63 = tpu.matmul %62, %60, %cst_43 {dimension_numbers = #tpu.dot_dimension_numbers<[1], [0], [0], [1], [0, 0, 1, 1], [], []>} : vector<4x3xf32>, vector<3x512xf32>, vector<4x512xf32> -> vector<4x512xf32>
    %64 = arith.addf %55, %63 : vector<4x512xf32>
    %c496_i32 = arith.constant 496 : i32
    %65 = tpu.dynamic_rotate %0 by %c496_i32 dim 1 : vector<3x512xf32>, i32 -> vector<3x512xf32>
    %c7 = arith.constant 7 : index
    %c0_44 = arith.constant 0 : index
    %c0_45 = arith.constant 0 : index
    %66 = vector.load %arg2[%c7, %c0_44, %c0_45] : memref<9x1x512xf32, #tpu.memory_space<vmem>>, vector<1x1x512xf32>
    %67 = vector.shape_cast %66 : vector<1x1x512xf32> to vector<1x512xf32>
    %68 = vector.broadcast %67 : vector<1x512xf32> to vector<3x512xf32>
    %69 = arith.mulf %65, %68 : vector<3x512xf32>
    %c7_46 = arith.constant 7 : index
    %c0_47 = arith.constant 0 : index
    %c0_48 = arith.constant 0 : index
    %70 = vector.load %arg3[%c7_46, %c0_47, %c0_48] : memref<9x4x3xf32, #tpu.memory_space<vmem>>, vector<1x4x3xf32>
    %71 = vector.shape_cast %70 : vector<1x4x3xf32> to vector<4x3xf32>
    %cst_49 = arith.constant dense<0.000000e+00> : vector<4x512xf32>
    %72 = tpu.matmul %71, %69, %cst_49 {dimension_numbers = #tpu.dot_dimension_numbers<[1], [0], [0], [1], [0, 0, 1, 1], [], []>} : vector<4x3xf32>, vector<3x512xf32>, vector<4x512xf32> -> vector<4x512xf32>
    %73 = arith.addf %64, %72 : vector<4x512xf32>
    %c495_i32 = arith.constant 495 : i32
    %74 = tpu.dynamic_rotate %0 by %c495_i32 dim 1 : vector<3x512xf32>, i32 -> vector<3x512xf32>
    %c8 = arith.constant 8 : index
    %c0_50 = arith.constant 0 : index
    %c0_51 = arith.constant 0 : index
    %75 = vector.load %arg2[%c8, %c0_50, %c0_51] : memref<9x1x512xf32, #tpu.memory_space<vmem>>, vector<1x1x512xf32>
    %76 = vector.shape_cast %75 : vector<1x1x512xf32> to vector<1x512xf32>
    %77 = vector.broadcast %76 : vector<1x512xf32> to vector<3x512xf32>
    %78 = arith.mulf %74, %77 : vector<3x512xf32>
    %c8_52 = arith.constant 8 : index
    %c0_53 = arith.constant 0 : index
    %c0_54 = arith.constant 0 : index
    %79 = vector.load %arg3[%c8_52, %c0_53, %c0_54] : memref<9x4x3xf32, #tpu.memory_space<vmem>>, vector<1x4x3xf32>
    %80 = vector.shape_cast %79 : vector<1x4x3xf32> to vector<4x3xf32>
    %cst_55 = arith.constant dense<0.000000e+00> : vector<4x512xf32>
    %81 = tpu.matmul %80, %78, %cst_55 {dimension_numbers = #tpu.dot_dimension_numbers<[1], [0], [0], [1], [0, 0, 1, 1], [], []>} : vector<4x3xf32>, vector<3x512xf32>, vector<4x512xf32> -> vector<4x512xf32>
    %82 = arith.addf %73, %81 : vector<4x512xf32>
    %c0_56 = arith.constant 0 : index
    %c0_57 = arith.constant 0 : index
    %83 = vector.load %arg4[%c0_56, %c0_57] : memref<4x1xf32, #tpu.memory_space<vmem>>, vector<4x1xf32>
    %84 = vector.broadcast %83 : vector<4x1xf32> to vector<4x512xf32>
    %85 = arith.addf %82, %84 : vector<4x512xf32>
    %86 = arith.negf %85 : vector<4x512xf32>
    %87 = math.exp %86 : vector<4x512xf32>
    %cst_58 = arith.constant 1.000000e+00 : f32
    %88 = vector.broadcast %cst_58 : f32 to vector<4x512xf32>
    %89 = arith.addf %88, %87 : vector<4x512xf32>
    %90 = arith.divf %88, %89 : vector<4x512xf32>
    %cst_59 = arith.constant 0.000000e+00 : f32
    %91 = vector.broadcast %cst_59 : f32 to vector<4x512xf32>
    %c17_i32_60 = arith.constant 17 : i32
    %92 = tpu.dynamic_rotate %90 by %c17_i32_60 dim 1 : vector<4x512xf32>, i32 -> vector<4x512xf32>
    %c0_61 = arith.constant 0 : index
    %c0_62 = arith.constant 0 : index
    %c0_63 = arith.constant 0 : index
    %93 = vector.load %arg2[%c0_61, %c0_62, %c0_63] : memref<9x1x512xf32, #tpu.memory_space<vmem>>, vector<1x1x512xf32>
    %94 = vector.shape_cast %93 : vector<1x1x512xf32> to vector<1x512xf32>
    %95 = vector.broadcast %94 : vector<1x512xf32> to vector<4x512xf32>
    %96 = arith.mulf %92, %95 : vector<4x512xf32>
    %c0_64 = arith.constant 0 : index
    %c0_65 = arith.constant 0 : index
    %c0_66 = arith.constant 0 : index
    %97 = vector.load %arg5[%c0_64, %c0_65, %c0_66] : memref<9x4x4xf32, #tpu.memory_space<vmem>>, vector<1x4x4xf32>
    %98 = vector.shape_cast %97 : vector<1x4x4xf32> to vector<4x4xf32>
    %cst_67 = arith.constant dense<0.000000e+00> : vector<4x512xf32>
    %99 = tpu.matmul %98, %96, %cst_67 {dimension_numbers = #tpu.dot_dimension_numbers<[1], [0], [0], [1], [0, 0, 1, 1], [], []>} : vector<4x4xf32>, vector<4x512xf32>, vector<4x512xf32> -> vector<4x512xf32>
    %100 = arith.addf %91, %99 : vector<4x512xf32>
    %c16_i32_68 = arith.constant 16 : i32
    %101 = tpu.dynamic_rotate %90 by %c16_i32_68 dim 1 : vector<4x512xf32>, i32 -> vector<4x512xf32>
    %c1_69 = arith.constant 1 : index
    %c0_70 = arith.constant 0 : index
    %c0_71 = arith.constant 0 : index
    %102 = vector.load %arg2[%c1_69, %c0_70, %c0_71] : memref<9x1x512xf32, #tpu.memory_space<vmem>>, vector<1x1x512xf32>
    %103 = vector.shape_cast %102 : vector<1x1x512xf32> to vector<1x512xf32>
    %104 = vector.broadcast %103 : vector<1x512xf32> to vector<4x512xf32>
    %105 = arith.mulf %101, %104 : vector<4x512xf32>
    %c1_72 = arith.constant 1 : index
    %c0_73 = arith.constant 0 : index
    %c0_74 = arith.constant 0 : index
    %106 = vector.load %arg5[%c1_72, %c0_73, %c0_74] : memref<9x4x4xf32, #tpu.memory_space<vmem>>, vector<1x4x4xf32>
    %107 = vector.shape_cast %106 : vector<1x4x4xf32> to vector<4x4xf32>
    %cst_75 = arith.constant dense<0.000000e+00> : vector<4x512xf32>
    %108 = tpu.matmul %107, %105, %cst_75 {dimension_numbers = #tpu.dot_dimension_numbers<[1], [0], [0], [1], [0, 0, 1, 1], [], []>} : vector<4x4xf32>, vector<4x512xf32>, vector<4x512xf32> -> vector<4x512xf32>
    %109 = arith.addf %100, %108 : vector<4x512xf32>
    %c15_i32_76 = arith.constant 15 : i32
    %110 = tpu.dynamic_rotate %90 by %c15_i32_76 dim 1 : vector<4x512xf32>, i32 -> vector<4x512xf32>
    %c2_77 = arith.constant 2 : index
    %c0_78 = arith.constant 0 : index
    %c0_79 = arith.constant 0 : index
    %111 = vector.load %arg2[%c2_77, %c0_78, %c0_79] : memref<9x1x512xf32, #tpu.memory_space<vmem>>, vector<1x1x512xf32>
    %112 = vector.shape_cast %111 : vector<1x1x512xf32> to vector<1x512xf32>
    %113 = vector.broadcast %112 : vector<1x512xf32> to vector<4x512xf32>
    %114 = arith.mulf %110, %113 : vector<4x512xf32>
    %c2_80 = arith.constant 2 : index
    %c0_81 = arith.constant 0 : index
    %c0_82 = arith.constant 0 : index
    %115 = vector.load %arg5[%c2_80, %c0_81, %c0_82] : memref<9x4x4xf32, #tpu.memory_space<vmem>>, vector<1x4x4xf32>
    %116 = vector.shape_cast %115 : vector<1x4x4xf32> to vector<4x4xf32>
    %cst_83 = arith.constant dense<0.000000e+00> : vector<4x512xf32>
    %117 = tpu.matmul %116, %114, %cst_83 {dimension_numbers = #tpu.dot_dimension_numbers<[1], [0], [0], [1], [0, 0, 1, 1], [], []>} : vector<4x4xf32>, vector<4x512xf32>, vector<4x512xf32> -> vector<4x512xf32>
    %118 = arith.addf %109, %117 : vector<4x512xf32>
    %c1_i32_84 = arith.constant 1 : i32
    %119 = tpu.dynamic_rotate %90 by %c1_i32_84 dim 1 : vector<4x512xf32>, i32 -> vector<4x512xf32>
    %c3_85 = arith.constant 3 : index
    %c0_86 = arith.constant 0 : index
    %c0_87 = arith.constant 0 : index
    %120 = vector.load %arg2[%c3_85, %c0_86, %c0_87] : memref<9x1x512xf32, #tpu.memory_space<vmem>>, vector<1x1x512xf32>
    %121 = vector.shape_cast %120 : vector<1x1x512xf32> to vector<1x512xf32>
    %122 = vector.broadcast %121 : vector<1x512xf32> to vector<4x512xf32>
    %123 = arith.mulf %119, %122 : vector<4x512xf32>
    %c3_88 = arith.constant 3 : index
    %c0_89 = arith.constant 0 : index
    %c0_90 = arith.constant 0 : index
    %124 = vector.load %arg5[%c3_88, %c0_89, %c0_90] : memref<9x4x4xf32, #tpu.memory_space<vmem>>, vector<1x4x4xf32>
    %125 = vector.shape_cast %124 : vector<1x4x4xf32> to vector<4x4xf32>
    %cst_91 = arith.constant dense<0.000000e+00> : vector<4x512xf32>
    %126 = tpu.matmul %125, %123, %cst_91 {dimension_numbers = #tpu.dot_dimension_numbers<[1], [0], [0], [1], [0, 0, 1, 1], [], []>} : vector<4x4xf32>, vector<4x512xf32>, vector<4x512xf32> -> vector<4x512xf32>
    %127 = arith.addf %118, %126 : vector<4x512xf32>
    %c0_i32_92 = arith.constant 0 : i32
    %128 = tpu.dynamic_rotate %90 by %c0_i32_92 dim 1 : vector<4x512xf32>, i32 -> vector<4x512xf32>
    %c4_93 = arith.constant 4 : index
    %c0_94 = arith.constant 0 : index
    %c0_95 = arith.constant 0 : index
    %129 = vector.load %arg2[%c4_93, %c0_94, %c0_95] : memref<9x1x512xf32, #tpu.memory_space<vmem>>, vector<1x1x512xf32>
    %130 = vector.shape_cast %129 : vector<1x1x512xf32> to vector<1x512xf32>
    %131 = vector.broadcast %130 : vector<1x512xf32> to vector<4x512xf32>
    %132 = arith.mulf %128, %131 : vector<4x512xf32>
    %c4_96 = arith.constant 4 : index
    %c0_97 = arith.constant 0 : index
    %c0_98 = arith.constant 0 : index
    %133 = vector.load %arg5[%c4_96, %c0_97, %c0_98] : memref<9x4x4xf32, #tpu.memory_space<vmem>>, vector<1x4x4xf32>
    %134 = vector.shape_cast %133 : vector<1x4x4xf32> to vector<4x4xf32>
    %cst_99 = arith.constant dense<0.000000e+00> : vector<4x512xf32>
    %135 = tpu.matmul %134, %132, %cst_99 {dimension_numbers = #tpu.dot_dimension_numbers<[1], [0], [0], [1], [0, 0, 1, 1], [], []>} : vector<4x4xf32>, vector<4x512xf32>, vector<4x512xf32> -> vector<4x512xf32>
    %136 = arith.addf %127, %135 : vector<4x512xf32>
    %c511_i32_100 = arith.constant 511 : i32
    %137 = tpu.dynamic_rotate %90 by %c511_i32_100 dim 1 : vector<4x512xf32>, i32 -> vector<4x512xf32>
    %c5_101 = arith.constant 5 : index
    %c0_102 = arith.constant 0 : index
    %c0_103 = arith.constant 0 : index
    %138 = vector.load %arg2[%c5_101, %c0_102, %c0_103] : memref<9x1x512xf32, #tpu.memory_space<vmem>>, vector<1x1x512xf32>
    %139 = vector.shape_cast %138 : vector<1x1x512xf32> to vector<1x512xf32>
    %140 = vector.broadcast %139 : vector<1x512xf32> to vector<4x512xf32>
    %141 = arith.mulf %137, %140 : vector<4x512xf32>
    %c5_104 = arith.constant 5 : index
    %c0_105 = arith.constant 0 : index
    %c0_106 = arith.constant 0 : index
    %142 = vector.load %arg5[%c5_104, %c0_105, %c0_106] : memref<9x4x4xf32, #tpu.memory_space<vmem>>, vector<1x4x4xf32>
    %143 = vector.shape_cast %142 : vector<1x4x4xf32> to vector<4x4xf32>
    %cst_107 = arith.constant dense<0.000000e+00> : vector<4x512xf32>
    %144 = tpu.matmul %143, %141, %cst_107 {dimension_numbers = #tpu.dot_dimension_numbers<[1], [0], [0], [1], [0, 0, 1, 1], [], []>} : vector<4x4xf32>, vector<4x512xf32>, vector<4x512xf32> -> vector<4x512xf32>
    %145 = arith.addf %136, %144 : vector<4x512xf32>
    %c497_i32_108 = arith.constant 497 : i32
    %146 = tpu.dynamic_rotate %90 by %c497_i32_108 dim 1 : vector<4x512xf32>, i32 -> vector<4x512xf32>
    %c6_109 = arith.constant 6 : index
    %c0_110 = arith.constant 0 : index
    %c0_111 = arith.constant 0 : index
    %147 = vector.load %arg2[%c6_109, %c0_110, %c0_111] : memref<9x1x512xf32, #tpu.memory_space<vmem>>, vector<1x1x512xf32>
    %148 = vector.shape_cast %147 : vector<1x1x512xf32> to vector<1x512xf32>
    %149 = vector.broadcast %148 : vector<1x512xf32> to vector<4x512xf32>
    %150 = arith.mulf %146, %149 : vector<4x512xf32>
    %c6_112 = arith.constant 6 : index
    %c0_113 = arith.constant 0 : index
    %c0_114 = arith.constant 0 : index
    %151 = vector.load %arg5[%c6_112, %c0_113, %c0_114] : memref<9x4x4xf32, #tpu.memory_space<vmem>>, vector<1x4x4xf32>
    %152 = vector.shape_cast %151 : vector<1x4x4xf32> to vector<4x4xf32>
    %cst_115 = arith.constant dense<0.000000e+00> : vector<4x512xf32>
    %153 = tpu.matmul %152, %150, %cst_115 {dimension_numbers = #tpu.dot_dimension_numbers<[1], [0], [0], [1], [0, 0, 1, 1], [], []>} : vector<4x4xf32>, vector<4x512xf32>, vector<4x512xf32> -> vector<4x512xf32>
    %154 = arith.addf %145, %153 : vector<4x512xf32>
    %c496_i32_116 = arith.constant 496 : i32
    %155 = tpu.dynamic_rotate %90 by %c496_i32_116 dim 1 : vector<4x512xf32>, i32 -> vector<4x512xf32>
    %c7_117 = arith.constant 7 : index
    %c0_118 = arith.constant 0 : index
    %c0_119 = arith.constant 0 : index
    %156 = vector.load %arg2[%c7_117, %c0_118, %c0_119] : memref<9x1x512xf32, #tpu.memory_space<vmem>>, vector<1x1x512xf32>
    %157 = vector.shape_cast %156 : vector<1x1x512xf32> to vector<1x512xf32>
    %158 = vector.broadcast %157 : vector<1x512xf32> to vector<4x512xf32>
    %159 = arith.mulf %155, %158 : vector<4x512xf32>
    %c7_120 = arith.constant 7 : index
    %c0_121 = arith.constant 0 : index
    %c0_122 = arith.constant 0 : index
    %160 = vector.load %arg5[%c7_120, %c0_121, %c0_122] : memref<9x4x4xf32, #tpu.memory_space<vmem>>, vector<1x4x4xf32>
    %161 = vector.shape_cast %160 : vector<1x4x4xf32> to vector<4x4xf32>
    %cst_123 = arith.constant dense<0.000000e+00> : vector<4x512xf32>
    %162 = tpu.matmul %161, %159, %cst_123 {dimension_numbers = #tpu.dot_dimension_numbers<[1], [0], [0], [1], [0, 0, 1, 1], [], []>} : vector<4x4xf32>, vector<4x512xf32>, vector<4x512xf32> -> vector<4x512xf32>
    %163 = arith.addf %154, %162 : vector<4x512xf32>
    %c495_i32_124 = arith.constant 495 : i32
    %164 = tpu.dynamic_rotate %90 by %c495_i32_124 dim 1 : vector<4x512xf32>, i32 -> vector<4x512xf32>
    %c8_125 = arith.constant 8 : index
    %c0_126 = arith.constant 0 : index
    %c0_127 = arith.constant 0 : index
    %165 = vector.load %arg2[%c8_125, %c0_126, %c0_127] : memref<9x1x512xf32, #tpu.memory_space<vmem>>, vector<1x1x512xf32>
    %166 = vector.shape_cast %165 : vector<1x1x512xf32> to vector<1x512xf32>
    %167 = vector.broadcast %166 : vector<1x512xf32> to vector<4x512xf32>
    %168 = arith.mulf %164, %167 : vector<4x512xf32>
    %c8_128 = arith.constant 8 : index
    %c0_129 = arith.constant 0 : index
    %c0_130 = arith.constant 0 : index
    %169 = vector.load %arg5[%c8_128, %c0_129, %c0_130] : memref<9x4x4xf32, #tpu.memory_space<vmem>>, vector<1x4x4xf32>
    %170 = vector.shape_cast %169 : vector<1x4x4xf32> to vector<4x4xf32>
    %cst_131 = arith.constant dense<0.000000e+00> : vector<4x512xf32>
    %171 = tpu.matmul %170, %168, %cst_131 {dimension_numbers = #tpu.dot_dimension_numbers<[1], [0], [0], [1], [0, 0, 1, 1], [], []>} : vector<4x4xf32>, vector<4x512xf32>, vector<4x512xf32> -> vector<4x512xf32>
    %172 = arith.addf %163, %171 : vector<4x512xf32>
    %c0_132 = arith.constant 0 : index
    %c0_133 = arith.constant 0 : index
    %173 = vector.load %arg6[%c0_132, %c0_133] : memref<4x1xf32, #tpu.memory_space<vmem>>, vector<4x1xf32>
    %174 = vector.broadcast %173 : vector<4x1xf32> to vector<4x512xf32>
    %175 = arith.addf %172, %174 : vector<4x512xf32>
    %176 = arith.negf %175 : vector<4x512xf32>
    %177 = math.exp %176 : vector<4x512xf32>
    %cst_134 = arith.constant 1.000000e+00 : f32
    %178 = vector.broadcast %cst_134 : f32 to vector<4x512xf32>
    %179 = arith.addf %178, %177 : vector<4x512xf32>
    %180 = arith.divf %178, %179 : vector<4x512xf32>
    %c0_135 = arith.constant 0 : index
    %c0_136 = arith.constant 0 : index
    %181 = vector.load %arg7[%c0_135, %c0_136] : memref<4x512xf32, #tpu.memory_space<vmem>>, vector<4x512xf32>
    tpu.vector_store %arg7[%c0_135, %c0_136], %180 {strides = array<i32>} : memref<4x512xf32, #tpu.memory_space<vmem>>, vector<4x512xf32>,
    return
  }
  func.func @transform_0(%arg0: i32) -> (i32, i32) {
    %c0_i32 = arith.constant 0 : i32
    %c0_i32_0 = arith.constant 0 : i32
    %c0_i32_1 = arith.constant 0 : i32
    return %c0_i32, %c0_i32_0 : i32, i32
  }
  func.func @transform_1(%arg0: i32) -> (i32, i32, i32) {
    %c0_i32 = arith.constant 0 : i32
    %c0_i32_0 = arith.constant 0 : i32
    %c0_i32_1 = arith.constant 0 : i32
    %c0_i32_2 = arith.constant 0 : i32
    return %c0_i32, %c0_i32_0, %c0_i32_1 : i32, i32, i32
  }
  func.func @transform_2(%arg0: i32) -> (i32, i32, i32) {
    %c0_i32 = arith.constant 0 : i32
    %c0_i32_0 = arith.constant 0 : i32
    %c0_i32_1 = arith.constant 0 : i32
    %c0_i32_2 = arith.constant 0 : i32
    return %c0_i32, %c0_i32_0, %c0_i32_1 : i32, i32, i32
  }
  func.func @transform_3(%arg0: i32) -> (i32, i32) {
    %c0_i32 = arith.constant 0 : i32
    %c0_i32_0 = arith.constant 0 : i32
    %c0_i32_1 = arith.constant 0 : i32
    return %c0_i32, %c0_i32_0 : i32, i32
  }
  func.func @transform_4(%arg0: i32) -> (i32, i32, i32) {
    %c0_i32 = arith.constant 0 : i32
    %c0_i32_0 = arith.constant 0 : i32
    %c0_i32_1 = arith.constant 0 : i32
    %c0_i32_2 = arith.constant 0 : i32
    return %c0_i32, %c0_i32_0, %c0_i32_1 : i32, i32, i32
  }
  func.func @transform_5(%arg0: i32) -> (i32, i32) {
    %c0_i32 = arith.constant 0 : i32
    %c0_i32_0 = arith.constant 0 : i32
    %c0_i32_1 = arith.constant 0 : i32
    return %c0_i32, %c0_i32_0 : i32, i32
  }
  func.func @transform_6(%arg0: i32) -> (i32, i32) {
    %c0_i32 = arith.constant 0 : i32
    %c0_i32_0 = arith.constant 0 : i32
    %c0_i32_1 = arith.constant 0 : i32
    return %c0_i32, %c0_i32_0 : i32, i32
  }
}

</mosaic_0001>

<llo_original>
// kernel: model_forward.1
$region0: #{model_forward.1}
  #allocation0 [shape = 'u32[]', space=smem, size = 0x4, offset = 0x4, fixed_abs, tag = 'smem constant byte address 0x4 - core index']
  #allocation1 [shape = 'u32[144,128]{1,0:T(1,128)}', space=vmem, size = 0x12000, scoped, tag = 'internal scratch']
  %s0 = inlined_call_operand.vmem [shape: f32[3,512], index: 0, kind: input, shape index: {}]
  %s1 = inlined_call_operand.vmem [shape: f32[9,1,512], index: 1, kind: input, shape index: {}]
  %s2 = inlined_call_operand.vmem [shape: f32[9,4,3], index: 2, kind: input, shape index: {}]
  %s3 = inlined_call_operand.vmem [shape: f32[4,1], index: 3, kind: input, shape index: {}]
  %s4 = inlined_call_operand.vmem [shape: f32[9,4,4], index: 4, kind: input, shape index: {}]
  %s5 = inlined_call_operand.vmem [shape: f32[4,1], index: 5, kind: input, shape index: {}]
  %s6 = inlined_call_operand.vmem [shape: f32[4,512], index: 6, kind: output, shape index: {}]
  %s7 = sld [smem:[#allocation0]]
  $region34: #{model_forward.1} parent=0
    _
  %s9 = ssub.s32 1, %s7
  %s10 = scalar_select 0, %s9, %s7
  // Predicated region
  $region2: #{model_forward.1} parent=0 // pred_check
    _
  $region3: #{model_forward.1} parent=0 // pred_check_branch
    %12 = sbr.rel (0) target = $region5
  $region4: #{model_forward.1} parent=0 // pred_region
    _
  $region5: #{model_forward.1} parent=0 // pred_fallthru
    _
  // Predicated region
  $region6: #{model_forward.1} parent=0 // pred_check
    _
  $region7: #{model_forward.1} parent=0 // pred_check_branch
    %14 = sbr.rel (0) target = $region9
  $region8: #{model_forward.1} parent=0 // pred_region
    _
  $region9: #{model_forward.1} parent=0 // pred_fallthru
    _
  // Predicated region
  $region10: #{model_forward.1} parent=0 // pred_check
    _
  $region11: #{model_forward.1} parent=0 // pred_check_branch
    %16 = sbr.rel (0) target = $region13
  $region12: #{model_forward.1} parent=0 // pred_region
    _
  $region13: #{model_forward.1} parent=0 // pred_fallthru
    _
  // Predicated region
  $region14: #{model_forward.1} parent=0 // pred_check
    _
  $region15: #{model_forward.1} parent=0 // pred_check_branch
    %18 = sbr.rel (0) target = $region17
  $region16: #{model_forward.1} parent=0 // pred_region
    _
  $region17: #{model_forward.1} parent=0 // pred_fallthru
    _
  // Predicated region
  $region18: #{model_forward.1} parent=0 // pred_check
    _
  $region19: #{model_forward.1} parent=0 // pred_check_branch
    %20 = sbr.rel (0) target = $region21
  $region20: #{model_forward.1} parent=0 // pred_region
    _
  $region21: #{model_forward.1} parent=0 // pred_fallthru
    _
  // Predicated region
  $region22: #{model_forward.1} parent=0 // pred_check
    _
  $region23: #{model_forward.1} parent=0 // pred_check_branch
    %22 = sbr.rel (0) target = $region25
  $region24: #{model_forward.1} parent=0 // pred_region
    _
  $region25: #{model_forward.1} parent=0 // pred_fallthru
    _
  %v23 = vld [vmem:[%s0] sm:$0x77]
  %v24 = vld [vmem:[%s0 + $0x8] sm:$0x77]
  %v27 = vcombine.high %v23, %v23
  %v28 = vcombine.high %v24, %v24
  %31 = vrot.lane.b32.xlu0 %v23, 17
  %v32 = vpop.permute.xlu0 %31
  %33 = vrot.lane.b32.xlu0 %v27, 17
  %v34 = vpop.permute.xlu0 %33
  %35 = vrot.lane.b32.xlu0 %v24, 17
  %v36 = vpop.permute.xlu0 %35
  %37 = vrot.lane.b32.xlu0 %v28, 17
  %v38 = vpop.permute.xlu0 %37
  %v39 = vlaneseq
  %v40 = vand.u32 %v39, 127
  %vm41 = vcmp.lt.s32.totalorder %v40, 17
  %v42 = vsel %vm41, %v36, %v38
  %v43 = vsel %vm41, %v34, %v36
  %v44 = vsel %vm41, %v32, %v34
  %v45 = vsel %vm41, %v38, %v32
  %v46 = vld [vmem:[%s1] sm:$0xf]
  %v48 = vlaneseq
  %v49 = vshrl.u32 %v48, 7
  %v50 = vsub.s32 0, %v49
  %v51 = vrot.slane %v46, %v50
  %v52 = vlaneseq
  %v53 = vshrl.u32 %v52, 7
  %v54 = vsub.s32 1, %v53
  %v55 = vrot.slane %v46, %v54
  %v56 = vlaneseq
  %v57 = vshrl.u32 %v56, 7
  %v58 = vsub.s32 2, %v57
  %v59 = vrot.slane %v46, %v58
  %v60 = vlaneseq
  %v61 = vshrl.u32 %v60, 7
  %v62 = vsub.s32 3, %v61
  %v63 = vrot.slane %v46, %v62
  %v68 = vmul.f32 %v45, %v51
  %v69 = vmul.f32 %v44, %v55
  %v70 = vmul.f32 %v43, %v59
  %v71 = vmul.f32 %v42, %v63
  %v72 = vld [vmem:[%s2] sm:$0xf]
  %73 = vrot.lane.b32.xlu0 %v23, 16
  %v74 = vpop.permute.xlu0 %73
  %75 = vrot.lane.b32.xlu0 %v27, 16
  %v76 = vpop.permute.xlu0 %75
  %77 = vrot.lane.b32.xlu0 %v24, 16
  %v78 = vpop.permute.xlu0 %77
  %79 = vrot.lane.b32.xlu0 %v28, 16
  %v80 = vpop.permute.xlu0 %79
  %vm81 = vcmp.lt.s32.totalorder %v40, 16
  %v82 = vsel %vm81, %v78, %v80
  %v83 = vsel %vm81, %v76, %v78
  %v84 = vsel %vm81, %v74, %v76
  %v85 = vsel %vm81, %v80, %v74
  %s86 = scalar_lea.vmem %s1, 4
  %v87 = vld [vmem:[%s86] sm:$0xf]
  %v89 = vlaneseq
  %v90 = vshrl.u32 %v89, 7
  %v91 = vsub.s32 0, %v90
  %v92 = vrot.slane %v87, %v91
  %v93 = vlaneseq
  %v94 = vshrl.u32 %v93, 7
  %v95 = vsub.s32 1, %v94
  %v96 = vrot.slane %v87, %v95
  %v97 = vlaneseq
  %v98 = vshrl.u32 %v97, 7
  %v99 = vsub.s32 2, %v98
  %v100 = vrot.slane %v87, %v99
  %v101 = vlaneseq
  %v102 = vshrl.u32 %v101, 7
  %v103 = vsub.s32 3, %v102
  %v104 = vrot.slane %v87, %v103
  %v109 = vmul.f32 %v85, %v92
  %v110 = vmul.f32 %v84, %v96
  %v111 = vmul.f32 %v83, %v100
  %v112 = vmul.f32 %v82, %v104
  %s113 = scalar_lea.vmem %s2, 4
  %v114 = vld [vmem:[%s113] sm:$0xf]
  %vm115 = vcmask 23552
  %v117 = vsel %vm115, %v114, 0
  %vm119 = vcmask 1042432
  %v121 = vsel %vm119, %v109, 0
  %v124 = vsel %vm119, %v110, 0
  %v127 = vsel %vm119, %v111, 0
  %v130 = vsel %vm119, %v112, 0
  %132 = vmatprep.subr.mxu0 %v124
  %133 = vmatpush1.msra.mxu0 %v121
  %134 = vmatprep.subr.mxu0 0.0
  %135 = vmatpush1.msra.mxu0 0.0
  %136 = vmatprep.subr.mxu0 0.0
  %137 = vmatpush1.msra.mxu0 0.0
  %138 = vmatprep.subr.mxu0 0.0
  %139 = vmatpush1.msra.mxu0 0.0
  %140 = vmatprep.subr.mxu0 0.0
  %141 = vmatpush1.msra.mxu0 0.0
  %142 = vmatprep.subr.mxu0 0.0
  %143 = vmatpush1.msra.mxu0 0.0
  %144 = vmatprep.subr.mxu0 0.0
  %145 = vmatpush1.msra.mxu0 0.0
  %146 = vmatprep.subr.mxu0 0.0
  %147 = vmatpush1.msra.mxu0 0.0
  %148 = vmatprep.subr.mxu0 0.0
  %149 = vmatpush1.msra.mxu0 0.0
  %150 = vmatprep.subr.mxu0 0.0
  %151 = vmatpush1.msra.mxu0 0.0
  %152 = vmatprep.subr.mxu0 0.0
  %153 = vmatpush1.msra.mxu0 0.0
  %154 = vmatprep.subr.mxu0 0.0
  %155 = vmatpush1.msra.mxu0 0.0
  %156 = vmatprep.subr.mxu0 0.0
  %157 = vmatpush1.msra.mxu0 0.0
  %158 = vmatprep.subr.mxu0 0.0
  %159 = vmatpush1.msra.mxu0 0.0
  %160 = vmatprep.subr.mxu0 0.0
  %161 = vmatpush1.msra.mxu0 0.0
  %162 = vmatprep.subr.mxu0 0.0
  %163 = vmatpush1.msra.mxu0 0.0
  %164 = vmatprep.subr.mxu0 0.0
  %165 = vmatpush1.msra.mxu0 0.0
  %166 = vmatprep.subr.mxu0 0.0
  %167 = vmatpush1.msra.mxu0 0.0
  %168 = vmatprep.subr.mxu0 0.0
  %169 = vmatpush1.msra.mxu0 0.0
  %170 = vmatprep.subr.mxu0 0.0
  %171 = vmatpush1.msra.mxu0 0.0
  %172 = vmatprep.subr.mxu0 0.0
  %173 = vmatpush1.msra.mxu0 0.0
  %174 = vmatprep.subr.mxu0 0.0
  %175 = vmatpush1.msra.mxu0 0.0
  %176 = vmatprep.subr.mxu0 0.0
  %177 = vmatpush1.msra.mxu0 0.0
  %178 = vmatprep.subr.mxu0 0.0
  %179 = vmatpush1.msra.mxu0 0.0
  %180 = vmatprep.subr.mxu0 0.0
  %181 = vmatpush1.msra.mxu0 0.0
  %182 = vmatprep.subr.mxu0 0.0
  %183 = vmatpush1.msra.mxu0 0.0
  %184 = vmatprep.subr.mxu0 0.0
  %185 = vmatpush1.msra.mxu0 0.0
  %186 = vmatprep.subr.mxu0 0.0
  %187 = vmatpush1.msra.mxu0 0.0
  %188 = vmatprep.subr.mxu0 0.0
  %189 = vmatpush1.msra.mxu0 0.0
  %190 = vmatprep.subr.mxu0 0.0
  %191 = vmatpush1.msra.mxu0 0.0
  %192 = vmatprep.subr.mxu0 0.0
  %193 = vmatpush1.msra.mxu0 0.0
  %194 = vmatprep.subr.mxu0 0.0
  %195 = vmatpush1.msra.mxu0 0.0
  %196 = vmatprep.mubr.f32.mxu0 0.0
  %197 = vmatmul.mubr.f32.gmra.mrb[0].mxu0 %v117
  %v198 = vpop.f32.mrb[0].mxu0
  %v199 = vadd.f32 0.0, %v198
  %v200 = vpop.f32.mrb[0].mxu0
  %v201 = vadd.f32 0.0, %v200
  %202 = vdwg.mxu0
  %203 = vmatprep.subr.mxu0 %v130
  %204 = vmatpush1.msra.mxu0 %v127
  %205 = vmatprep.subr.mxu0 0.0
  %206 = vmatpush1.msra.mxu0 0.0
  %207 = vmatprep.subr.mxu0 0.0
  %208 = vmatpush1.msra.mxu0 0.0
  %209 = vmatprep.subr.mxu0 0.0
  %210 = vmatpush1.msra.mxu0 0.0
  %211 = vmatprep.subr.mxu0 0.0
  %212 = vmatpush1.msra.mxu0 0.0
  %213 = vmatprep.subr.mxu0 0.0
  %214 = vmatpush1.msra.mxu0 0.0
  %215 = vmatprep.subr.mxu0 0.0
  %216 = vmatpush1.msra.mxu0 0.0
  %217 = vmatprep.subr.mxu0 0.0
  %218 = vmatpush1.msra.mxu0 0.0
  %219 = vmatprep.subr.mxu0 0.0
  %220 = vmatpush1.msra.mxu0 0.0
  %221 = vmatprep.subr.mxu0 0.0
  %222 = vmatpush1.msra.mxu0 0.0
  %223 = vmatprep.subr.mxu0 0.0
  %224 = vmatpush1.msra.mxu0 0.0
  %225 = vmatprep.subr.mxu0 0.0
  %226 = vmatpush1.msra.mxu0 0.0
  %227 = vmatprep.subr.mxu0 0.0
  %228 = vmatpush1.msra.mxu0 0.0
  %229 = vmatprep.subr.mxu0 0.0
  %230 = vmatpush1.msra.mxu0 0.0
  %231 = vmatprep.subr.mxu0 0.0
  %232 = vmatpush1.msra.mxu0 0.0
  %233 = vmatprep.subr.mxu0 0.0
  %234 = vmatpush1.msra.mxu0 0.0
  %235 = vmatprep.subr.mxu0 0.0
  %236 = vmatpush1.msra.mxu0 0.0
  %237 = vmatprep.subr.mxu0 0.0
  %238 = vmatpush1.msra.mxu0 0.0
  %239 = vmatprep.subr.mxu0 0.0
  %240 = vmatpush1.msra.mxu0 0.0
  %241 = vmatprep.subr.mxu0 0.0
  %242 = vmatpush1.msra.mxu0 0.0
  %243 = vmatprep.subr.mxu0 0.0
  %244 = vmatpush1.msra.mxu0 0.0
  %245 = vmatprep.subr.mxu0 0.0
  %246 = vmatpush1.msra.mxu0 0.0
  %247 = vmatprep.subr.mxu0 0.0
  %248 = vmatpush1.msra.mxu0 0.0
  %249 = vmatprep.subr.mxu0 0.0
  %250 = vmatpush1.msra.mxu0 0.0
  %251 = vmatprep.subr.mxu0 0.0
  %252 = vmatpush1.msra.mxu0 0.0
  %253 = vmatprep.subr.mxu0 0.0
  %254 = vmatpush1.msra.mxu0 0.0
  %255 = vmatprep.subr.mxu0 0.0
  %256 = vmatpush1.msra.mxu0 0.0
  %257 = vmatprep.subr.mxu0 0.0
  %258 = vmatpush1.msra.mxu0 0.0
  %259 = vmatprep.subr.mxu0 0.0
  %260 = vmatpush1.msra.mxu0 0.0
  %261 = vmatprep.subr.mxu0 0.0
  %262 = vmatpush1.msra.mxu0 0.0
  %263 = vmatprep.subr.mxu0 0.0
  %264 = vmatpush1.msra.mxu0 0.0
  %265 = vmatprep.subr.mxu0 0.0
  %266 = vmatpush1.msra.mxu0 0.0
  %267 = vmatprep.mubr.f32.mxu0 0.0
  %268 = vmatmul.mubr.f32.gmra.mrb[0].mxu0 %v117
  %v269 = vpop.f32.mrb[0].mxu0
  %v270 = vadd.f32 0.0, %v269
  %v271 = vpop.f32.mrb[0].mxu0
  %v272 = vadd.f32 0.0, %v271
  %273 = vdwg.mxu0
  %v275 = vsel %vm115, %v72, 0
  %v278 = vsel %vm119, %v68, 0
  %v281 = vsel %vm119, %v69, 0
  %v284 = vsel %vm119, %v70, 0
  %v287 = vsel %vm119, %v71, 0
  %289 = vmatprep.subr.mxu0 %v281
  %290 = vmatpush1.msra.mxu0 %v278
  %291 = vmatprep.subr.mxu0 0.0
  %292 = vmatpush1.msra.mxu0 0.0
  %293 = vmatprep.subr.mxu0 0.0
  %294 = vmatpush1.msra.mxu0 0.0
  %295 = vmatprep.subr.mxu0 0.0
  %296 = vmatpush1.msra.mxu0 0.0
  %297 = vmatprep.subr.mxu0 0.0
  %298 = vmatpush1.msra.mxu0 0.0
  %299 = vmatprep.subr.mxu0 0.0
  %300 = vmatpush1.msra.mxu0 0.0
  %301 = vmatprep.subr.mxu0 0.0
  %302 = vmatpush1.msra.mxu0 0.0
  %303 = vmatprep.subr.mxu0 0.0
  %304 = vmatpush1.msra.mxu0 0.0
  %305 = vmatprep.subr.mxu0 0.0
  %306 = vmatpush1.msra.mxu0 0.0
  %307 = vmatprep.subr.mxu0 0.0
  %308 = vmatpush1.msra.mxu0 0.0
  %309 = vmatprep.subr.mxu0 0.0
  %310 = vmatpush1.msra.mxu0 0.0
  %311 = vmatprep.subr.mxu0 0.0
  %312 = vmatpush1.msra.mxu0 0.0
  %313 = vmatprep.subr.mxu0 0.0
  %314 = vmatpush1.msra.mxu0 0.0
  %315 = vmatprep.subr.mxu0 0.0
  %316 = vmatpush1.msra.mxu0 0.0
  %317 = vmatprep.subr.mxu0 0.0
  %318 = vmatpush1.msra.mxu0 0.0
  %319 = vmatprep.subr.mxu0 0.0
  %320 = vmatpush1.msra.mxu0 0.0
  %321 = vmatprep.subr.mxu0 0.0
  %322 = vmatpush1.msra.mxu0 0.0
  %323 = vmatprep.subr.mxu0 0.0
  %324 = vmatpush1.msra.mxu0 0.0
  %325 = vmatprep.subr.mxu0 0.0
  %326 = vmatpush1.msra.mxu0 0.0
  %327 = vmatprep.subr.mxu0 0.0
  %328 = vmatpush1.msra.mxu0 0.0
  %329 = vmatprep.subr.mxu0 0.0
  %330 = vmatpush1.msra.mxu0 0.0
  %331 = vmatprep.subr.mxu0 0.0
  %332 = vmatpush1.msra.mxu0 0.0
  %333 = vmatprep.subr.mxu0 0.0
  %334 = vmatpush1.msra.mxu0 0.0
  %335 = vmatprep.subr.mxu0 0.0
  %336 = vmatpush1.msra.mxu0 0.0
  %337 = vmatprep.subr.mxu0 0.0
  %338 = vmatpush1.msra.mxu0 0.0
  %339 = vmatprep.subr.mxu0 0.0
  %340 = vmatpush1.msra.mxu0 0.0
  %341 = vmatprep.subr.mxu0 0.0
  %342 = vmatpush1.msra.mxu0 0.0
  %343 = vmatprep.subr.mxu0 0.0
  %344 = vmatpush1.msra.mxu0 0.0
  %345 = vmatprep.subr.mxu0 0.0
  %346 = vmatpush1.msra.mxu0 0.0
  %347 = vmatprep.subr.mxu0 0.0
  %348 = vmatpush1.msra.mxu0 0.0
  %349 = vmatprep.subr.mxu0 0.0
  %350 = vmatpush1.msra.mxu0 0.0
  %351 = vmatprep.subr.mxu0 0.0
  %352 = vmatpush1.msra.mxu0 0.0
  %353 = vmatprep.mubr.f32.mxu0 0.0
  %354 = vmatmul.mubr.f32.gmra.mrb[0].mxu0 %v275
  %v355 = vpop.f32.mrb[0].mxu0
  %v356 = vadd.f32 %v199, %v355
  %v357 = vpop.f32.mrb[0].mxu0
  %v358 = vadd.f32 %v201, %v357
  %359 = vdwg.mxu0
  %360 = vmatprep.subr.mxu0 %v287
  %361 = vmatpush1.msra.mxu0 %v284
  %362 = vmatprep.subr.mxu0 0.0
  %363 = vmatpush1.msra.mxu0 0.0
  %364 = vmatprep.subr.mxu0 0.0
  %365 = vmatpush1.msra.mxu0 0.0
  %366 = vmatprep.subr.mxu0 0.0
  %367 = vmatpush1.msra.mxu0 0.0
  %368 = vmatprep.subr.mxu0 0.0
  %369 = vmatpush1.msra.mxu0 0.0
  %370 = vmatprep.subr.mxu0 0.0
  %371 = vmatpush1.msra.mxu0 0.0
  %372 = vmatprep.subr.mxu0 0.0
  %373 = vmatpush1.msra.mxu0 0.0
  %374 = vmatprep.subr.mxu0 0.0
  %375 = vmatpush1.msra.mxu0 0.0
  %376 = vmatprep.subr.mxu0 0.0
  %377 = vmatpush1.msra.mxu0 0.0
  %378 = vmatprep.subr.mxu0 0.0
  %379 = vmatpush1.msra.mxu0 0.0
  %380 = vmatprep.subr.mxu0 0.0
  %381 = vmatpush1.msra.mxu0 0.0
  %382 = vmatprep.subr.mxu0 0.0
  %383 = vmatpush1.msra.mxu0 0.0
  %384 = vmatprep.subr.mxu0 0.0
  %385 = vmatpush1.msra.mxu0 0.0
  %386 = vmatprep.subr.mxu0 0.0
  %387 = vmatpush1.msra.mxu0 0.0
  %388 = vmatprep.subr.mxu0 0.0
  %389 = vmatpush1.msra.mxu0 0.0
  %390 = vmatprep.subr.mxu0 0.0
  %391 = vmatpush1.msra.mxu0 0.0
  %392 = vmatprep.subr.mxu0 0.0
  %393 = vmatpush1.msra.mxu0 0.0
  %394 = vmatprep.subr.mxu0 0.0
  %395 = vmatpush1.msra.mxu0 0.0
  %396 = vmatprep.subr.mxu0 0.0
  %397 = vmatpush1.msra.mxu0 0.0
  %398 = vmatprep.subr.mxu0 0.0
  %399 = vmatpush1.msra.mxu0 0.0
  %400 = vmatprep.subr.mxu0 0.0
  %401 = vmatpush1.msra.mxu0 0.0
  %402 = vmatprep.subr.mxu0 0.0
  %403 = vmatpush1.msra.mxu0 0.0
  %404 = vmatprep.subr.mxu0 0.0
  %405 = vmatpush1.msra.mxu0 0.0
  %406 = vmatprep.subr.mxu0 0.0
  %407 = vmatpush1.msra.mxu0 0.0
  %408 = vmatprep.subr.mxu0 0.0
  %409 = vmatpush1.msra.mxu0 0.0
  %410 = vmatprep.subr.mxu0 0.0
  %411 = vmatpush1.msra.mxu0 0.0
  %412 = vmatprep.subr.mxu0 0.0
  %413 = vmatpush1.msra.mxu0 0.0
  %414 = vmatprep.subr.mxu0 0.0
  %415 = vmatpush1.msra.mxu0 0.0
  %416 = vmatprep.subr.mxu0 0.0
  %417 = vmatpush1.msra.mxu0 0.0
  %418 = vmatprep.subr.mxu0 0.0
  %419 = vmatpush1.msra.mxu0 0.0
  %420 = vmatprep.subr.mxu0 0.0
  %421 = vmatpush1.msra.mxu0 0.0
  %422 = vmatprep.subr.mxu0 0.0
  %423 = vmatpush1.msra.mxu0 0.0
  %424 = vmatprep.mubr.f32.mxu0 0.0
  %425 = vmatmul.mubr.f32.gmra.mrb[0].mxu0 %v275
  %v426 = vpop.f32.mrb[0].mxu0
  %v427 = vadd.f32 %v270, %v426
  %v428 = vpop.f32.mrb[0].mxu0
  %v429 = vadd.f32 %v272, %v428
  %430 = vdwg.mxu0
  %431 = vrot.lane.b32.xlu0 %v23, 15
  %v432 = vpop.permute.xlu0 %431
  %433 = vrot.lane.b32.xlu0 %v27, 15
  %v434 = vpop.permute.xlu0 %433
  %435 = vrot.lane.b32.xlu0 %v24, 15
  %v436 = vpop.permute.xlu0 %435
  %437 = vrot.lane.b32.xlu0 %v28, 15
  %v438 = vpop.permute.xlu0 %437
  %vm439 = vcmp.lt.s32.totalorder %v40, 15
  %v440 = vsel %vm439, %v436, %v438
  %v441 = vsel %vm439, %v434, %v436
  %v442 = vsel %vm439, %v432, %v434
  %v443 = vsel %vm439, %v438, %v432
  %s444 = scalar_lea.vmem %s1, 8
  %v445 = vld [vmem:[%s444] sm:$0xf]
  %v447 = vlaneseq
  %v448 = vshrl.u32 %v447, 7
  %v449 = vsub.s32 0, %v448
  %v450 = vrot.slane %v445, %v449
  %v451 = vlaneseq
  %v452 = vshrl.u32 %v451, 7
  %v453 = vsub.s32 1, %v452
  %v454 = vrot.slane %v445, %v453
  %v455 = vlaneseq
  %v456 = vshrl.u32 %v455, 7
  %v457 = vsub.s32 2, %v456
  %v458 = vrot.slane %v445, %v457
  %v459 = vlaneseq
  %v460 = vshrl.u32 %v459, 7
  %v461 = vsub.s32 3, %v460
  %v462 = vrot.slane %v445, %v461
  %v467 = vmul.f32 %v443, %v450
  %v468 = vmul.f32 %v442, %v454
  %v469 = vmul.f32 %v441, %v458
  %v470 = vmul.f32 %v440, %v462
  %s471 = scalar_lea.vmem %s2, 8
  %v472 = vld [vmem:[%s471] sm:$0xf]
  %v474 = vsel %vm115, %v472, 0
  %v477 = vsel %vm119, %v467, 0
  %v480 = vsel %vm119, %v468, 0
  %v483 = vsel %vm119, %v469, 0
  %v486 = vsel %vm119, %v470, 0
  %488 = vmatprep.subr.mxu0 %v480
  %489 = vmatpush1.msra.mxu0 %v477
  %490 = vmatprep.subr.mxu0 0.0
  %491 = vmatpush1.msra.mxu0 0.0
  %492 = vmatprep.subr.mxu0 0.0
  %493 = vmatpush1.msra.mxu0 0.0
  %494 = vmatprep.subr.mxu0 0.0
  %495 = vmatpush1.msra.mxu0 0.0
  %496 = vmatprep.subr.mxu0 0.0
  %497 = vmatpush1.msra.mxu0 0.0
  %498 = vmatprep.subr.mxu0 0.0
  %499 = vmatpush1.msra.mxu0 0.0
  %500 = vmatprep.subr.mxu0 0.0
  %501 = vmatpush1.msra.mxu0 0.0
  %502 = vmatprep.subr.mxu0 0.0
  %503 = vmatpush1.msra.mxu0 0.0
  %504 = vmatprep.subr.mxu0 0.0
  %505 = vmatpush1.msra.mxu0 0.0
  %506 = vmatprep.subr.mxu0 0.0
  %507 = vmatpush1.msra.mxu0 0.0
  %508 = vmatprep.subr.mxu0 0.0
  %509 = vmatpush1.msra.mxu0 0.0
  %510 = vmatprep.subr.mxu0 0.0
  %511 = vmatpush1.msra.mxu0 0.0
  %512 = vmatprep.subr.mxu0 0.0
  %513 = vmatpush1.msra.mxu0 0.0
  %514 = vmatprep.subr.mxu0 0.0
  %515 = vmatpush1.msra.mxu0 0.0
  %516 = vmatprep.subr.mxu0 0.0
  %517 = vmatpush1.msra.mxu0 0.0
  %518 = vmatprep.subr.mxu0 0.0
  %519 = vmatpush1.msra.mxu0 0.0
  %520 = vmatprep.subr.mxu0 0.0
  %521 = vmatpush1.msra.mxu0 0.0
  %522 = vmatprep.subr.mxu0 0.0
  %523 = vmatpush1.msra.mxu0 0.0
  %524 = vmatprep.subr.mxu0 0.0
  %525 = vmatpush1.msra.mxu0 0.0
  %526 = vmatprep.subr.mxu0 0.0
  %527 = vmatpush1.msra.mxu0 0.0
  %528 = vmatprep.subr.mxu0 0.0
  %529 = vmatpush1.msra.mxu0 0.0
  %530 = vmatprep.subr.mxu0 0.0
  %531 = vmatpush1.msra.mxu0 0.0
  %532 = vmatprep.subr.mxu0 0.0
  %533 = vmatpush1.msra.mxu0 0.0
  %534 = vmatprep.subr.mxu0 0.0
  %535 = vmatpush1.msra.mxu0 0.0
  %536 = vmatprep.subr.mxu0 0.0
  %537 = vmatpush1.msra.mxu0 0.0
  %538 = vmatprep.subr.mxu0 0.0
  %539 = vmatpush1.msra.mxu0 0.0
  %540 = vmatprep.subr.mxu0 0.0
  %541 = vmatpush1.msra.mxu0 0.0
  %542 = vmatprep.subr.mxu0 0.0
  %543 = vmatpush1.msra.mxu0 0.0
  %544 = vmatprep.subr.mxu0 0.0
  %545 = vmatpush1.msra.mxu0 0.0
  %546 = vmatprep.subr.mxu0 0.0
  %547 = vmatpush1.msra.mxu0 0.0
  %548 = vmatprep.subr.mxu0 0.0
  %549 = vmatpush1.msra.mxu0 0.0
  %550 = vmatprep.subr.mxu0 0.0
  %551 = vmatpush1.msra.mxu0 0.0
  %552 = vmatprep.mubr.f32.mxu0 0.0
  %553 = vmatmul.mubr.f32.gmra.mrb[0].mxu0 %v474
  %v554 = vpop.f32.mrb[0].mxu0
  %v555 = vadd.f32 0.0, %v554
  %v556 = vpop.f32.mrb[0].mxu0
  %v557 = vadd.f32 0.0, %v556
  %558 = vdwg.mxu0
  %559 = vmatprep.subr.mxu0 %v486
  %560 = vmatpush1.msra.mxu0 %v483
  %561 = vmatprep.subr.mxu0 0.0
  %562 = vmatpush1.msra.mxu0 0.0
  %563 = vmatprep.subr.mxu0 0.0
  %564 = vmatpush1.msra.mxu0 0.0
  %565 = vmatprep.subr.mxu0 0.0
  %566 = vmatpush1.msra.mxu0 0.0
  %567 = vmatprep.subr.mxu0 0.0
  %568 = vmatpush1.msra.mxu0 0.0
  %569 = vmatprep.subr.mxu0 0.0
  %570 = vmatpush1.msra.mxu0 0.0
  %571 = vmatprep.subr.mxu0 0.0
  %572 = vmatpush1.msra.mxu0 0.0
  %573 = vmatprep.subr.mxu0 0.0
  %574 = vmatpush1.msra.mxu0 0.0
  %575 = vmatprep.subr.mxu0 0.0
  %576 = vmatpush1.msra.mxu0 0.0
  %577 = vmatprep.subr.mxu0 0.0
  %578 = vmatpush1.msra.mxu0 0.0
  %579 = vmatprep.subr.mxu0 0.0
  %580 = vmatpush1.msra.mxu0 0.0
  %581 = vmatprep.subr.mxu0 0.0
  %582 = vmatpush1.msra.mxu0 0.0
  %583 = vmatprep.subr.mxu0 0.0
  %584 = vmatpush1.msra.mxu0 0.0
  %585 = vmatprep.subr.mxu0 0.0
  %586 = vmatpush1.msra.mxu0 0.0
  %587 = vmatprep.subr.mxu0 0.0
  %588 = vmatpush1.msra.mxu0 0.0
  %589 = vmatprep.subr.mxu0 0.0
  %590 = vmatpush1.msra.mxu0 0.0
  %591 = vmatprep.subr.mxu0 0.0
  %592 = vmatpush1.msra.mxu0 0.0
  %593 = vmatprep.subr.mxu0 0.0
  %594 = vmatpush1.msra.mxu0 0.0
  %595 = vmatprep.subr.mxu0 0.0
  %596 = vmatpush1.msra.mxu0 0.0
  %597 = vmatprep.subr.mxu0 0.0
  %598 = vmatpush1.msra.mxu0 0.0
  %599 = vmatprep.subr.mxu0 0.0
  %600 = vmatpush1.msra.mxu0 0.0
  %601 = vmatprep.subr.mxu0 0.0
  %602 = vmatpush1.msra.mxu0 0.0
  %603 = vmatprep.subr.mxu0 0.0
  %604 = vmatpush1.msra.mxu0 0.0
  %605 = vmatprep.subr.mxu0 0.0
  %606 = vmatpush1.msra.mxu0 0.0
  %607 = vmatprep.subr.mxu0 0.0
  %608 = vmatpush1.msra.mxu0 0.0
  %609 = vmatprep.subr.mxu0 0.0
  %610 = vmatpush1.msra.mxu0 0.0
  %611 = vmatprep.subr.mxu0 0.0
  %612 = vmatpush1.msra.mxu0 0.0
  %613 = vmatprep.subr.mxu0 0.0
  %614 = vmatpush1.msra.mxu0 0.0
  %615 = vmatprep.subr.mxu0 0.0
  %616 = vmatpush1.msra.mxu0 0.0
  %617 = vmatprep.subr.mxu0 0.0
  %618 = vmatpush1.msra.mxu0 0.0
  %619 = vmatprep.subr.mxu0 0.0
  %620 = vmatpush1.msra.mxu0 0.0
  %621 = vmatprep.subr.mxu0 0.0
  %622 = vmatpush1.msra.mxu0 0.0
  %623 = vmatprep.mubr.f32.mxu0 0.0
  %624 = vmatmul.mubr.f32.gmra.mrb[0].mxu0 %v474
  %v625 = vpop.f32.mrb[0].mxu0
  %v626 = vadd.f32 0.0, %v625
  %v627 = vpop.f32.mrb[0].mxu0
  %v628 = vadd.f32 0.0, %v627
  %629 = vdwg.mxu0
  %v630 = vadd.f32 %v356, %v555
  %v631 = vadd.f32 %v358, %v557
  %v632 = vadd.f32 %v427, %v626
  %v633 = vadd.f32 %v429, %v628
  %634 = vrot.lane.b32.xlu0 %v23, 1
  %v635 = vpop.permute.xlu0 %634
  %636 = vrot.lane.b32.xlu0 %v27, 1
  %v637 = vpop.permute.xlu0 %636
  %638 = vrot.lane.b32.xlu0 %v24, 1
  %v639 = vpop.permute.xlu0 %638
  %640 = vrot.lane.b32.xlu0 %v28, 1
  %v641 = vpop.permute.xlu0 %640
  %vm642 = vcmp.lt.s32.totalorder %v40, 1
  %v643 = vsel %vm642, %v639, %v641
  %v644 = vsel %vm642, %v637, %v639
  %v645 = vsel %vm642, %v635, %v637
  %v646 = vsel %vm642, %v641, %v635
  %s647 = scalar_lea.vmem %s1, 12
  %v648 = vld [vmem:[%s647] sm:$0xf]
  %v650 = vlaneseq
  %v651 = vshrl.u32 %v650, 7
  %v652 = vsub.s32 0, %v651
  %v653 = vrot.slane %v648, %v652
  %v654 = vlaneseq
  %v655 = vshrl.u32 %v654, 7
  %v656 = vsub.s32 1, %v655
  %v657 = vrot.slane %v648, %v656
  %v658 = vlaneseq
  %v659 = vshrl.u32 %v658, 7
  %v660 = vsub.s32 2, %v659
  %v661 = vrot.slane %v648, %v660
  %v662 = vlaneseq
  %v663 = vshrl.u32 %v662, 7
  %v664 = vsub.s32 3, %v663
  %v665 = vrot.slane %v648, %v664
  %v670 = vmul.f32 %v646, %v653
  %v671 = vmul.f32 %v645, %v657
  %v672 = vmul.f32 %v644, %v661
  %v673 = vmul.f32 %v643, %v665
  %s674 = scalar_lea.vmem %s2, 12
  %v675 = vld [vmem:[%s674] sm:$0xf]
  %v677 = vsel %vm115, %v675, 0
  %v680 = vsel %vm119, %v670, 0
  %v683 = vsel %vm119, %v671, 0
  %v686 = vsel %vm119, %v672, 0
  %v689 = vsel %vm119, %v673, 0
  %691 = vmatprep.subr.mxu0 %v683
  %692 = vmatpush1.msra.mxu0 %v680
  %693 = vmatprep.subr.mxu0 0.0
  %694 = vmatpush1.msra.mxu0 0.0
  %695 = vmatprep.subr.mxu0 0.0
  %696 = vmatpush1.msra.mxu0 0.0
  %697 = vmatprep.subr.mxu0 0.0
  %698 = vmatpush1.msra.mxu0 0.0
  %699 = vmatprep.subr.mxu0 0.0
  %700 = vmatpush1.msra.mxu0 0.0
  %701 = vmatprep.subr.mxu0 0.0
  %702 = vmatpush1.msra.mxu0 0.0
  %703 = vmatprep.subr.mxu0 0.0
  %704 = vmatpush1.msra.mxu0 0.0
  %705 = vmatprep.subr.mxu0 0.0
  %706 = vmatpush1.msra.mxu0 0.0
  %707 = vmatprep.subr.mxu0 0.0
  %708 = vmatpush1.msra.mxu0 0.0
  %709 = vmatprep.subr.mxu0 0.0
  %710 = vmatpush1.msra.mxu0 0.0
  %711 = vmatprep.subr.mxu0 0.0
  %712 = vmatpush1.msra.mxu0 0.0
  %713 = vmatprep.subr.mxu0 0.0
  %714 = vmatpush1.msra.mxu0 0.0
  %715 = vmatprep.subr.mxu0 0.0
  %716 = vmatpush1.msra.mxu0 0.0
  %717 = vmatprep.subr.mxu0 0.0
  %718 = vmatpush1.msra.mxu0 0.0
  %719 = vmatprep.subr.mxu0 0.0
  %720 = vmatpush1.msra.mxu0 0.0
  %721 = vmatprep.subr.mxu0 0.0
  %722 = vmatpush1.msra.mxu0 0.0
  %723 = vmatprep.subr.mxu0 0.0
  %724 = vmatpush1.msra.mxu0 0.0
  %725 = vmatprep.subr.mxu0 0.0
  %726 = vmatpush1.msra.mxu0 0.0
  %727 = vmatprep.subr.mxu0 0.0
  %728 = vmatpush1.msra.mxu0 0.0
  %729 = vmatprep.subr.mxu0 0.0
  %730 = vmatpush1.msra.mxu0 0.0
  %731 = vmatprep.subr.mxu0 0.0
  %732 = vmatpush1.msra.mxu0 0.0
  %733 = vmatprep.subr.mxu0 0.0
  %734 = vmatpush1.msra.mxu0 0.0
  %735 = vmatprep.subr.mxu0 0.0
  %736 = vmatpush1.msra.mxu0 0.0
  %737 = vmatprep.subr.mxu0 0.0
  %738 = vmatpush1.msra.mxu0 0.0
  %739 = vmatprep.subr.mxu0 0.0
  %740 = vmatpush1.msra.mxu0 0.0
  %741 = vmatprep.subr.mxu0 0.0
  %742 = vmatpush1.msra.mxu0 0.0
  %743 = vmatprep.subr.mxu0 0.0
  %744 = vmatpush1.msra.mxu0 0.0
  %745 = vmatprep.subr.mxu0 0.0
  %746 = vmatpush1.msra.mxu0 0.0
  %747 = vmatprep.subr.mxu0 0.0
  %748 = vmatpush1.msra.mxu0 0.0
  %749 = vmatprep.subr.mxu0 0.0
  %750 = vmatpush1.msra.mxu0 0.0
  %751 = vmatprep.subr.mxu0 0.0
  %752 = vmatpush1.msra.mxu0 0.0
  %753 = vmatprep.subr.mxu0 0.0
  %754 = vmatpush1.msra.mxu0 0.0
  %755 = vmatprep.mubr.f32.mxu0 0.0
  %756 = vmatmul.mubr.f32.gmra.mrb[0].mxu0 %v677
  %v757 = vpop.f32.mrb[0].mxu0
  %v758 = vadd.f32 0.0, %v757
  %v759 = vpop.f32.mrb[0].mxu0
  %v760 = vadd.f32 0.0, %v759
  %761 = vdwg.mxu0
  %762 = vmatprep.subr.mxu0 %v689
  %763 = vmatpush1.msra.mxu0 %v686
  %764 = vmatprep.subr.mxu0 0.0
  %765 = vmatpush1.msra.mxu0 0.0
  %766 = vmatprep.subr.mxu0 0.0
  %767 = vmatpush1.msra.mxu0 0.0
  %768 = vmatprep.subr.mxu0 0.0
  %769 = vmatpush1.msra.mxu0 0.0
  %770 = vmatprep.subr.mxu0 0.0
  %771 = vmatpush1.msra.mxu0 0.0
  %772 = vmatprep.subr.mxu0 0.0
  %773 = vmatpush1.msra.mxu0 0.0
  %774 = vmatprep.subr.mxu0 0.0
  %775 = vmatpush1.msra.mxu0 0.0
  %776 = vmatprep.subr.mxu0 0.0
  %777 = vmatpush1.msra.mxu0 0.0
  %778 = vmatprep.subr.mxu0 0.0
  %779 = vmatpush1.msra.mxu0 0.0
  %780 = vmatprep.subr.mxu0 0.0
  %781 = vmatpush1.msra.mxu0 0.0
  %782 = vmatprep.subr.mxu0 0.0
  %783 = vmatpush1.msra.mxu0 0.0
  %784 = vmatprep.subr.mxu0 0.0
  %785 = vmatpush1.msra.mxu0 0.0
  %786 = vmatprep.subr.mxu0 0.0
  %787 = vmatpush1.msra.mxu0 0.0
  %788 = vmatprep.subr.mxu0 0.0
  %789 = vmatpush1.msra.mxu0 0.0
  %790 = vmatprep.subr.mxu0 0.0
  %791 = vmatpush1.msra.mxu0 0.0
  %792 = vmatprep.subr.mxu0 0.0
  %793 = vmatpush1.msra.mxu0 0.0
  %794 = vmatprep.subr.mxu0 0.0
  %795 = vmatpush1.msra.mxu0 0.0
  %796 = vmatprep.subr.mxu0 0.0
  %797 = vmatpush1.msra.mxu0 0.0
  %798 = vmatprep.subr.mxu0 0.0
  %799 = vmatpush1.msra.mxu0 0.0
  %800 = vmatprep.subr.mxu0 0.0
  %801 = vmatpush1.msra.mxu0 0.0
  %802 = vmatprep.subr.mxu0 0.0
  %803 = vmatpush1.msra.mxu0 0.0
  %804 = vmatprep.subr.mxu0 0.0
  %805 = vmatpush1.msra.mxu0 0.0
  %806 = vmatprep.subr.mxu0 0.0
  %807 = vmatpush1.msra.mxu0 0.0
  %808 = vmatprep.subr.mxu0 0.0
  %809 = vmatpush1.msra.mxu0 0.0
  %810 = vmatprep.subr.mxu0 0.0
  %811 = vmatpush1.msra.mxu0 0.0
  %812 = vmatprep.subr.mxu0 0.0
  %813 = vmatpush1.msra.mxu0 0.0
  %814 = vmatprep.subr.mxu0 0.0
  %815 = vmatpush1.msra.mxu0 0.0
  %816 = vmatprep.subr.mxu0 0.0
  %817 = vmatpush1.msra.mxu0 0.0
  %818 = vmatprep.subr.mxu0 0.0
  %819 = vmatpush1.msra.mxu0 0.0
  %820 = vmatprep.subr.mxu0 0.0
  %821 = vmatpush1.msra.mxu0 0.0
  %822 = vmatprep.subr.mxu0 0.0
  %823 = vmatpush1.msra.mxu0 0.0
  %824 = vmatprep.subr.mxu0 0.0
  %825 = vmatpush1.msra.mxu0 0.0
  %826 = vmatprep.mubr.f32.mxu0 0.0
  %827 = vmatmul.mubr.f32.gmra.mrb[0].mxu0 %v677
  %v828 = vpop.f32.mrb[0].mxu0
  %v829 = vadd.f32 0.0, %v828
  %v830 = vpop.f32.mrb[0].mxu0
  %v831 = vadd.f32 0.0, %v830
  %832 = vdwg.mxu0
  %v833 = vadd.f32 %v630, %v758
  %v834 = vadd.f32 %v631, %v760
  %v835 = vadd.f32 %v632, %v829
  %v836 = vadd.f32 %v633, %v831
  %s837 = scalar_lea.vmem %s1, 16
  %v838 = vld [vmem:[%s837] sm:$0xf]
  %v840 = vlaneseq
  %v841 = vshrl.u32 %v840, 7
  %v842 = vsub.s32 0, %v841
  %v843 = vrot.slane %v838, %v842
  %v844 = vlaneseq
  %v845 = vshrl.u32 %v844, 7
  %v846 = vsub.s32 1, %v845
  %v847 = vrot.slane %v838, %v846
  %v848 = vlaneseq
  %v849 = vshrl.u32 %v848, 7
  %v850 = vsub.s32 2, %v849
  %v851 = vrot.slane %v838, %v850
  %v852 = vlaneseq
  %v853 = vshrl.u32 %v852, 7
  %v854 = vsub.s32 3, %v853
  %v855 = vrot.slane %v838, %v854
  %v860 = vmul.f32 %v23, %v843
  %v861 = vmul.f32 %v27, %v847
  %v862 = vmul.f32 %v24, %v851
  %v863 = vmul.f32 %v28, %v855
  %s864 = scalar_lea.vmem %s2, 16
  %v865 = vld [vmem:[%s864] sm:$0xf]
  %v867 = vsel %vm115, %v865, 0
  %v870 = vsel %vm119, %v860, 0
  %v873 = vsel %vm119, %v861, 0
  %v876 = vsel %vm119, %v862, 0
  %v879 = vsel %vm119, %v863, 0
  %881 = vmatprep.subr.mxu0 %v873
  %882 = vmatpush1.msra.mxu0 %v870
  %883 = vmatprep.subr.mxu0 0.0
  %884 = vmatpush1.msra.mxu0 0.0
  %885 = vmatprep.subr.mxu0 0.0
  %886 = vmatpush1.msra.mxu0 0.0
  %887 = vmatprep.subr.mxu0 0.0
  %888 = vmatpush1.msra.mxu0 0.0
  %889 = vmatprep.subr.mxu0 0.0
  %890 = vmatpush1.msra.mxu0 0.0
  %891 = vmatprep.subr.mxu0 0.0
  %892 = vmatpush1.msra.mxu0 0.0
  %893 = vmatprep.subr.mxu0 0.0
  %894 = vmatpush1.msra.mxu0 0.0
  %895 = vmatprep.subr.mxu0 0.0
  %896 = vmatpush1.msra.mxu0 0.0
  %897 = vmatprep.subr.mxu0 0.0
  %898 = vmatpush1.msra.mxu0 0.0
  %899 = vmatprep.subr.mxu0 0.0
  %900 = vmatpush1.msra.mxu0 0.0
  %901 = vmatprep.subr.mxu0 0.0
  %902 = vmatpush1.msra.mxu0 0.0
  %903 = vmatprep.subr.mxu0 0.0
  %904 = vmatpush1.msra.mxu0 0.0
  %905 = vmatprep.subr.mxu0 0.0
  %906 = vmatpush1.msra.mxu0 0.0
  %907 = vmatprep.subr.mxu0 0.0
  %908 = vmatpush1.msra.mxu0 0.0
  %909 = vmatprep.subr.mxu0 0.0
  %910 = vmatpush1.msra.mxu0 0.0
  %911 = vmatprep.subr.mxu0 0.0
  %912 = vmatpush1.msra.mxu0 0.0
  %913 = vmatprep.subr.mxu0 0.0
  %914 = vmatpush1.msra.mxu0 0.0
  %915 = vmatprep.subr.mxu0 0.0
  %916 = vmatpush1.msra.mxu0 0.0
  %917 = vmatprep.subr.mxu0 0.0
  %918 = vmatpush1.msra.mxu0 0.0
  %919 = vmatprep.subr.mxu0 0.0
  %920 = vmatpush1.msra.mxu0 0.0
  %921 = vmatprep.subr.mxu0 0.0
  %922 = vmatpush1.msra.mxu0 0.0
  %923 = vmatprep.subr.mxu0 0.0
  %924 = vmatpush1.msra.mxu0 0.0
  %925 = vmatprep.subr.mxu0 0.0
  %926 = vmatpush1.msra.mxu0 0.0
  %927 = vmatprep.subr.mxu0 0.0
  %928 = vmatpush1.msra.mxu0 0.0
  %929 = vmatprep.subr.mxu0 0.0
  %930 = vmatpush1.msra.mxu0 0.0
  %931 = vmatprep.subr.mxu0 0.0
  %932 = vmatpush1.msra.mxu0 0.0
  %933 = vmatprep.subr.mxu0 0.0
  %934 = vmatpush1.msra.mxu0 0.0
  %935 = vmatprep.subr.mxu0 0.0
  %936 = vmatpush1.msra.mxu0 0.0
  %937 = vmatprep.subr.mxu0 0.0
  %938 = vmatpush1.msra.mxu0 0.0
  %939 = vmatprep.subr.mxu0 0.0
  %940 = vmatpush1.msra.mxu0 0.0
  %941 = vmatprep.subr.mxu0 0.0
  %942 = vmatpush1.msra.mxu0 0.0
  %943 = vmatprep.subr.mxu0 0.0
  %944 = vmatpush1.msra.mxu0 0.0
  %945 = vmatprep.mubr.f32.mxu0 0.0
  %946 = vmatmul.mubr.f32.gmra.mrb[0].mxu0 %v867
  %v947 = vpop.f32.mrb[0].mxu0
  %v948 = vadd.f32 0.0, %v947
  %v949 = vpop.f32.mrb[0].mxu0
  %v950 = vadd.f32 0.0, %v949
  %951 = vdwg.mxu0
  %952 = vmatprep.subr.mxu0 %v879
  %953 = vmatpush1.msra.mxu0 %v876
  %954 = vmatprep.subr.mxu0 0.0
  %955 = vmatpush1.msra.mxu0 0.0
  %956 = vmatprep.subr.mxu0 0.0
  %957 = vmatpush1.msra.mxu0 0.0
  %958 = vmatprep.subr.mxu0 0.0
  %959 = vmatpush1.msra.mxu0 0.0
  %960 = vmatprep.subr.mxu0 0.0
  %961 = vmatpush1.msra.mxu0 0.0
  %962 = vmatprep.subr.mxu0 0.0
  %963 = vmatpush1.msra.mxu0 0.0
  %964 = vmatprep.subr.mxu0 0.0
  %965 = vmatpush1.msra.mxu0 0.0
  %966 = vmatprep.subr.mxu0 0.0
  %967 = vmatpush1.msra.mxu0 0.0
  %968 = vmatprep.subr.mxu0 0.0
  %969 = vmatpush1.msra.mxu0 0.0
  %970 = vmatprep.subr.mxu0 0.0
  %971 = vmatpush1.msra.mxu0 0.0
  %972 = vmatprep.subr.mxu0 0.0
  %973 = vmatpush1.msra.mxu0 0.0
  %974 = vmatprep.subr.mxu0 0.0
  %975 = vmatpush1.msra.mxu0 0.0
  %976 = vmatprep.subr.mxu0 0.0
  %977 = vmatpush1.msra.mxu0 0.0
  %978 = vmatprep.subr.mxu0 0.0
  %979 = vmatpush1.msra.mxu0 0.0
  %980 = vmatprep.subr.mxu0 0.0
  %981 = vmatpush1.msra.mxu0 0.0
  %982 = vmatprep.subr.mxu0 0.0
  %983 = vmatpush1.msra.mxu0 0.0
  %984 = vmatprep.subr.mxu0 0.0
  %985 = vmatpush1.msra.mxu0 0.0
  %986 = vmatprep.subr.mxu0 0.0
  %987 = vmatpush1.msra.mxu0 0.0
  %988 = vmatprep.subr.mxu0 0.0
  %989 = vmatpush1.msra.mxu0 0.0
  %990 = vmatprep.subr.mxu0 0.0
  %991 = vmatpush1.msra.mxu0 0.0
  %992 = vmatprep.subr.mxu0 0.0
  %993 = vmatpush1.msra.mxu0 0.0
  %994 = vmatprep.subr.mxu0 0.0
  %995 = vmatpush1.msra.mxu0 0.0
  %996 = vmatprep.subr.mxu0 0.0
  %997 = vmatpush1.msra.mxu0 0.0
  %998 = vmatprep.subr.mxu0 0.0
  %999 = vmatpush1.msra.mxu0 0.0
  %1000 = vmatprep.subr.mxu0 0.0
  %1001 = vmatpush1.msra.mxu0 0.0
  %1002 = vmatprep.subr.mxu0 0.0
  %1003 = vmatpush1.msra.mxu0 0.0
  %1004 = vmatprep.subr.mxu0 0.0
  %1005 = vmatpush1.msra.mxu0 0.0
  %1006 = vmatprep.subr.mxu0 0.0
  %1007 = vmatpush1.msra.mxu0 0.0
  %1008 = vmatprep.subr.mxu0 0.0
  %1009 = vmatpush1.msra.mxu0 0.0
  %1010 = vmatprep.subr.mxu0 0.0
  %1011 = vmatpush1.msra.mxu0 0.0
  %1012 = vmatprep.subr.mxu0 0.0
  %1013 = vmatpush1.msra.mxu0 0.0
  %1014 = vmatprep.subr.mxu0 0.0
  %1015 = vmatpush1.msra.mxu0 0.0
  %1016 = vmatprep.mubr.f32.mxu0 0.0
  %1017 = vmatmul.mubr.f32.gmra.mrb[0].mxu0 %v867
  %v1018 = vpop.f32.mrb[0].mxu0
  %v1019 = vadd.f32 0.0, %v1018
  %v1020 = vpop.f32.mrb[0].mxu0
  %v1021 = vadd.f32 0.0, %v1020
  %1022 = vdwg.mxu0
  %v1023 = vadd.f32 %v833, %v948
  %v1024 = vadd.f32 %v834, %v950
  %v1025 = vadd.f32 %v835, %v1019
  %v1026 = vadd.f32 %v836, %v1021
  %1027 = vrot.lane.b32.xlu0 %v23, 127
  %v1028 = vpop.permute.xlu0 %1027
  %1029 = vrot.lane.b32.xlu0 %v27, 127
  %v1030 = vpop.permute.xlu0 %1029
  %1031 = vrot.lane.b32.xlu0 %v24, 127
  %v1032 = vpop.permute.xlu0 %1031
  %1033 = vrot.lane.b32.xlu0 %v28, 127
  %v1034 = vpop.permute.xlu0 %1033
  %vm1035 = vcmp.lt.s32.totalorder %v40, 127
  %v1036 = vsel %vm1035, %v1032, %v1034
  %v1037 = vsel %vm1035, %v1030, %v1032
  %v1038 = vsel %vm1035, %v1028, %v1030
  %v1039 = vsel %vm1035, %v1034, %v1028
  %s1040 = scalar_lea.vmem %s1, 20
  %v1041 = vld [vmem:[%s1040] sm:$0xf]
  %v1043 = vlaneseq
  %v1044 = vshrl.u32 %v1043, 7
  %v1045 = vsub.s32 0, %v1044
  %v1046 = vrot.slane %v1041, %v1045
  %v1047 = vlaneseq
  %v1048 = vshrl.u32 %v1047, 7
  %v1049 = vsub.s32 1, %v1048
  %v1050 = vrot.slane %v1041, %v1049
  %v1051 = vlaneseq
  %v1052 = vshrl.u32 %v1051, 7
  %v1053 = vsub.s32 2, %v1052
  %v1054 = vrot.slane %v1041, %v1053
  %v1055 = vlaneseq
  %v1056 = vshrl.u32 %v1055, 7
  %v1057 = vsub.s32 3, %v1056
  %v1058 = vrot.slane %v1041, %v1057
  %v1063 = vmul.f32 %v1038, %v1046
  %v1064 = vmul.f32 %v1037, %v1050
  %v1065 = vmul.f32 %v1036, %v1054
  %v1066 = vmul.f32 %v1039, %v1058
  %s1067 = scalar_lea.vmem %s2, 20
  %v1068 = vld [vmem:[%s1067] sm:$0xf]
  %v1070 = vsel %vm115, %v1068, 0
  %v1073 = vsel %vm119, %v1063, 0
  %v1076 = vsel %vm119, %v1064, 0
  %v1079 = vsel %vm119, %v1065, 0
  %v1082 = vsel %vm119, %v1066, 0
  %1084 = vmatprep.subr.mxu0 %v1076
  %1085 = vmatpush1.msra.mxu0 %v1073
  %1086 = vmatprep.subr.mxu0 0.0
  %1087 = vmatpush1.msra.mxu0 0.0
  %1088 = vmatprep.subr.mxu0 0.0
  %1089 = vmatpush1.msra.mxu0 0.0
  %1090 = vmatprep.subr.mxu0 0.0
  %1091 = vmatpush1.msra.mxu0 0.0
  %1092 = vmatprep.subr.mxu0 0.0
  %1093 = vmatpush1.msra.mxu0 0.0
  %1094 = vmatprep.subr.mxu0 0.0
  %1095 = vmatpush1.msra.mxu0 0.0
  %1096 = vmatprep.subr.mxu0 0.0
  %1097 = vmatpush1.msra.mxu0 0.0
  %1098 = vmatprep.subr.mxu0 0.0
  %1099 = vmatpush1.msra.mxu0 0.0
  %1100 = vmatprep.subr.mxu0 0.0
  %1101 = vmatpush1.msra.mxu0 0.0
  %1102 = vmatprep.subr.mxu0 0.0
  %1103 = vmatpush1.msra.mxu0 0.0
  %1104 = vmatprep.subr.mxu0 0.0
  %1105 = vmatpush1.msra.mxu0 0.0
  %1106 = vmatprep.subr.mxu0 0.0
  %1107 = vmatpush1.msra.mxu0 0.0
  %1108 = vmatprep.subr.mxu0 0.0
  %1109 = vmatpush1.msra.mxu0 0.0
  %1110 = vmatprep.subr.mxu0 0.0
  %1111 = vmatpush1.msra.mxu0 0.0
  %1112 = vmatprep.subr.mxu0 0.0
  %1113 = vmatpush1.msra.mxu0 0.0
  %1114 = vmatprep.subr.mxu0 0.0
  %1115 = vmatpush1.msra.mxu0 0.0
  %1116 = vmatprep.subr.mxu0 0.0
  %1117 = vmatpush1.msra.mxu0 0.0
  %1118 = vmatprep.subr.mxu0 0.0
  %1119 = vmatpush1.msra.mxu0 0.0
  %1120 = vmatprep.subr.mxu0 0.0
  %1121 = vmatpush1.msra.mxu0 0.0
  %1122 = vmatprep.subr.mxu0 0.0
  %1123 = vmatpush1.msra.mxu0 0.0
  %1124 = vmatprep.subr.mxu0 0.0
  %1125 = vmatpush1.msra.mxu0 0.0
  %1126 = vmatprep.subr.mxu0 0.0
  %1127 = vmatpush1.msra.mxu0 0.0
  %1128 = vmatprep.subr.mxu0 0.0
  %1129 = vmatpush1.msra.mxu0 0.0
  %1130 = vmatprep.subr.mxu0 0.0
  %1131 = vmatpush1.msra.mxu0 0.0
  %1132 = vmatprep.subr.mxu0 0.0
  %1133 = vmatpush1.msra.mxu0 0.0
  %1134 = vmatprep.subr.mxu0 0.0
  %1135 = vmatpush1.msra.mxu0 0.0
  %1136 = vmatprep.subr.mxu0 0.0
  %1137 = vmatpush1.msra.mxu0 0.0
  %1138 = vmatprep.subr.mxu0 0.0
  %1139 = vmatpush1.msra.mxu0 0.0
  %1140 = vmatprep.subr.mxu0 0.0
  %1141 = vmatpush1.msra.mxu0 0.0
  %1142 = vmatprep.subr.mxu0 0.0
  %1143 = vmatpush1.msra.mxu0 0.0
  %1144 = vmatprep.subr.mxu0 0.0
  %1145 = vmatpush1.msra.mxu0 0.0
  %1146 = vmatprep.subr.mxu0 0.0
  %1147 = vmatpush1.msra.mxu0 0.0
  %1148 = vmatprep.mubr.f32.mxu0 0.0
  %1149 = vmatmul.mubr.f32.gmra.mrb[0].mxu0 %v1070
  %v1150 = vpop.f32.mrb[0].mxu0
  %v1151 = vadd.f32 0.0, %v1150
  %v1152 = vpop.f32.mrb[0].mxu0
  %v1153 = vadd.f32 0.0, %v1152
  %1154 = vdwg.mxu0
  %1155 = vmatprep.subr.mxu0 %v1082
  %1156 = vmatpush1.msra.mxu0 %v1079
  %1157 = vmatprep.subr.mxu0 0.0
  %1158 = vmatpush1.msra.mxu0 0.0
  %1159 = vmatprep.subr.mxu0 0.0
  %1160 = vmatpush1.msra.mxu0 0.0
  %1161 = vmatprep.subr.mxu0 0.0
  %1162 = vmatpush1.msra.mxu0 0.0
  %1163 = vmatprep.subr.mxu0 0.0
  %1164 = vmatpush1.msra.mxu0 0.0
  %1165 = vmatprep.subr.mxu0 0.0
  %1166 = vmatpush1.msra.mxu0 0.0
  %1167 = vmatprep.subr.mxu0 0.0
  %1168 = vmatpush1.msra.mxu0 0.0
  %1169 = vmatprep.subr.mxu0 0.0
  %1170 = vmatpush1.msra.mxu0 0.0
  %1171 = vmatprep.subr.mxu0 0.0
  %1172 = vmatpush1.msra.mxu0 0.0
  %1173 = vmatprep.subr.mxu0 0.0
  %1174 = vmatpush1.msra.mxu0 0.0
  %1175 = vmatprep.subr.mxu0 0.0
  %1176 = vmatpush1.msra.mxu0 0.0
  %1177 = vmatprep.subr.mxu0 0.0
  %1178 = vmatpush1.msra.mxu0 0.0
  %1179 = vmatprep.subr.mxu0 0.0
  %1180 = vmatpush1.msra.mxu0 0.0
  %1181 = vmatprep.subr.mxu0 0.0
  %1182 = vmatpush1.msra.mxu0 0.0
  %1183 = vmatprep.subr.mxu0 0.0
  %1184 = vmatpush1.msra.mxu0 0.0
  %1185 = vmatprep.subr.mxu0 0.0
  %1186 = vmatpush1.msra.mxu0 0.0
  %1187 = vmatprep.subr.mxu0 0.0
  %1188 = vmatpush1.msra.mxu0 0.0
  %1189 = vmatprep.subr.mxu0 0.0
  %1190 = vmatpush1.msra.mxu0 0.0
  %1191 = vmatprep.subr.mxu0 0.0
  %1192 = vmatpush1.msra.mxu0 0.0
  %1193 = vmatprep.subr.mxu0 0.0
  %1194 = vmatpush1.msra.mxu0 0.0
  %1195 = vmatprep.subr.mxu0 0.0
  %1196 = vmatpush1.msra.mxu0 0.0
  %1197 = vmatprep.subr.mxu0 0.0
  %1198 = vmatpush1.msra.mxu0 0.0
  %1199 = vmatprep.subr.mxu0 0.0
  %1200 = vmatpush1.msra.mxu0 0.0
  %1201 = vmatprep.subr.mxu0 0.0
  %1202 = vmatpush1.msra.mxu0 0.0
  %1203 = vmatprep.subr.mxu0 0.0
  %1204 = vmatpush1.msra.mxu0 0.0
  %1205 = vmatprep.subr.mxu0 0.0
  %1206 = vmatpush1.msra.mxu0 0.0
  %1207 = vmatprep.subr.mxu0 0.0
  %1208 = vmatpush1.msra.mxu0 0.0
  %1209 = vmatprep.subr.mxu0 0.0
  %1210 = vmatpush1.msra.mxu0 0.0
  %1211 = vmatprep.subr.mxu0 0.0
  %1212 = vmatpush1.msra.mxu0 0.0
  %1213 = vmatprep.subr.mxu0 0.0
  %1214 = vmatpush1.msra.mxu0 0.0
  %1215 = vmatprep.subr.mxu0 0.0
  %1216 = vmatpush1.msra.mxu0 0.0
  %1217 = vmatprep.subr.mxu0 0.0
  %1218 = vmatpush1.msra.mxu0 0.0
  %1219 = vmatprep.mubr.f32.mxu0 0.0
  %1220 = vmatmul.mubr.f32.gmra.mrb[0].mxu0 %v1070
  %v1221 = vpop.f32.mrb[0].mxu0
  %v1222 = vadd.f32 0.0, %v1221
  %v1223 = vpop.f32.mrb[0].mxu0
  %v1224 = vadd.f32 0.0, %v1223
  %1225 = vdwg.mxu0
  %v1226 = vadd.f32 %v1023, %v1151
  %v1227 = vadd.f32 %v1024, %v1153
  %v1228 = vadd.f32 %v1025, %v1222
  %v1229 = vadd.f32 %v1026, %v1224
  %1230 = vrot.lane.b32.xlu0 %v23, 113
  %v1231 = vpop.permute.xlu0 %1230
  %1232 = vrot.lane.b32.xlu0 %v27, 113
  %v1233 = vpop.permute.xlu0 %1232
  %1234 = vrot.lane.b32.xlu0 %v24, 113
  %v1235 = vpop.permute.xlu0 %1234
  %1236 = vrot.lane.b32.xlu0 %v28, 113
  %v1237 = vpop.permute.xlu0 %1236
  %vm1238 = vcmp.lt.s32.totalorder %v40, 113
  %v1239 = vsel %vm1238, %v1235, %v1237
  %v1240 = vsel %vm1238, %v1233, %v1235
  %v1241 = vsel %vm1238, %v1231, %v1233
  %v1242 = vsel %vm1238, %v1237, %v1231
  %s1243 = scalar_lea.vmem %s1, 24
  %v1244 = vld [vmem:[%s1243] sm:$0xf]
  %v1246 = vlaneseq
  %v1247 = vshrl.u32 %v1246, 7
  %v1248 = vsub.s32 0, %v1247
  %v1249 = vrot.slane %v1244, %v1248
  %v1250 = vlaneseq
  %v1251 = vshrl.u32 %v1250, 7
  %v1252 = vsub.s32 1, %v1251
  %v1253 = vrot.slane %v1244, %v1252
  %v1254 = vlaneseq
  %v1255 = vshrl.u32 %v1254, 7
  %v1256 = vsub.s32 2, %v1255
  %v1257 = vrot.slane %v1244, %v1256
  %v1258 = vlaneseq
  %v1259 = vshrl.u32 %v1258, 7
  %v1260 = vsub.s32 3, %v1259
  %v1261 = vrot.slane %v1244, %v1260
  %v1266 = vmul.f32 %v1241, %v1249
  %v1267 = vmul.f32 %v1240, %v1253
  %v1268 = vmul.f32 %v1239, %v1257
  %v1269 = vmul.f32 %v1242, %v1261
  %s1270 = scalar_lea.vmem %s2, 24
  %v1271 = vld [vmem:[%s1270] sm:$0xf]
  %v1273 = vsel %vm115, %v1271, 0
  %v1276 = vsel %vm119, %v1266, 0
  %v1279 = vsel %vm119, %v1267, 0
  %v1282 = vsel %vm119, %v1268, 0
  %v1285 = vsel %vm119, %v1269, 0
  %1287 = vmatprep.subr.mxu0 %v1279
  %1288 = vmatpush1.msra.mxu0 %v1276
  %1289 = vmatprep.subr.mxu0 0.0
  %1290 = vmatpush1.msra.mxu0 0.0
  %1291 = vmatprep.subr.mxu0 0.0
  %1292 = vmatpush1.msra.mxu0 0.0
  %1293 = vmatprep.subr.mxu0 0.0
  %1294 = vmatpush1.msra.mxu0 0.0
  %1295 = vmatprep.subr.mxu0 0.0
  %1296 = vmatpush1.msra.mxu0 0.0
  %1297 = vmatprep.subr.mxu0 0.0
  %1298 = vmatpush1.msra.mxu0 0.0
  %1299 = vmatprep.subr.mxu0 0.0
  %1300 = vmatpush1.msra.mxu0 0.0
  %1301 = vmatprep.subr.mxu0 0.0
  %1302 = vmatpush1.msra.mxu0 0.0
  %1303 = vmatprep.subr.mxu0 0.0
  %1304 = vmatpush1.msra.mxu0 0.0
  %1305 = vmatprep.subr.mxu0 0.0
  %1306 = vmatpush1.msra.mxu0 0.0
  %1307 = vmatprep.subr.mxu0 0.0
  %1308 = vmatpush1.msra.mxu0 0.0
  %1309 = vmatprep.subr.mxu0 0.0
  %1310 = vmatpush1.msra.mxu0 0.0
  %1311 = vmatprep.subr.mxu0 0.0
  %1312 = vmatpush1.msra.mxu0 0.0
  %1313 = vmatprep.subr.mxu0 0.0
  %1314 = vmatpush1.msra.mxu0 0.0
  %1315 = vmatprep.subr.mxu0 0.0
  %1316 = vmatpush1.msra.mxu0 0.0
  %1317 = vmatprep.subr.mxu0 0.0
  %1318 = vmatpush1.msra.mxu0 0.0
  %1319 = vmatprep.subr.mxu0 0.0
  %1320 = vmatpush1.msra.mxu0 0.0
  %1321 = vmatprep.subr.mxu0 0.0
  %1322 = vmatpush1.msra.mxu0 0.0
  %1323 = vmatprep.subr.mxu0 0.0
  %1324 = vmatpush1.msra.mxu0 0.0
  %1325 = vmatprep.subr.mxu0 0.0
  %1326 = vmatpush1.msra.mxu0 0.0
  %1327 = vmatprep.subr.mxu0 0.0
  %1328 = vmatpush1.msra.mxu0 0.0
  %1329 = vmatprep.subr.mxu0 0.0
  %1330 = vmatpush1.msra.mxu0 0.0
  %1331 = vmatprep.subr.mxu0 0.0
  %1332 = vmatpush1.msra.mxu0 0.0
  %1333 = vmatprep.subr.mxu0 0.0
  %1334 = vmatpush1.msra.mxu0 0.0
  %1335 = vmatprep.subr.mxu0 0.0
  %1336 = vmatpush1.msra.mxu0 0.0
  %1337 = vmatprep.subr.mxu0 0.0
  %1338 = vmatpush1.msra.mxu0 0.0
  %1339 = vmatprep.subr.mxu0 0.0
  %1340 = vmatpush1.msra.mxu0 0.0
  %1341 = vmatprep.subr.mxu0 0.0
  %1342 = vmatpush1.msra.mxu0 0.0
  %1343 = vmatprep.subr.mxu0 0.0
  %1344 = vmatpush1.msra.mxu0 0.0
  %1345 = vmatprep.subr.mxu0 0.0
  %1346 = vmatpush1.msra.mxu0 0.0
  %1347 = vmatprep.subr.mxu0 0.0
  %1348 = vmatpush1.msra.mxu0 0.0
  %1349 = vmatprep.subr.mxu0 0.0
  %1350 = vmatpush1.msra.mxu0 0.0
  %1351 = vmatprep.mubr.f32.mxu0 0.0
  %1352 = vmatmul.mubr.f32.gmra.mrb[0].mxu0 %v1273
  %v1353 = vpop.f32.mrb[0].mxu0
  %v1354 = vadd.f32 0.0, %v1353
  %v1355 = vpop.f32.mrb[0].mxu0
  %v1356 = vadd.f32 0.0, %v1355
  %1357 = vdwg.mxu0
  %1358 = vmatprep.subr.mxu0 %v1285
  %1359 = vmatpush1.msra.mxu0 %v1282
  %1360 = vmatprep.subr.mxu0 0.0
  %1361 = vmatpush1.msra.mxu0 0.0
  %1362 = vmatprep.subr.mxu0 0.0
  %1363 = vmatpush1.msra.mxu0 0.0
  %1364 = vmatprep.subr.mxu0 0.0
  %1365 = vmatpush1.msra.mxu0 0.0
  %1366 = vmatprep.subr.mxu0 0.0
  %1367 = vmatpush1.msra.mxu0 0.0
  %1368 = vmatprep.subr.mxu0 0.0
  %1369 = vmatpush1.msra.mxu0 0.0
  %1370 = vmatprep.subr.mxu0 0.0
  %1371 = vmatpush1.msra.mxu0 0.0
  %1372 = vmatprep.subr.mxu0 0.0
  %1373 = vmatpush1.msra.mxu0 0.0
  %1374 = vmatprep.subr.mxu0 0.0
  %1375 = vmatpush1.msra.mxu0 0.0
  %1376 = vmatprep.subr.mxu0 0.0
  %1377 = vmatpush1.msra.mxu0 0.0
  %1378 = vmatprep.subr.mxu0 0.0
  %1379 = vmatpush1.msra.mxu0 0.0
  %1380 = vmatprep.subr.mxu0 0.0
  %1381 = vmatpush1.msra.mxu0 0.0
  %1382 = vmatprep.subr.mxu0 0.0
  %1383 = vmatpush1.msra.mxu0 0.0
  %1384 = vmatprep.subr.mxu0 0.0
  %1385 = vmatpush1.msra.mxu0 0.0
  %1386 = vmatprep.subr.mxu0 0.0
  %1387 = vmatpush1.msra.mxu0 0.0
  %1388 = vmatprep.subr.mxu0 0.0
  %1389 = vmatpush1.msra.mxu0 0.0
  %1390 = vmatprep.subr.mxu0 0.0
  %1391 = vmatpush1.msra.mxu0 0.0
  %1392 = vmatprep.subr.mxu0 0.0
  %1393 = vmatpush1.msra.mxu0 0.0
  %1394 = vmatprep.subr.mxu0 0.0
  %1395 = vmatpush1.msra.mxu0 0.0
  %1396 = vmatprep.subr.mxu0 0.0
  %1397 = vmatpush1.msra.mxu0 0.0
  %1398 = vmatprep.subr.mxu0 0.0
  %1399 = vmatpush1.msra.mxu0 0.0
  %1400 = vmatprep.subr.mxu0 0.0
  %1401 = vmatpush1.msra.mxu0 0.0
  %1402 = vmatprep.subr.mxu0 0.0
  %1403 = vmatpush1.msra.mxu0 0.0
  %1404 = vmatprep.subr.mxu0 0.0
  %1405 = vmatpush1.msra.mxu0 0.0
  %1406 = vmatprep.subr.mxu0 0.0
  %1407 = vmatpush1.msra.mxu0 0.0
  %1408 = vmatprep.subr.mxu0 0.0
  %1409 = vmatpush1.msra.mxu0 0.0
  %1410 = vmatprep.subr.mxu0 0.0
  %1411 = vmatpush1.msra.mxu0 0.0
  %1412 = vmatprep.subr.mxu0 0.0
  %1413 = vmatpush1.msra.mxu0 0.0
  %1414 = vmatprep.subr.mxu0 0.0
  %1415 = vmatpush1.msra.mxu0 0.0
  %1416 = vmatprep.subr.mxu0 0.0
  %1417 = vmatpush1.msra.mxu0 0.0
  %1418 = vmatprep.subr.mxu0 0.0
  %1419 = vmatpush1.msra.mxu0 0.0
  %1420 = vmatprep.subr.mxu0 0.0
  %1421 = vmatpush1.msra.mxu0 0.0
  %1422 = vmatprep.mubr.f32.mxu0 0.0
  %1423 = vmatmul.mubr.f32.gmra.mrb[0].mxu0 %v1273
  %v1424 = vpop.f32.mrb[0].mxu0
  %v1425 = vadd.f32 0.0, %v1424
  %v1426 = vpop.f32.mrb[0].mxu0
  %v1427 = vadd.f32 0.0, %v1426
  %1428 = vdwg.mxu0
  %v1429 = vadd.f32 %v1226, %v1354
  %v1430 = vadd.f32 %v1227, %v1356
  %v1431 = vadd.f32 %v1228, %v1425
  %v1432 = vadd.f32 %v1229, %v1427
  %1433 = vrot.lane.b32.xlu0 %v23, 112
  %v1434 = vpop.permute.xlu0 %1433
  %1435 = vrot.lane.b32.xlu0 %v27, 112
  %v1436 = vpop.permute.xlu0 %1435
  %1437 = vrot.lane.b32.xlu0 %v24, 112
  %v1438 = vpop.permute.xlu0 %1437
  %1439 = vrot.lane.b32.xlu0 %v28, 112
  %v1440 = vpop.permute.xlu0 %1439
  %vm1441 = vcmp.lt.s32.totalorder %v40, 112
  %v1442 = vsel %vm1441, %v1438, %v1440
  %v1443 = vsel %vm1441, %v1436, %v1438
  %v1444 = vsel %vm1441, %v1434, %v1436
  %v1445 = vsel %vm1441, %v1440, %v1434
  %s1446 = scalar_lea.vmem %s1, 28
  %v1447 = vld [vmem:[%s1446] sm:$0xf]
  %v1449 = vlaneseq
  %v1450 = vshrl.u32 %v1449, 7
  %v1451 = vsub.s32 0, %v1450
  %v1452 = vrot.slane %v1447, %v1451
  %v1453 = vlaneseq
  %v1454 = vshrl.u32 %v1453, 7
  %v1455 = vsub.s32 1, %v1454
  %v1456 = vrot.slane %v1447, %v1455
  %v1457 = vlaneseq
  %v1458 = vshrl.u32 %v1457, 7
  %v1459 = vsub.s32 2, %v1458
  %v1460 = vrot.slane %v1447, %v1459
  %v1461 = vlaneseq
  %v1462 = vshrl.u32 %v1461, 7
  %v1463 = vsub.s32 3, %v1462
  %v1464 = vrot.slane %v1447, %v1463
  %v1469 = vmul.f32 %v1444, %v1452
  %v1470 = vmul.f32 %v1443, %v1456
  %v1471 = vmul.f32 %v1442, %v1460
  %v1472 = vmul.f32 %v1445, %v1464
  %s1473 = scalar_lea.vmem %s2, 28
  %v1474 = vld [vmem:[%s1473] sm:$0xf]
  %v1476 = vsel %vm115, %v1474, 0
  %v1479 = vsel %vm119, %v1469, 0
  %v1482 = vsel %vm119, %v1470, 0
  %v1485 = vsel %vm119, %v1471, 0
  %v1488 = vsel %vm119, %v1472, 0
  %1490 = vmatprep.subr.mxu0 %v1482
  %1491 = vmatpush1.msra.mxu0 %v1479
  %1492 = vmatprep.subr.mxu0 0.0
  %1493 = vmatpush1.msra.mxu0 0.0
  %1494 = vmatprep.subr.mxu0 0.0
  %1495 = vmatpush1.msra.mxu0 0.0
  %1496 = vmatprep.subr.mxu0 0.0
  %1497 = vmatpush1.msra.mxu0 0.0
  %1498 = vmatprep.subr.mxu0 0.0
  %1499 = vmatpush1.msra.mxu0 0.0
  %1500 = vmatprep.subr.mxu0 0.0
  %1501 = vmatpush1.msra.mxu0 0.0
  %1502 = vmatprep.subr.mxu0 0.0
  %1503 = vmatpush1.msra.mxu0 0.0
  %1504 = vmatprep.subr.mxu0 0.0
  %1505 = vmatpush1.msra.mxu0 0.0
  %1506 = vmatprep.subr.mxu0 0.0
  %1507 = vmatpush1.msra.mxu0 0.0
  %1508 = vmatprep.subr.mxu0 0.0
  %1509 = vmatpush1.msra.mxu0 0.0
  %1510 = vmatprep.subr.mxu0 0.0
  %1511 = vmatpush1.msra.mxu0 0.0
  %1512 = vmatprep.subr.mxu0 0.0
  %1513 = vmatpush1.msra.mxu0 0.0
  %1514 = vmatprep.subr.mxu0 0.0
  %1515 = vmatpush1.msra.mxu0 0.0
  %1516 = vmatprep.subr.mxu0 0.0
  %1517 = vmatpush1.msra.mxu0 0.0
  %1518 = vmatprep.subr.mxu0 0.0
  %1519 = vmatpush1.msra.mxu0 0.0
  %1520 = vmatprep.subr.mxu0 0.0
  %1521 = vmatpush1.msra.mxu0 0.0
  %1522 = vmatprep.subr.mxu0 0.0
  %1523 = vmatpush1.msra.mxu0 0.0
  %1524 = vmatprep.subr.mxu0 0.0
  %1525 = vmatpush1.msra.mxu0 0.0
  %1526 = vmatprep.subr.mxu0 0.0
  %1527 = vmatpush1.msra.mxu0 0.0
  %1528 = vmatprep.subr.mxu0 0.0
  %1529 = vmatpush1.msra.mxu0 0.0
  %1530 = vmatprep.subr.mxu0 0.0
  %1531 = vmatpush1.msra.mxu0 0.0
  %1532 = vmatprep.subr.mxu0 0.0
  %1533 = vmatpush1.msra.mxu0 0.0
  %1534 = vmatprep.subr.mxu0 0.0
  %1535 = vmatpush1.msra.mxu0 0.0
  %1536 = vmatprep.subr.mxu0 0.0
  %1537 = vmatpush1.msra.mxu0 0.0
  %1538 = vmatprep.subr.mxu0 0.0
  %1539 = vmatpush1.msra.mxu0 0.0
  %1540 = vmatprep.subr.mxu0 0.0
  %1541 = vmatpush1.msra.mxu0 0.0
  %1542 = vmatprep.subr.mxu0 0.0
  %1543 = vmatpush1.msra.mxu0 0.0
  %1544 = vmatprep.subr.mxu0 0.0
  %1545 = vmatpush1.msra.mxu0 0.0
  %1546 = vmatprep.subr.mxu0 0.0
  %1547 = vmatpush1.msra.mxu0 0.0
  %1548 = vmatprep.subr.mxu0 0.0
  %1549 = vmatpush1.msra.mxu0 0.0
  %1550 = vmatprep.subr.mxu0 0.0
  %1551 = vmatpush1.msra.mxu0 0.0
  %1552 = vmatprep.subr.mxu0 0.0
  %1553 = vmatpush1.msra.mxu0 0.0
  %1554 = vmatprep.mubr.f32.mxu0 0.0
  %1555 = vmatmul.mubr.f32.gmra.mrb[0].mxu0 %v1476
  %v1556 = vpop.f32.mrb[0].mxu0
  %v1557 = vadd.f32 0.0, %v1556
  %v1558 = vpop.f32.mrb[0].mxu0
  %v1559 = vadd.f32 0.0, %v1558
  %1560 = vdwg.mxu0
  %1561 = vmatprep.subr.mxu0 %v1488
  %1562 = vmatpush1.msra.mxu0 %v1485
  %1563 = vmatprep.subr.mxu0 0.0
  %1564 = vmatpush1.msra.mxu0 0.0
  %1565 = vmatprep.subr.mxu0 0.0
  %1566 = vmatpush1.msra.mxu0 0.0
  %1567 = vmatprep.subr.mxu0 0.0
  %1568 = vmatpush1.msra.mxu0 0.0
  %1569 = vmatprep.subr.mxu0 0.0
  %1570 = vmatpush1.msra.mxu0 0.0
  %1571 = vmatprep.subr.mxu0 0.0
  %1572 = vmatpush1.msra.mxu0 0.0
  %1573 = vmatprep.subr.mxu0 0.0
  %1574 = vmatpush1.msra.mxu0 0.0
  %1575 = vmatprep.subr.mxu0 0.0
  %1576 = vmatpush1.msra.mxu0 0.0
  %1577 = vmatprep.subr.mxu0 0.0
  %1578 = vmatpush1.msra.mxu0 0.0
  %1579 = vmatprep.subr.mxu0 0.0
  %1580 = vmatpush1.msra.mxu0 0.0
  %1581 = vmatprep.subr.mxu0 0.0
  %1582 = vmatpush1.msra.mxu0 0.0
  %1583 = vmatprep.subr.mxu0 0.0
  %1584 = vmatpush1.msra.mxu0 0.0
  %1585 = vmatprep.subr.mxu0 0.0
  %1586 = vmatpush1.msra.mxu0 0.0
  %1587 = vmatprep.subr.mxu0 0.0
  %1588 = vmatpush1.msra.mxu0 0.0
  %1589 = vmatprep.subr.mxu0 0.0
  %1590 = vmatpush1.msra.mxu0 0.0
  %1591 = vmatprep.subr.mxu0 0.0
  %1592 = vmatpush1.msra.mxu0 0.0
  %1593 = vmatprep.subr.mxu0 0.0
  %1594 = vmatpush1.msra.mxu0 0.0
  %1595 = vmatprep.subr.mxu0 0.0
  %1596 = vmatpush1.msra.mxu0 0.0
  %1597 = vmatprep.subr.mxu0 0.0
  %1598 = vmatpush1.msra.mxu0 0.0
  %1599 = vmatprep.subr.mxu0 0.0
  %1600 = vmatpush1.msra.mxu0 0.0
  %1601 = vmatprep.subr.mxu0 0.0
  %1602 = vmatpush1.msra.mxu0 0.0
  %1603 = vmatprep.subr.mxu0 0.0
  %1604 = vmatpush1.msra.mxu0 0.0
  %1605 = vmatprep.subr.mxu0 0.0
  %1606 = vmatpush1.msra.mxu0 0.0
  %1607 = vmatprep.subr.mxu0 0.0
  %1608 = vmatpush1.msra.mxu0 0.0
  %1609 = vmatprep.subr.mxu0 0.0
  %1610 = vmatpush1.msra.mxu0 0.0
  %1611 = vmatprep.subr.mxu0 0.0
  %1612 = vmatpush1.msra.mxu0 0.0
  %1613 = vmatprep.subr.mxu0 0.0
  %1614 = vmatpush1.msra.mxu0 0.0
  %1615 = vmatprep.subr.mxu0 0.0
  %1616 = vmatpush1.msra.mxu0 0.0
  %1617 = vmatprep.subr.mxu0 0.0
  %1618 = vmatpush1.msra.mxu0 0.0
  %1619 = vmatprep.subr.mxu0 0.0
  %1620 = vmatpush1.msra.mxu0 0.0
  %1621 = vmatprep.subr.mxu0 0.0
  %1622 = vmatpush1.msra.mxu0 0.0
  %1623 = vmatprep.subr.mxu0 0.0
  %1624 = vmatpush1.msra.mxu0 0.0
  %1625 = vmatprep.mubr.f32.mxu0 0.0
  %1626 = vmatmul.mubr.f32.gmra.mrb[0].mxu0 %v1476
  %v1627 = vpop.f32.mrb[0].mxu0
  %v1628 = vadd.f32 0.0, %v1627
  %v1629 = vpop.f32.mrb[0].mxu0
  %v1630 = vadd.f32 0.0, %v1629
  %1631 = vdwg.mxu0
  %v1632 = vadd.f32 %v1429, %v1557
  %v1633 = vadd.f32 %v1430, %v1559
  %v1634 = vadd.f32 %v1431, %v1628
  %v1635 = vadd.f32 %v1432, %v1630
  %1636 = vrot.lane.b32.xlu0 %v23, 111
  %v1637 = vpop.permute.xlu0 %1636
  %1638 = vrot.lane.b32.xlu0 %v27, 111
  %v1639 = vpop.permute.xlu0 %1638
  %1640 = vrot.lane.b32.xlu0 %v24, 111
  %v1641 = vpop.permute.xlu0 %1640
  %1642 = vrot.lane.b32.xlu0 %v28, 111
  %v1643 = vpop.permute.xlu0 %1642
  %vm1644 = vcmp.lt.s32.totalorder %v40, 111
  %v1645 = vsel %vm1644, %v1641, %v1643
  %v1646 = vsel %vm1644, %v1639, %v1641
  %v1647 = vsel %vm1644, %v1637, %v1639
  %v1648 = vsel %vm1644, %v1643, %v1637
  %s1649 = scalar_lea.vmem %s1, 32
  %v1650 = vld [vmem:[%s1649] sm:$0xf]
  %v1652 = vlaneseq
  %v1653 = vshrl.u32 %v1652, 7
  %v1654 = vsub.s32 0, %v1653
  %v1655 = vrot.slane %v1650, %v1654
  %v1656 = vlaneseq
  %v1657 = vshrl.u32 %v1656, 7
  %v1658 = vsub.s32 1, %v1657
  %v1659 = vrot.slane %v1650, %v1658
  %v1660 = vlaneseq
  %v1661 = vshrl.u32 %v1660, 7
  %v1662 = vsub.s32 2, %v1661
  %v1663 = vrot.slane %v1650, %v1662
  %v1664 = vlaneseq
  %v1665 = vshrl.u32 %v1664, 7
  %v1666 = vsub.s32 3, %v1665
  %v1667 = vrot.slane %v1650, %v1666
  %v1672 = vmul.f32 %v1647, %v1655
  %v1673 = vmul.f32 %v1646, %v1659
  %v1674 = vmul.f32 %v1645, %v1663
  %v1675 = vmul.f32 %v1648, %v1667
  %s1676 = scalar_lea.vmem %s2, 32
  %v1677 = vld [vmem:[%s1676] sm:$0xf]
  %v1679 = vsel %vm115, %v1677, 0
  %v1682 = vsel %vm119, %v1672, 0
  %v1685 = vsel %vm119, %v1673, 0
  %v1688 = vsel %vm119, %v1674, 0
  %v1691 = vsel %vm119, %v1675, 0
  %1693 = vmatprep.subr.mxu0 %v1685
  %1694 = vmatpush1.msra.mxu0 %v1682
  %1695 = vmatprep.subr.mxu0 0.0
  %1696 = vmatpush1.msra.mxu0 0.0
  %1697 = vmatprep.subr.mxu0 0.0
  %1698 = vmatpush1.msra.mxu0 0.0
  %1699 = vmatprep.subr.mxu0 0.0
  %1700 = vmatpush1.msra.mxu0 0.0
  %1701 = vmatprep.subr.mxu0 0.0
  %1702 = vmatpush1.msra.mxu0 0.0
  %1703 = vmatprep.subr.mxu0 0.0
  %1704 = vmatpush1.msra.mxu0 0.0
  %1705 = vmatprep.subr.mxu0 0.0
  %1706 = vmatpush1.msra.mxu0 0.0
  %1707 = vmatprep.subr.mxu0 0.0
  %1708 = vmatpush1.msra.mxu0 0.0
  %1709 = vmatprep.subr.mxu0 0.0
  %1710 = vmatpush1.msra.mxu0 0.0
  %1711 = vmatprep.subr.mxu0 0.0
  %1712 = vmatpush1.msra.mxu0 0.0
  %1713 = vmatprep.subr.mxu0 0.0
  %1714 = vmatpush1.msra.mxu0 0.0
  %1715 = vmatprep.subr.mxu0 0.0
  %1716 = vmatpush1.msra.mxu0 0.0
  %1717 = vmatprep.subr.mxu0 0.0
  %1718 = vmatpush1.msra.mxu0 0.0
  %1719 = vmatprep.subr.mxu0 0.0
  %1720 = vmatpush1.msra.mxu0 0.0
  %1721 = vmatprep.subr.mxu0 0.0
  %1722 = vmatpush1.msra.mxu0 0.0
  %1723 = vmatprep.subr.mxu0 0.0
  %1724 = vmatpush1.msra.mxu0 0.0
  %1725 = vmatprep.subr.mxu0 0.0
  %1726 = vmatpush1.msra.mxu0 0.0
  %1727 = vmatprep.subr.mxu0 0.0
  %1728 = vmatpush1.msra.mxu0 0.0
  %1729 = vmatprep.subr.mxu0 0.0
  %1730 = vmatpush1.msra.mxu0 0.0
  %1731 = vmatprep.subr.mxu0 0.0
  %1732 = vmatpush1.msra.mxu0 0.0
  %1733 = vmatprep.subr.mxu0 0.0
  %1734 = vmatpush1.msra.mxu0 0.0
  %1735 = vmatprep.subr.mxu0 0.0
  %1736 = vmatpush1.msra.mxu0 0.0
  %1737 = vmatprep.subr.mxu0 0.0
  %1738 = vmatpush1.msra.mxu0 0.0
  %1739 = vmatprep.subr.mxu0 0.0
  %1740 = vmatpush1.msra.mxu0 0.0
  %1741 = vmatprep.subr.mxu0 0.0
  %1742 = vmatpush1.msra.mxu0 0.0
  %1743 = vmatprep.subr.mxu0 0.0
  %1744 = vmatpush1.msra.mxu0 0.0
  %1745 = vmatprep.subr.mxu0 0.0
  %1746 = vmatpush1.msra.mxu0 0.0
  %1747 = vmatprep.subr.mxu0 0.0
  %1748 = vmatpush1.msra.mxu0 0.0
  %1749 = vmatprep.subr.mxu0 0.0
  %1750 = vmatpush1.msra.mxu0 0.0
  %1751 = vmatprep.subr.mxu0 0.0
  %1752 = vmatpush1.msra.mxu0 0.0
  %1753 = vmatprep.subr.mxu0 0.0
  %1754 = vmatpush1.msra.mxu0 0.0
  %1755 = vmatprep.subr.mxu0 0.0
  %1756 = vmatpush1.msra.mxu0 0.0
  %1757 = vmatprep.mubr.f32.mxu0 0.0
  %1758 = vmatmul.mubr.f32.gmra.mrb[0].mxu0 %v1679
  %v1759 = vpop.f32.mrb[0].mxu0
  %v1760 = vadd.f32 0.0, %v1759
  %v1761 = vpop.f32.mrb[0].mxu0
  %v1762 = vadd.f32 0.0, %v1761
  %1763 = vdwg.mxu0
  %1764 = vmatprep.subr.mxu0 %v1691
  %1765 = vmatpush1.msra.mxu0 %v1688
  %1766 = vmatprep.subr.mxu0 0.0
  %1767 = vmatpush1.msra.mxu0 0.0
  %1768 = vmatprep.subr.mxu0 0.0
  %1769 = vmatpush1.msra.mxu0 0.0
  %1770 = vmatprep.subr.mxu0 0.0
  %1771 = vmatpush1.msra.mxu0 0.0
  %1772 = vmatprep.subr.mxu0 0.0
  %1773 = vmatpush1.msra.mxu0 0.0
  %1774 = vmatprep.subr.mxu0 0.0
  %1775 = vmatpush1.msra.mxu0 0.0
  %1776 = vmatprep.subr.mxu0 0.0
  %1777 = vmatpush1.msra.mxu0 0.0
  %1778 = vmatprep.subr.mxu0 0.0
  %1779 = vmatpush1.msra.mxu0 0.0
  %1780 = vmatprep.subr.mxu0 0.0
  %1781 = vmatpush1.msra.mxu0 0.0
  %1782 = vmatprep.subr.mxu0 0.0
  %1783 = vmatpush1.msra.mxu0 0.0
  %1784 = vmatprep.subr.mxu0 0.0
  %1785 = vmatpush1.msra.mxu0 0.0
  %1786 = vmatprep.subr.mxu0 0.0
  %1787 = vmatpush1.msra.mxu0 0.0
  %1788 = vmatprep.subr.mxu0 0.0
  %1789 = vmatpush1.msra.mxu0 0.0
  %1790 = vmatprep.subr.mxu0 0.0
  %1791 = vmatpush1.msra.mxu0 0.0
  %1792 = vmatprep.subr.mxu0 0.0
  %1793 = vmatpush1.msra.mxu0 0.0
  %1794 = vmatprep.subr.mxu0 0.0
  %1795 = vmatpush1.msra.mxu0 0.0
  %1796 = vmatprep.subr.mxu0 0.0
  %1797 = vmatpush1.msra.mxu0 0.0
  %1798 = vmatprep.subr.mxu0 0.0
  %1799 = vmatpush1.msra.mxu0 0.0
  %1800 = vmatprep.subr.mxu0 0.0
  %1801 = vmatpush1.msra.mxu0 0.0
  %1802 = vmatprep.subr.mxu0 0.0
  %1803 = vmatpush1.msra.mxu0 0.0
  %1804 = vmatprep.subr.mxu0 0.0
  %1805 = vmatpush1.msra.mxu0 0.0
  %1806 = vmatprep.subr.mxu0 0.0
  %1807 = vmatpush1.msra.mxu0 0.0
  %1808 = vmatprep.subr.mxu0 0.0
  %1809 = vmatpush1.msra.mxu0 0.0
  %1810 = vmatprep.subr.mxu0 0.0
  %1811 = vmatpush1.msra.mxu0 0.0
  %1812 = vmatprep.subr.mxu0 0.0
  %1813 = vmatpush1.msra.mxu0 0.0
  %1814 = vmatprep.subr.mxu0 0.0
  %1815 = vmatpush1.msra.mxu0 0.0
  %1816 = vmatprep.subr.mxu0 0.0
  %1817 = vmatpush1.msra.mxu0 0.0
  %1818 = vmatprep.subr.mxu0 0.0
  %1819 = vmatpush1.msra.mxu0 0.0
  %1820 = vmatprep.subr.mxu0 0.0
  %1821 = vmatpush1.msra.mxu0 0.0
  %1822 = vmatprep.subr.mxu0 0.0
  %1823 = vmatpush1.msra.mxu0 0.0
  %1824 = vmatprep.subr.mxu0 0.0
  %1825 = vmatpush1.msra.mxu0 0.0
  %1826 = vmatprep.subr.mxu0 0.0
  %1827 = vmatpush1.msra.mxu0 0.0
  %1828 = vmatprep.mubr.f32.mxu0 0.0
  %1829 = vmatmul.mubr.f32.gmra.mrb[0].mxu0 %v1679
  %v1830 = vpop.f32.mrb[0].mxu0
  %v1831 = vadd.f32 0.0, %v1830
  %v1832 = vpop.f32.mrb[0].mxu0
  %v1833 = vadd.f32 0.0, %v1832
  %1834 = vdwg.mxu0
  %v1835 = vadd.f32 %v1632, %v1760
  %v1836 = vadd.f32 %v1633, %v1762
  %v1837 = vadd.f32 %v1634, %v1831
  %v1838 = vadd.f32 %v1635, %v1833
  %v1839 = vld [vmem:[%s3] sm:$0xf]
  %1841 = vset.pattern.permute.xlu0 0
  %1842 = vperm.xlu0 %1841, %v1839
  %v1843 = vpop.permute.xlu0 %1842
  %v1845 = vadd.f32 %v1835, %v1843
  %v1846 = vadd.f32 %v1836, %v1843
  %v1847 = vadd.f32 %v1837, %v1843
  %v1848 = vadd.f32 %v1838, %v1843
  %v1849 = vxor.u32 %v1845, 2147483648
  %v1850 = vxor.u32 %v1846, 2147483648
  %v1851 = vxor.u32 %v1847, 2147483648
  %v1852 = vxor.u32 %v1848, 2147483648
  %v1853 = vmul.f32 %v1849, 1.442695
  %v1854 = vpow.pop %v1853
  %v1855 = vmul.f32 %v1850, 1.442695
  %v1856 = vpow.pop %v1855
  %v1857 = vmul.f32 %v1851, 1.442695
  %v1858 = vpow.pop %v1857
  %v1859 = vmul.f32 %v1852, 1.442695
  %v1860 = vpow.pop %v1859
  %v1861 = vadd.f32 %v1854, 1.0
  %v1862 = vadd.f32 %v1856, 1.0
  %v1863 = vadd.f32 %v1858, 1.0
  %v1864 = vadd.f32 %v1860, 1.0
  %v1865 = vrcp.pop %v1861
  %v1866 = vmul.f32 1.0, %v1865
  %v1867 = vrcp.pop %v1862
  %v1868 = vmul.f32 1.0, %v1867
  %v1869 = vrcp.pop %v1863
  %v1870 = vmul.f32 1.0, %v1869
  %v1871 = vrcp.pop %v1864
  %v1872 = vmul.f32 1.0, %v1871
  %1873 = vrot.lane.b32.xlu0 %v1866, 17
  %v1874 = vpop.permute.xlu0 %1873
  %1875 = vrot.lane.b32.xlu0 %v1868, 17
  %v1876 = vpop.permute.xlu0 %1875
  %1877 = vrot.lane.b32.xlu0 %v1870, 17
  %v1878 = vpop.permute.xlu0 %1877
  %1879 = vrot.lane.b32.xlu0 %v1872, 17
  %v1880 = vpop.permute.xlu0 %1879
  %v1881 = vsel %vm41, %v1878, %v1880
  %v1882 = vsel %vm41, %v1876, %v1878
  %v1883 = vsel %vm41, %v1874, %v1876
  %v1884 = vsel %vm41, %v1880, %v1874
  %v1885 = vmul.f32 %v1884, %v51
  %v1886 = vmul.f32 %v1883, %v55
  %v1887 = vmul.f32 %v1882, %v59
  %v1888 = vmul.f32 %v1881, %v63
  %v1889 = vld [vmem:[%s4] sm:$0xf]
  %1890 = vrot.lane.b32.xlu0 %v1866, 16
  %v1891 = vpop.permute.xlu0 %1890
  %1892 = vrot.lane.b32.xlu0 %v1868, 16
  %v1893 = vpop.permute.xlu0 %1892
  %1894 = vrot.lane.b32.xlu0 %v1870, 16
  %v1895 = vpop.permute.xlu0 %1894
  %1896 = vrot.lane.b32.xlu0 %v1872, 16
  %v1897 = vpop.permute.xlu0 %1896
  %v1898 = vsel %vm81, %v1895, %v1897
  %v1899 = vsel %vm81, %v1893, %v1895
  %v1900 = vsel %vm81, %v1891, %v1893
  %v1901 = vsel %vm81, %v1897, %v1891
  %v1902 = vmul.f32 %v1901, %v92
  %v1903 = vmul.f32 %v1900, %v96
  %v1904 = vmul.f32 %v1899, %v100
  %v1905 = vmul.f32 %v1898, %v104
  %s1906 = scalar_lea.vmem %s4, 4
  %v1907 = vld [vmem:[%s1906] sm:$0xf]
  %vm1908 = vcmask 31744
  %v1910 = vsel %vm1908, %v1907, 0
  %vm1912 = vcmask 1043456
  %v1914 = vsel %vm1912, %v1902, 0
  %v1917 = vsel %vm1912, %v1903, 0
  %v1920 = vsel %vm1912, %v1904, 0
  %v1923 = vsel %vm1912, %v1905, 0
  %1925 = vmatprep.subr.mxu0 %v1917
  %1926 = vmatpush1.msra.mxu0 %v1914
  %1927 = vmatprep.subr.mxu0 0.0
  %1928 = vmatpush1.msra.mxu0 0.0
  %1929 = vmatprep.subr.mxu0 0.0
  %1930 = vmatpush1.msra.mxu0 0.0
  %1931 = vmatprep.subr.mxu0 0.0
  %1932 = vmatpush1.msra.mxu0 0.0
  %1933 = vmatprep.subr.mxu0 0.0
  %1934 = vmatpush1.msra.mxu0 0.0
  %1935 = vmatprep.subr.mxu0 0.0
  %1936 = vmatpush1.msra.mxu0 0.0
  %1937 = vmatprep.subr.mxu0 0.0
  %1938 = vmatpush1.msra.mxu0 0.0
  %1939 = vmatprep.subr.mxu0 0.0
  %1940 = vmatpush1.msra.mxu0 0.0
  %1941 = vmatprep.subr.mxu0 0.0
  %1942 = vmatpush1.msra.mxu0 0.0
  %1943 = vmatprep.subr.mxu0 0.0
  %1944 = vmatpush1.msra.mxu0 0.0
  %1945 = vmatprep.subr.mxu0 0.0
  %1946 = vmatpush1.msra.mxu0 0.0
  %1947 = vmatprep.subr.mxu0 0.0
  %1948 = vmatpush1.msra.mxu0 0.0
  %1949 = vmatprep.subr.mxu0 0.0
  %1950 = vmatpush1.msra.mxu0 0.0
  %1951 = vmatprep.subr.mxu0 0.0
  %1952 = vmatpush1.msra.mxu0 0.0
  %1953 = vmatprep.subr.mxu0 0.0
  %1954 = vmatpush1.msra.mxu0 0.0
  %1955 = vmatprep.subr.mxu0 0.0
  %1956 = vmatpush1.msra.mxu0 0.0
  %1957 = vmatprep.subr.mxu0 0.0
  %1958 = vmatpush1.msra.mxu0 0.0
  %1959 = vmatprep.subr.mxu0 0.0
  %1960 = vmatpush1.msra.mxu0 0.0
  %1961 = vmatprep.subr.mxu0 0.0
  %1962 = vmatpush1.msra.mxu0 0.0
  %1963 = vmatprep.subr.mxu0 0.0
  %1964 = vmatpush1.msra.mxu0 0.0
  %1965 = vmatprep.subr.mxu0 0.0
  %1966 = vmatpush1.msra.mxu0 0.0
  %1967 = vmatprep.subr.mxu0 0.0
  %1968 = vmatpush1.msra.mxu0 0.0
  %1969 = vmatprep.subr.mxu0 0.0
  %1970 = vmatpush1.msra.mxu0 0.0
  %1971 = vmatprep.subr.mxu0 0.0
  %1972 = vmatpush1.msra.mxu0 0.0
  %1973 = vmatprep.subr.mxu0 0.0
  %1974 = vmatpush1.msra.mxu0 0.0
  %1975 = vmatprep.subr.mxu0 0.0
  %1976 = vmatpush1.msra.mxu0 0.0
  %1977 = vmatprep.subr.mxu0 0.0
  %1978 = vmatpush1.msra.mxu0 0.0
  %1979 = vmatprep.subr.mxu0 0.0
  %1980 = vmatpush1.msra.mxu0 0.0
  %1981 = vmatprep.subr.mxu0 0.0
  %1982 = vmatpush1.msra.mxu0 0.0
  %1983 = vmatprep.subr.mxu0 0.0
  %1984 = vmatpush1.msra.mxu0 0.0
  %1985 = vmatprep.subr.mxu0 0.0
  %1986 = vmatpush1.msra.mxu0 0.0
  %1987 = vmatprep.subr.mxu0 0.0
  %1988 = vmatpush1.msra.mxu0 0.0
  %1989 = vmatprep.mubr.f32.mxu0 0.0
  %1990 = vmatmul.mubr.f32.gmra.mrb[0].mxu0 %v1910
  %v1991 = vpop.f32.mrb[0].mxu0
  %v1992 = vadd.f32 0.0, %v1991
  %v1993 = vpop.f32.mrb[0].mxu0
  %v1994 = vadd.f32 0.0, %v1993
  %1995 = vdwg.mxu0
  %1996 = vmatprep.subr.mxu0 %v1923
  %1997 = vmatpush1.msra.mxu0 %v1920
  %1998 = vmatprep.subr.mxu0 0.0
  %1999 = vmatpush1.msra.mxu0 0.0
  %2000 = vmatprep.subr.mxu0 0.0
  %2001 = vmatpush1.msra.mxu0 0.0
  %2002 = vmatprep.subr.mxu0 0.0
  %2003 = vmatpush1.msra.mxu0 0.0
  %2004 = vmatprep.subr.mxu0 0.0
  %2005 = vmatpush1.msra.mxu0 0.0
  %2006 = vmatprep.subr.mxu0 0.0
  %2007 = vmatpush1.msra.mxu0 0.0
  %2008 = vmatprep.subr.mxu0 0.0
  %2009 = vmatpush1.msra.mxu0 0.0
  %2010 = vmatprep.subr.mxu0 0.0
  %2011 = vmatpush1.msra.mxu0 0.0
  %2012 = vmatprep.subr.mxu0 0.0
  %2013 = vmatpush1.msra.mxu0 0.0
  %2014 = vmatprep.subr.mxu0 0.0
  %2015 = vmatpush1.msra.mxu0 0.0
  %2016 = vmatprep.subr.mxu0 0.0
  %2017 = vmatpush1.msra.mxu0 0.0
  %2018 = vmatprep.subr.mxu0 0.0
  %2019 = vmatpush1.msra.mxu0 0.0
  %2020 = vmatprep.subr.mxu0 0.0
  %2021 = vmatpush1.msra.mxu0 0.0
  %2022 = vmatprep.subr.mxu0 0.0
  %2023 = vmatpush1.msra.mxu0 0.0
  %2024 = vmatprep.subr.mxu0 0.0
  %2025 = vmatpush1.msra.mxu0 0.0
  %2026 = vmatprep.subr.mxu0 0.0
  %2027 = vmatpush1.msra.mxu0 0.0
  %2028 = vmatprep.subr.mxu0 0.0
  %2029 = vmatpush1.msra.mxu0 0.0
  %2030 = vmatprep.subr.mxu0 0.0
  %2031 = vmatpush1.msra.mxu0 0.0
  %2032 = vmatprep.subr.mxu0 0.0
  %2033 = vmatpush1.msra.mxu0 0.0
  %2034 = vmatprep.subr.mxu0 0.0
  %2035 = vmatpush1.msra.mxu0 0.0
  %2036 = vmatprep.subr.mxu0 0.0
  %2037 = vmatpush1.msra.mxu0 0.0
  %2038 = vmatprep.subr.mxu0 0.0
  %2039 = vmatpush1.msra.mxu0 0.0
  %2040 = vmatprep.subr.mxu0 0.0
  %2041 = vmatpush1.msra.mxu0 0.0
  %2042 = vmatprep.subr.mxu0 0.0
  %2043 = vmatpush1.msra.mxu0 0.0
  %2044 = vmatprep.subr.mxu0 0.0
  %2045 = vmatpush1.msra.mxu0 0.0
  %2046 = vmatprep.subr.mxu0 0.0
  %2047 = vmatpush1.msra.mxu0 0.0
  %2048 = vmatprep.subr.mxu0 0.0
  %2049 = vmatpush1.msra.mxu0 0.0
  %2050 = vmatprep.subr.mxu0 0.0
  %2051 = vmatpush1.msra.mxu0 0.0
  %2052 = vmatprep.subr.mxu0 0.0
  %2053 = vmatpush1.msra.mxu0 0.0
  %2054 = vmatprep.subr.mxu0 0.0
  %2055 = vmatpush1.msra.mxu0 0.0
  %2056 = vmatprep.subr.mxu0 0.0
  %2057 = vmatpush1.msra.mxu0 0.0
  %2058 = vmatprep.subr.mxu0 0.0
  %2059 = vmatpush1.msra.mxu0 0.0
  %2060 = vmatprep.mubr.f32.mxu0 0.0
  %2061 = vmatmul.mubr.f32.gmra.mrb[0].mxu0 %v1910
  %v2062 = vpop.f32.mrb[0].mxu0
  %v2063 = vadd.f32 0.0, %v2062
  %v2064 = vpop.f32.mrb[0].mxu0
  %v2065 = vadd.f32 0.0, %v2064
  %2066 = vdwg.mxu0
  %v2068 = vsel %vm1908, %v1889, 0
  %v2071 = vsel %vm1912, %v1885, 0
  %v2074 = vsel %vm1912, %v1886, 0
  %v2077 = vsel %vm1912, %v1887, 0
  %v2080 = vsel %vm1912, %v1888, 0
  %2082 = vmatprep.subr.mxu0 %v2074
  %2083 = vmatpush1.msra.mxu0 %v2071
  %2084 = vmatprep.subr.mxu0 0.0
  %2085 = vmatpush1.msra.mxu0 0.0
  %2086 = vmatprep.subr.mxu0 0.0
  %2087 = vmatpush1.msra.mxu0 0.0
  %2088 = vmatprep.subr.mxu0 0.0
  %2089 = vmatpush1.msra.mxu0 0.0
  %2090 = vmatprep.subr.mxu0 0.0
  %2091 = vmatpush1.msra.mxu0 0.0
  %2092 = vmatprep.subr.mxu0 0.0
  %2093 = vmatpush1.msra.mxu0 0.0
  %2094 = vmatprep.subr.mxu0 0.0
  %2095 = vmatpush1.msra.mxu0 0.0
  %2096 = vmatprep.subr.mxu0 0.0
  %2097 = vmatpush1.msra.mxu0 0.0
  %2098 = vmatprep.subr.mxu0 0.0
  %2099 = vmatpush1.msra.mxu0 0.0
  %2100 = vmatprep.subr.mxu0 0.0
  %2101 = vmatpush1.msra.mxu0 0.0
  %2102 = vmatprep.subr.mxu0 0.0
  %2103 = vmatpush1.msra.mxu0 0.0
  %2104 = vmatprep.subr.mxu0 0.0
  %2105 = vmatpush1.msra.mxu0 0.0
  %2106 = vmatprep.subr.mxu0 0.0
  %2107 = vmatpush1.msra.mxu0 0.0
  %2108 = vmatprep.subr.mxu0 0.0
  %2109 = vmatpush1.msra.mxu0 0.0
  %2110 = vmatprep.subr.mxu0 0.0
  %2111 = vmatpush1.msra.mxu0 0.0
  %2112 = vmatprep.subr.mxu0 0.0
  %2113 = vmatpush1.msra.mxu0 0.0
  %2114 = vmatprep.subr.mxu0 0.0
  %2115 = vmatpush1.msra.mxu0 0.0
  %2116 = vmatprep.subr.mxu0 0.0
  %2117 = vmatpush1.msra.mxu0 0.0
  %2118 = vmatprep.subr.mxu0 0.0
  %2119 = vmatpush1.msra.mxu0 0.0
  %2120 = vmatprep.subr.mxu0 0.0
  %2121 = vmatpush1.msra.mxu0 0.0
  %2122 = vmatprep.subr.mxu0 0.0
  %2123 = vmatpush1.msra.mxu0 0.0
  %2124 = vmatprep.subr.mxu0 0.0
  %2125 = vmatpush1.msra.mxu0 0.0
  %2126 = vmatprep.subr.mxu0 0.0
  %2127 = vmatpush1.msra.mxu0 0.0
  %2128 = vmatprep.subr.mxu0 0.0
  %2129 = vmatpush1.msra.mxu0 0.0
  %2130 = vmatprep.subr.mxu0 0.0
  %2131 = vmatpush1.msra.mxu0 0.0
  %2132 = vmatprep.subr.mxu0 0.0
  %2133 = vmatpush1.msra.mxu0 0.0
  %2134 = vmatprep.subr.mxu0 0.0
  %2135 = vmatpush1.msra.mxu0 0.0
  %2136 = vmatprep.subr.mxu0 0.0
  %2137 = vmatpush1.msra.mxu0 0.0
  %2138 = vmatprep.subr.mxu0 0.0
  %2139 = vmatpush1.msra.mxu0 0.0
  %2140 = vmatprep.subr.mxu0 0.0
  %2141 = vmatpush1.msra.mxu0 0.0
  %2142 = vmatprep.subr.mxu0 0.0
  %2143 = vmatpush1.msra.mxu0 0.0
  %2144 = vmatprep.subr.mxu0 0.0
  %2145 = vmatpush1.msra.mxu0 0.0
  %2146 = vmatprep.mubr.f32.mxu0 0.0
  %2147 = vmatmul.mubr.f32.gmra.mrb[0].mxu0 %v2068
  %v2148 = vpop.f32.mrb[0].mxu0
  %v2149 = vadd.f32 %v1992, %v2148
  %v2150 = vpop.f32.mrb[0].mxu0
  %v2151 = vadd.f32 %v1994, %v2150
  %2152 = vdwg.mxu0
  %2153 = vmatprep.subr.mxu0 %v2080
  %2154 = vmatpush1.msra.mxu0 %v2077
  %2155 = vmatprep.subr.mxu0 0.0
  %2156 = vmatpush1.msra.mxu0 0.0
  %2157 = vmatprep.subr.mxu0 0.0
  %2158 = vmatpush1.msra.mxu0 0.0
  %2159 = vmatprep.subr.mxu0 0.0
  %2160 = vmatpush1.msra.mxu0 0.0
  %2161 = vmatprep.subr.mxu0 0.0
  %2162 = vmatpush1.msra.mxu0 0.0
  %2163 = vmatprep.subr.mxu0 0.0
  %2164 = vmatpush1.msra.mxu0 0.0
  %2165 = vmatprep.subr.mxu0 0.0
  %2166 = vmatpush1.msra.mxu0 0.0
  %2167 = vmatprep.subr.mxu0 0.0
  %2168 = vmatpush1.msra.mxu0 0.0
  %2169 = vmatprep.subr.mxu0 0.0
  %2170 = vmatpush1.msra.mxu0 0.0
  %2171 = vmatprep.subr.mxu0 0.0
  %2172 = vmatpush1.msra.mxu0 0.0
  %2173 = vmatprep.subr.mxu0 0.0
  %2174 = vmatpush1.msra.mxu0 0.0
  %2175 = vmatprep.subr.mxu0 0.0
  %2176 = vmatpush1.msra.mxu0 0.0
  %2177 = vmatprep.subr.mxu0 0.0
  %2178 = vmatpush1.msra.mxu0 0.0
  %2179 = vmatprep.subr.mxu0 0.0
  %2180 = vmatpush1.msra.mxu0 0.0
  %2181 = vmatprep.subr.mxu0 0.0
  %2182 = vmatpush1.msra.mxu0 0.0
  %2183 = vmatprep.subr.mxu0 0.0
  %2184 = vmatpush1.msra.mxu0 0.0
  %2185 = vmatprep.subr.mxu0 0.0
  %2186 = vmatpush1.msra.mxu0 0.0
  %2187 = vmatprep.subr.mxu0 0.0
  %2188 = vmatpush1.msra.mxu0 0.0
  %2189 = vmatprep.subr.mxu0 0.0
  %2190 = vmatpush1.msra.mxu0 0.0
  %2191 = vmatprep.subr.mxu0 0.0
  %2192 = vmatpush1.msra.mxu0 0.0
  %2193 = vmatprep.subr.mxu0 0.0
  %2194 = vmatpush1.msra.mxu0 0.0
  %2195 = vmatprep.subr.mxu0 0.0
  %2196 = vmatpush1.msra.mxu0 0.0
  %2197 = vmatprep.subr.mxu0 0.0
  %2198 = vmatpush1.msra.mxu0 0.0
  %2199 = vmatprep.subr.mxu0 0.0
  %2200 = vmatpush1.msra.mxu0 0.0
  %2201 = vmatprep.subr.mxu0 0.0
  %2202 = vmatpush1.msra.mxu0 0.0
  %2203 = vmatprep.subr.mxu0 0.0
  %2204 = vmatpush1.msra.mxu0 0.0
  %2205 = vmatprep.subr.mxu0 0.0
  %2206 = vmatpush1.msra.mxu0 0.0
  %2207 = vmatprep.subr.mxu0 0.0
  %2208 = vmatpush1.msra.mxu0 0.0
  %2209 = vmatprep.subr.mxu0 0.0
  %2210 = vmatpush1.msra.mxu0 0.0
  %2211 = vmatprep.subr.mxu0 0.0
  %2212 = vmatpush1.msra.mxu0 0.0
  %2213 = vmatprep.subr.mxu0 0.0
  %2214 = vmatpush1.msra.mxu0 0.0
  %2215 = vmatprep.subr.mxu0 0.0
  %2216 = vmatpush1.msra.mxu0 0.0
  %2217 = vmatprep.mubr.f32.mxu0 0.0
  %2218 = vmatmul.mubr.f32.gmra.mrb[0].mxu0 %v2068
  %v2219 = vpop.f32.mrb[0].mxu0
  %v2220 = vadd.f32 %v2063, %v2219
  %v2221 = vpop.f32.mrb[0].mxu0
  %v2222 = vadd.f32 %v2065, %v2221
  %2223 = vdwg.mxu0
  %2224 = vrot.lane.b32.xlu0 %v1866, 15
  %v2225 = vpop.permute.xlu0 %2224
  %2226 = vrot.lane.b32.xlu0 %v1868, 15
  %v2227 = vpop.permute.xlu0 %2226
  %2228 = vrot.lane.b32.xlu0 %v1870, 15
  %v2229 = vpop.permute.xlu0 %2228
  %2230 = vrot.lane.b32.xlu0 %v1872, 15
  %v2231 = vpop.permute.xlu0 %2230
  %v2232 = vsel %vm439, %v2229, %v2231
  %v2233 = vsel %vm439, %v2227, %v2229
  %v2234 = vsel %vm439, %v2225, %v2227
  %v2235 = vsel %vm439, %v2231, %v2225
  %v2236 = vmul.f32 %v2235, %v450
  %v2237 = vmul.f32 %v2234, %v454
  %v2238 = vmul.f32 %v2233, %v458
  %v2239 = vmul.f32 %v2232, %v462
  %s2240 = scalar_lea.vmem %s4, 8
  %v2241 = vld [vmem:[%s2240] sm:$0xf]
  %v2243 = vsel %vm1908, %v2241, 0
  %v2246 = vsel %vm1912, %v2236, 0
  %v2249 = vsel %vm1912, %v2237, 0
  %v2252 = vsel %vm1912, %v2238, 0
  %v2255 = vsel %vm1912, %v2239, 0
  %2257 = vmatprep.subr.mxu0 %v2249
  %2258 = vmatpush1.msra.mxu0 %v2246
  %2259 = vmatprep.subr.mxu0 0.0
  %2260 = vmatpush1.msra.mxu0 0.0
  %2261 = vmatprep.subr.mxu0 0.0
  %2262 = vmatpush1.msra.mxu0 0.0
  %2263 = vmatprep.subr.mxu0 0.0
  %2264 = vmatpush1.msra.mxu0 0.0
  %2265 = vmatprep.subr.mxu0 0.0
  %2266 = vmatpush1.msra.mxu0 0.0
  %2267 = vmatprep.subr.mxu0 0.0
  %2268 = vmatpush1.msra.mxu0 0.0
  %2269 = vmatprep.subr.mxu0 0.0
  %2270 = vmatpush1.msra.mxu0 0.0
  %2271 = vmatprep.subr.mxu0 0.0
  %2272 = vmatpush1.msra.mxu0 0.0
  %2273 = vmatprep.subr.mxu0 0.0
  %2274 = vmatpush1.msra.mxu0 0.0
  %2275 = vmatprep.subr.mxu0 0.0
  %2276 = vmatpush1.msra.mxu0 0.0
  %2277 = vmatprep.subr.mxu0 0.0
  %2278 = vmatpush1.msra.mxu0 0.0
  %2279 = vmatprep.subr.mxu0 0.0
  %2280 = vmatpush1.msra.mxu0 0.0
  %2281 = vmatprep.subr.mxu0 0.0
  %2282 = vmatpush1.msra.mxu0 0.0
  %2283 = vmatprep.subr.mxu0 0.0
  %2284 = vmatpush1.msra.mxu0 0.0
  %2285 = vmatprep.subr.mxu0 0.0
  %2286 = vmatpush1.msra.mxu0 0.0
  %2287 = vmatprep.subr.mxu0 0.0
  %2288 = vmatpush1.msra.mxu0 0.0
  %2289 = vmatprep.subr.mxu0 0.0
  %2290 = vmatpush1.msra.mxu0 0.0
  %2291 = vmatprep.subr.mxu0 0.0
  %2292 = vmatpush1.msra.mxu0 0.0
  %2293 = vmatprep.subr.mxu0 0.0
  %2294 = vmatpush1.msra.mxu0 0.0
  %2295 = vmatprep.subr.mxu0 0.0
  %2296 = vmatpush1.msra.mxu0 0.0
  %2297 = vmatprep.subr.mxu0 0.0
  %2298 = vmatpush1.msra.mxu0 0.0
  %2299 = vmatprep.subr.mxu0 0.0
  %2300 = vmatpush1.msra.mxu0 0.0
  %2301 = vmatprep.subr.mxu0 0.0
  %2302 = vmatpush1.msra.mxu0 0.0
  %2303 = vmatprep.subr.mxu0 0.0
  %2304 = vmatpush1.msra.mxu0 0.0
  %2305 = vmatprep.subr.mxu0 0.0
  %2306 = vmatpush1.msra.mxu0 0.0
  %2307 = vmatprep.subr.mxu0 0.0
  %2308 = vmatpush1.msra.mxu0 0.0
  %2309 = vmatprep.subr.mxu0 0.0
  %2310 = vmatpush1.msra.mxu0 0.0
  %2311 = vmatprep.subr.mxu0 0.0
  %2312 = vmatpush1.msra.mxu0 0.0
  %2313 = vmatprep.subr.mxu0 0.0
  %2314 = vmatpush1.msra.mxu0 0.0
  %2315 = vmatprep.subr.mxu0 0.0
  %2316 = vmatpush1.msra.mxu0 0.0
  %2317 = vmatprep.subr.mxu0 0.0
  %2318 = vmatpush1.msra.mxu0 0.0
  %2319 = vmatprep.subr.mxu0 0.0
  %2320 = vmatpush1.msra.mxu0 0.0
  %2321 = vmatprep.mubr.f32.mxu0 0.0
  %2322 = vmatmul.mubr.f32.gmra.mrb[0].mxu0 %v2243
  %v2323 = vpop.f32.mrb[0].mxu0
  %v2324 = vadd.f32 0.0, %v2323
  %v2325 = vpop.f32.mrb[0].mxu0
  %v2326 = vadd.f32 0.0, %v2325
  %2327 = vdwg.mxu0
  %2328 = vmatprep.subr.mxu0 %v2255
  %2329 = vmatpush1.msra.mxu0 %v2252
  %2330 = vmatprep.subr.mxu0 0.0
  %2331 = vmatpush1.msra.mxu0 0.0
  %2332 = vmatprep.subr.mxu0 0.0
  %2333 = vmatpush1.msra.mxu0 0.0
  %2334 = vmatprep.subr.mxu0 0.0
  %2335 = vmatpush1.msra.mxu0 0.0
  %2336 = vmatprep.subr.mxu0 0.0
  %2337 = vmatpush1.msra.mxu0 0.0
  %2338 = vmatprep.subr.mxu0 0.0
  %2339 = vmatpush1.msra.mxu0 0.0
  %2340 = vmatprep.subr.mxu0 0.0
  %2341 = vmatpush1.msra.mxu0 0.0
  %2342 = vmatprep.subr.mxu0 0.0
  %2343 = vmatpush1.msra.mxu0 0.0
  %2344 = vmatprep.subr.mxu0 0.0
  %2345 = vmatpush1.msra.mxu0 0.0
  %2346 = vmatprep.subr.mxu0 0.0
  %2347 = vmatpush1.msra.mxu0 0.0
  %2348 = vmatprep.subr.mxu0 0.0
  %2349 = vmatpush1.msra.mxu0 0.0
  %2350 = vmatprep.subr.mxu0 0.0
  %2351 = vmatpush1.msra.mxu0 0.0
  %2352 = vmatprep.subr.mxu0 0.0
  %2353 = vmatpush1.msra.mxu0 0.0
  %2354 = vmatprep.subr.mxu0 0.0
  %2355 = vmatpush1.msra.mxu0 0.0
  %2356 = vmatprep.subr.mxu0 0.0
  %2357 = vmatpush1.msra.mxu0 0.0
  %2358 = vmatprep.subr.mxu0 0.0
  %2359 = vmatpush1.msra.mxu0 0.0
  %2360 = vmatprep.subr.mxu0 0.0
  %2361 = vmatpush1.msra.mxu0 0.0
  %2362 = vmatprep.subr.mxu0 0.0
  %2363 = vmatpush1.msra.mxu0 0.0
  %2364 = vmatprep.subr.mxu0 0.0
  %2365 = vmatpush1.msra.mxu0 0.0
  %2366 = vmatprep.subr.mxu0 0.0
  %2367 = vmatpush1.msra.mxu0 0.0
  %2368 = vmatprep.subr.mxu0 0.0
  %2369 = vmatpush1.msra.mxu0 0.0
  %2370 = vmatprep.subr.mxu0 0.0
  %2371 = vmatpush1.msra.mxu0 0.0
  %2372 = vmatprep.subr.mxu0 0.0
  %2373 = vmatpush1.msra.mxu0 0.0
  %2374 = vmatprep.subr.mxu0 0.0
  %2375 = vmatpush1.msra.mxu0 0.0
  %2376 = vmatprep.subr.mxu0 0.0
  %2377 = vmatpush1.msra.mxu0 0.0
  %2378 = vmatprep.subr.mxu0 0.0
  %2379 = vmatpush1.msra.mxu0 0.0
  %2380 = vmatprep.subr.mxu0 0.0
  %2381 = vmatpush1.msra.mxu0 0.0
  %2382 = vmatprep.subr.mxu0 0.0
  %2383 = vmatpush1.msra.mxu0 0.0
  %2384 = vmatprep.subr.mxu0 0.0
  %2385 = vmatpush1.msra.mxu0 0.0
  %2386 = vmatprep.subr.mxu0 0.0
  %2387 = vmatpush1.msra.mxu0 0.0
  %2388 = vmatprep.subr.mxu0 0.0
  %2389 = vmatpush1.msra.mxu0 0.0
  %2390 = vmatprep.subr.mxu0 0.0
  %2391 = vmatpush1.msra.mxu0 0.0
  %2392 = vmatprep.mubr.f32.mxu0 0.0
  %2393 = vmatmul.mubr.f32.gmra.mrb[0].mxu0 %v2243
  %v2394 = vpop.f32.mrb[0].mxu0
  %v2395 = vadd.f32 0.0, %v2394
  %v2396 = vpop.f32.mrb[0].mxu0
  %v2397 = vadd.f32 0.0, %v2396
  %2398 = vdwg.mxu0
  %v2399 = vadd.f32 %v2149, %v2324
  %v2400 = vadd.f32 %v2151, %v2326
  %v2401 = vadd.f32 %v2220, %v2395
  %v2402 = vadd.f32 %v2222, %v2397
  %2403 = vrot.lane.b32.xlu0 %v1866, 1
  %v2404 = vpop.permute.xlu0 %2403
  %2405 = vrot.lane.b32.xlu0 %v1868, 1
  %v2406 = vpop.permute.xlu0 %2405
  %2407 = vrot.lane.b32.xlu0 %v1870, 1
  %v2408 = vpop.permute.xlu0 %2407
  %2409 = vrot.lane.b32.xlu0 %v1872, 1
  %v2410 = vpop.permute.xlu0 %2409
  %v2411 = vsel %vm642, %v2408, %v2410
  %v2412 = vsel %vm642, %v2406, %v2408
  %v2413 = vsel %vm642, %v2404, %v2406
  %v2414 = vsel %vm642, %v2410, %v2404
  %v2415 = vmul.f32 %v2414, %v653
  %v2416 = vmul.f32 %v2413, %v657
  %v2417 = vmul.f32 %v2412, %v661
  %v2418 = vmul.f32 %v2411, %v665
  %s2419 = scalar_lea.vmem %s4, 12
  %v2420 = vld [vmem:[%s2419] sm:$0xf]
  %v2422 = vsel %vm1908, %v2420, 0
  %v2425 = vsel %vm1912, %v2415, 0
  %v2428 = vsel %vm1912, %v2416, 0
  %v2431 = vsel %vm1912, %v2417, 0
  %v2434 = vsel %vm1912, %v2418, 0
  %2436 = vmatprep.subr.mxu0 %v2428
  %2437 = vmatpush1.msra.mxu0 %v2425
  %2438 = vmatprep.subr.mxu0 0.0
  %2439 = vmatpush1.msra.mxu0 0.0
  %2440 = vmatprep.subr.mxu0 0.0
  %2441 = vmatpush1.msra.mxu0 0.0
  %2442 = vmatprep.subr.mxu0 0.0
  %2443 = vmatpush1.msra.mxu0 0.0
  %2444 = vmatprep.subr.mxu0 0.0
  %2445 = vmatpush1.msra.mxu0 0.0
  %2446 = vmatprep.subr.mxu0 0.0
  %2447 = vmatpush1.msra.mxu0 0.0
  %2448 = vmatprep.subr.mxu0 0.0
  %2449 = vmatpush1.msra.mxu0 0.0
  %2450 = vmatprep.subr.mxu0 0.0
  %2451 = vmatpush1.msra.mxu0 0.0
  %2452 = vmatprep.subr.mxu0 0.0
  %2453 = vmatpush1.msra.mxu0 0.0
  %2454 = vmatprep.subr.mxu0 0.0
  %2455 = vmatpush1.msra.mxu0 0.0
  %2456 = vmatprep.subr.mxu0 0.0
  %2457 = vmatpush1.msra.mxu0 0.0
  %2458 = vmatprep.subr.mxu0 0.0
  %2459 = vmatpush1.msra.mxu0 0.0
  %2460 = vmatprep.subr.mxu0 0.0
  %2461 = vmatpush1.msra.mxu0 0.0
  %2462 = vmatprep.subr.mxu0 0.0
  %2463 = vmatpush1.msra.mxu0 0.0
  %2464 = vmatprep.subr.mxu0 0.0
  %2465 = vmatpush1.msra.mxu0 0.0
  %2466 = vmatprep.subr.mxu0 0.0
  %2467 = vmatpush1.msra.mxu0 0.0
  %2468 = vmatprep.subr.mxu0 0.0
  %2469 = vmatpush1.msra.mxu0 0.0
  %2470 = vmatprep.subr.mxu0 0.0
  %2471 = vmatpush1.msra.mxu0 0.0
  %2472 = vmatprep.subr.mxu0 0.0
  %2473 = vmatpush1.msra.mxu0 0.0
  %2474 = vmatprep.subr.mxu0 0.0
  %2475 = vmatpush1.msra.mxu0 0.0
  %2476 = vmatprep.subr.mxu0 0.0
  %2477 = vmatpush1.msra.mxu0 0.0
  %2478 = vmatprep.subr.mxu0 0.0
  %2479 = vmatpush1.msra.mxu0 0.0
  %2480 = vmatprep.subr.mxu0 0.0
  %2481 = vmatpush1.msra.mxu0 0.0
  %2482 = vmatprep.subr.mxu0 0.0
  %2483 = vmatpush1.msra.mxu0 0.0
  %2484 = vmatprep.subr.mxu0 0.0
  %2485 = vmatpush1.msra.mxu0 0.0
  %2486 = vmatprep.subr.mxu0 0.0
  %2487 = vmatpush1.msra.mxu0 0.0
  %2488 = vmatprep.subr.mxu0 0.0
  %2489 = vmatpush1.msra.mxu0 0.0
  %2490 = vmatprep.subr.mxu0 0.0
  %2491 = vmatpush1.msra.mxu0 0.0
  %2492 = vmatprep.subr.mxu0 0.0
  %2493 = vmatpush1.msra.mxu0 0.0
  %2494 = vmatprep.subr.mxu0 0.0
  %2495 = vmatpush1.msra.mxu0 0.0
  %2496 = vmatprep.subr.mxu0 0.0
  %2497 = vmatpush1.msra.mxu0 0.0
  %2498 = vmatprep.subr.mxu0 0.0
  %2499 = vmatpush1.msra.mxu0 0.0
  %2500 = vmatprep.mubr.f32.mxu0 0.0
  %2501 = vmatmul.mubr.f32.gmra.mrb[0].mxu0 %v2422
  %v2502 = vpop.f32.mrb[0].mxu0
  %v2503 = vadd.f32 0.0, %v2502
  %v2504 = vpop.f32.mrb[0].mxu0
  %v2505 = vadd.f32 0.0, %v2504
  %2506 = vdwg.mxu0
  %2507 = vmatprep.subr.mxu0 %v2434
  %2508 = vmatpush1.msra.mxu0 %v2431
  %2509 = vmatprep.subr.mxu0 0.0
  %2510 = vmatpush1.msra.mxu0 0.0
  %2511 = vmatprep.subr.mxu0 0.0
  %2512 = vmatpush1.msra.mxu0 0.0
  %2513 = vmatprep.subr.mxu0 0.0
  %2514 = vmatpush1.msra.mxu0 0.0
  %2515 = vmatprep.subr.mxu0 0.0
  %2516 = vmatpush1.msra.mxu0 0.0
  %2517 = vmatprep.subr.mxu0 0.0
  %2518 = vmatpush1.msra.mxu0 0.0
  %2519 = vmatprep.subr.mxu0 0.0
  %2520 = vmatpush1.msra.mxu0 0.0
  %2521 = vmatprep.subr.mxu0 0.0
  %2522 = vmatpush1.msra.mxu0 0.0
  %2523 = vmatprep.subr.mxu0 0.0
  %2524 = vmatpush1.msra.mxu0 0.0
  %2525 = vmatprep.subr.mxu0 0.0
  %2526 = vmatpush1.msra.mxu0 0.0
  %2527 = vmatprep.subr.mxu0 0.0
  %2528 = vmatpush1.msra.mxu0 0.0
  %2529 = vmatprep.subr.mxu0 0.0
  %2530 = vmatpush1.msra.mxu0 0.0
  %2531 = vmatprep.subr.mxu0 0.0
  %2532 = vmatpush1.msra.mxu0 0.0
  %2533 = vmatprep.subr.mxu0 0.0
  %2534 = vmatpush1.msra.mxu0 0.0
  %2535 = vmatprep.subr.mxu0 0.0
  %2536 = vmatpush1.msra.mxu0 0.0
  %2537 = vmatprep.subr.mxu0 0.0
  %2538 = vmatpush1.msra.mxu0 0.0
  %2539 = vmatprep.subr.mxu0 0.0
  %2540 = vmatpush1.msra.mxu0 0.0
  %2541 = vmatprep.subr.mxu0 0.0
  %2542 = vmatpush1.msra.mxu0 0.0
  %2543 = vmatprep.subr.mxu0 0.0
  %2544 = vmatpush1.msra.mxu0 0.0
  %2545 = vmatprep.subr.mxu0 0.0
  %2546 = vmatpush1.msra.mxu0 0.0
  %2547 = vmatprep.subr.mxu0 0.0
  %2548 = vmatpush1.msra.mxu0 0.0
  %2549 = vmatprep.subr.mxu0 0.0
  %2550 = vmatpush1.msra.mxu0 0.0
  %2551 = vmatprep.subr.mxu0 0.0
  %2552 = vmatpush1.msra.mxu0 0.0
  %2553 = vmatprep.subr.mxu0 0.0
  %2554 = vmatpush1.msra.mxu0 0.0
  %2555 = vmatprep.subr.mxu0 0.0
  %2556 = vmatpush1.msra.mxu0 0.0
  %2557 = vmatprep.subr.mxu0 0.0
  %2558 = vmatpush1.msra.mxu0 0.0
  %2559 = vmatprep.subr.mxu0 0.0
  %2560 = vmatpush1.msra.mxu0 0.0
  %2561 = vmatprep.subr.mxu0 0.0
  %2562 = vmatpush1.msra.mxu0 0.0
  %2563 = vmatprep.subr.mxu0 0.0
  %2564 = vmatpush1.msra.mxu0 0.0
  %2565 = vmatprep.subr.mxu0 0.0
  %2566 = vmatpush1.msra.mxu0 0.0
  %2567 = vmatprep.subr.mxu0 0.0
  %2568 = vmatpush1.msra.mxu0 0.0
  %2569 = vmatprep.subr.mxu0 0.0
  %2570 = vmatpush1.msra.mxu0 0.0
  %2571 = vmatprep.mubr.f32.mxu0 0.0
  %2572 = vmatmul.mubr.f32.gmra.mrb[0].mxu0 %v2422
  %v2573 = vpop.f32.mrb[0].mxu0
  %v2574 = vadd.f32 0.0, %v2573
  %v2575 = vpop.f32.mrb[0].mxu0
  %v2576 = vadd.f32 0.0, %v2575
  %2577 = vdwg.mxu0
  %v2578 = vadd.f32 %v2399, %v2503
  %v2579 = vadd.f32 %v2400, %v2505
  %v2580 = vadd.f32 %v2401, %v2574
  %v2581 = vadd.f32 %v2402, %v2576
  %v2582 = vmul.f32 %v1866, %v843
  %v2583 = vmul.f32 %v1868, %v847
  %v2584 = vmul.f32 %v1870, %v851
  %v2585 = vmul.f32 %v1872, %v855
  %s2586 = scalar_lea.vmem %s4, 16
  %v2587 = vld [vmem:[%s2586] sm:$0xf]
  %v2589 = vsel %vm1908, %v2587, 0
  %v2592 = vsel %vm1912, %v2582, 0
  %v2595 = vsel %vm1912, %v2583, 0
  %v2598 = vsel %vm1912, %v2584, 0
  %v2601 = vsel %vm1912, %v2585, 0
  %2603 = vmatprep.subr.mxu0 %v2595
  %2604 = vmatpush1.msra.mxu0 %v2592
  %2605 = vmatprep.subr.mxu0 0.0
  %2606 = vmatpush1.msra.mxu0 0.0
  %2607 = vmatprep.subr.mxu0 0.0
  %2608 = vmatpush1.msra.mxu0 0.0
  %2609 = vmatprep.subr.mxu0 0.0
  %2610 = vmatpush1.msra.mxu0 0.0
  %2611 = vmatprep.subr.mxu0 0.0
  %2612 = vmatpush1.msra.mxu0 0.0
  %2613 = vmatprep.subr.mxu0 0.0
  %2614 = vmatpush1.msra.mxu0 0.0
  %2615 = vmatprep.subr.mxu0 0.0
  %2616 = vmatpush1.msra.mxu0 0.0
  %2617 = vmatprep.subr.mxu0 0.0
  %2618 = vmatpush1.msra.mxu0 0.0
  %2619 = vmatprep.subr.mxu0 0.0
  %2620 = vmatpush1.msra.mxu0 0.0
  %2621 = vmatprep.subr.mxu0 0.0
  %2622 = vmatpush1.msra.mxu0 0.0
  %2623 = vmatprep.subr.mxu0 0.0
  %2624 = vmatpush1.msra.mxu0 0.0
  %2625 = vmatprep.subr.mxu0 0.0
  %2626 = vmatpush1.msra.mxu0 0.0
  %2627 = vmatprep.subr.mxu0 0.0
  %2628 = vmatpush1.msra.mxu0 0.0
  %2629 = vmatprep.subr.mxu0 0.0
  %2630 = vmatpush1.msra.mxu0 0.0
  %2631 = vmatprep.subr.mxu0 0.0
  %2632 = vmatpush1.msra.mxu0 0.0
  %2633 = vmatprep.subr.mxu0 0.0
  %2634 = vmatpush1.msra.mxu0 0.0
  %2635 = vmatprep.subr.mxu0 0.0
  %2636 = vmatpush1.msra.mxu0 0.0
  %2637 = vmatprep.subr.mxu0 0.0
  %2638 = vmatpush1.msra.mxu0 0.0
  %2639 = vmatprep.subr.mxu0 0.0
  %2640 = vmatpush1.msra.mxu0 0.0
  %2641 = vmatprep.subr.mxu0 0.0
  %2642 = vmatpush1.msra.mxu0 0.0
  %2643 = vmatprep.subr.mxu0 0.0
  %2644 = vmatpush1.msra.mxu0 0.0
  %2645 = vmatprep.subr.mxu0 0.0
  %2646 = vmatpush1.msra.mxu0 0.0
  %2647 = vmatprep.subr.mxu0 0.0
  %2648 = vmatpush1.msra.mxu0 0.0
  %2649 = vmatprep.subr.mxu0 0.0
  %2650 = vmatpush1.msra.mxu0 0.0
  %2651 = vmatprep.subr.mxu0 0.0
  %2652 = vmatpush1.msra.mxu0 0.0
  %2653 = vmatprep.subr.mxu0 0.0
  %2654 = vmatpush1.msra.mxu0 0.0
  %2655 = vmatprep.subr.mxu0 0.0
  %2656 = vmatpush1.msra.mxu0 0.0
  %2657 = vmatprep.subr.mxu0 0.0
  %2658 = vmatpush1.msra.mxu0 0.0
  %2659 = vmatprep.subr.mxu0 0.0
  %2660 = vmatpush1.msra.mxu0 0.0
  %2661 = vmatprep.subr.mxu0 0.0
  %2662 = vmatpush1.msra.mxu0 0.0
  %2663 = vmatprep.subr.mxu0 0.0
  %2664 = vmatpush1.msra.mxu0 0.0
  %2665 = vmatprep.subr.mxu0 0.0
  %2666 = vmatpush1.msra.mxu0 0.0
  %2667 = vmatprep.mubr.f32.mxu0 0.0
  %2668 = vmatmul.mubr.f32.gmra.mrb[0].mxu0 %v2589
  %v2669 = vpop.f32.mrb[0].mxu0
  %v2670 = vadd.f32 0.0, %v2669
  %v2671 = vpop.f32.mrb[0].mxu0
  %v2672 = vadd.f32 0.0, %v2671
  %2673 = vdwg.mxu0
  %2674 = vmatprep.subr.mxu0 %v2601
  %2675 = vmatpush1.msra.mxu0 %v2598
  %2676 = vmatprep.subr.mxu0 0.0
  %2677 = vmatpush1.msra.mxu0 0.0
  %2678 = vmatprep.subr.mxu0 0.0
  %2679 = vmatpush1.msra.mxu0 0.0
  %2680 = vmatprep.subr.mxu0 0.0
  %2681 = vmatpush1.msra.mxu0 0.0
  %2682 = vmatprep.subr.mxu0 0.0
  %2683 = vmatpush1.msra.mxu0 0.0
  %2684 = vmatprep.subr.mxu0 0.0
  %2685 = vmatpush1.msra.mxu0 0.0
  %2686 = vmatprep.subr.mxu0 0.0
  %2687 = vmatpush1.msra.mxu0 0.0
  %2688 = vmatprep.subr.mxu0 0.0
  %2689 = vmatpush1.msra.mxu0 0.0
  %2690 = vmatprep.subr.mxu0 0.0
  %2691 = vmatpush1.msra.mxu0 0.0
  %2692 = vmatprep.subr.mxu0 0.0
  %2693 = vmatpush1.msra.mxu0 0.0
  %2694 = vmatprep.subr.mxu0 0.0
  %2695 = vmatpush1.msra.mxu0 0.0
  %2696 = vmatprep.subr.mxu0 0.0
  %2697 = vmatpush1.msra.mxu0 0.0
  %2698 = vmatprep.subr.mxu0 0.0
  %2699 = vmatpush1.msra.mxu0 0.0
  %2700 = vmatprep.subr.mxu0 0.0
  %2701 = vmatpush1.msra.mxu0 0.0
  %2702 = vmatprep.subr.mxu0 0.0
  %2703 = vmatpush1.msra.mxu0 0.0
  %2704 = vmatprep.subr.mxu0 0.0
  %2705 = vmatpush1.msra.mxu0 0.0
  %2706 = vmatprep.subr.mxu0 0.0
  %2707 = vmatpush1.msra.mxu0 0.0
  %2708 = vmatprep.subr.mxu0 0.0
  %2709 = vmatpush1.msra.mxu0 0.0
  %2710 = vmatprep.subr.mxu0 0.0
  %2711 = vmatpush1.msra.mxu0 0.0
  %2712 = vmatprep.subr.mxu0 0.0
  %2713 = vmatpush1.msra.mxu0 0.0
  %2714 = vmatprep.subr.mxu0 0.0
  %2715 = vmatpush1.msra.mxu0 0.0
  %2716 = vmatprep.subr.mxu0 0.0
  %2717 = vmatpush1.msra.mxu0 0.0
  %2718 = vmatprep.subr.mxu0 0.0
  %2719 = vmatpush1.msra.mxu0 0.0
  %2720 = vmatprep.subr.mxu0 0.0
  %2721 = vmatpush1.msra.mxu0 0.0
  %2722 = vmatprep.subr.mxu0 0.0
  %2723 = vmatpush1.msra.mxu0 0.0
  %2724 = vmatprep.subr.mxu0 0.0
  %2725 = vmatpush1.msra.mxu0 0.0
  %2726 = vmatprep.subr.mxu0 0.0
  %2727 = vmatpush1.msra.mxu0 0.0
  %2728 = vmatprep.subr.mxu0 0.0
  %2729 = vmatpush1.msra.mxu0 0.0
  %2730 = vmatprep.subr.mxu0 0.0
  %2731 = vmatpush1.msra.mxu0 0.0
  %2732 = vmatprep.subr.mxu0 0.0
  %2733 = vmatpush1.msra.mxu0 0.0
  %2734 = vmatprep.subr.mxu0 0.0
  %2735 = vmatpush1.msra.mxu0 0.0
  %2736 = vmatprep.subr.mxu0 0.0
  %2737 = vmatpush1.msra.mxu0 0.0
  %2738 = vmatprep.mubr.f32.mxu0 0.0
  %2739 = vmatmul.mubr.f32.gmra.mrb[0].mxu0 %v2589
  %v2740 = vpop.f32.mrb[0].mxu0
  %v2741 = vadd.f32 0.0, %v2740
  %v2742 = vpop.f32.mrb[0].mxu0
  %v2743 = vadd.f32 0.0, %v2742
  %2744 = vdwg.mxu0
  %v2745 = vadd.f32 %v2578, %v2670
  %v2746 = vadd.f32 %v2579, %v2672
  %v2747 = vadd.f32 %v2580, %v2741
  %v2748 = vadd.f32 %v2581, %v2743
  %2749 = vrot.lane.b32.xlu0 %v1866, 127
  %v2750 = vpop.permute.xlu0 %2749
  %2751 = vrot.lane.b32.xlu0 %v1868, 127
  %v2752 = vpop.permute.xlu0 %2751
  %2753 = vrot.lane.b32.xlu0 %v1870, 127
  %v2754 = vpop.permute.xlu0 %2753
  %2755 = vrot.lane.b32.xlu0 %v1872, 127
  %v2756 = vpop.permute.xlu0 %2755
  %v2757 = vsel %vm1035, %v2754, %v2756
  %v2758 = vsel %vm1035, %v2752, %v2754
  %v2759 = vsel %vm1035, %v2750, %v2752
  %v2760 = vsel %vm1035, %v2756, %v2750
  %v2761 = vmul.f32 %v2759, %v1046
  %v2762 = vmul.f32 %v2758, %v1050
  %v2763 = vmul.f32 %v2757, %v1054
  %v2764 = vmul.f32 %v2760, %v1058
  %s2765 = scalar_lea.vmem %s4, 20
  %v2766 = vld [vmem:[%s2765] sm:$0xf]
  %v2768 = vsel %vm1908, %v2766, 0
  %v2771 = vsel %vm1912, %v2761, 0
  %v2774 = vsel %vm1912, %v2762, 0
  %v2777 = vsel %vm1912, %v2763, 0
  %v2780 = vsel %vm1912, %v2764, 0
  %2782 = vmatprep.subr.mxu0 %v2774
  %2783 = vmatpush1.msra.mxu0 %v2771
  %2784 = vmatprep.subr.mxu0 0.0
  %2785 = vmatpush1.msra.mxu0 0.0
  %2786 = vmatprep.subr.mxu0 0.0
  %2787 = vmatpush1.msra.mxu0 0.0
  %2788 = vmatprep.subr.mxu0 0.0
  %2789 = vmatpush1.msra.mxu0 0.0
  %2790 = vmatprep.subr.mxu0 0.0
  %2791 = vmatpush1.msra.mxu0 0.0
  %2792 = vmatprep.subr.mxu0 0.0
  %2793 = vmatpush1.msra.mxu0 0.0
  %2794 = vmatprep.subr.mxu0 0.0
  %2795 = vmatpush1.msra.mxu0 0.0
  %2796 = vmatprep.subr.mxu0 0.0
  %2797 = vmatpush1.msra.mxu0 0.0
  %2798 = vmatprep.subr.mxu0 0.0
  %2799 = vmatpush1.msra.mxu0 0.0
  %2800 = vmatprep.subr.mxu0 0.0
  %2801 = vmatpush1.msra.mxu0 0.0
  %2802 = vmatprep.subr.mxu0 0.0
  %2803 = vmatpush1.msra.mxu0 0.0
  %2804 = vmatprep.subr.mxu0 0.0
  %2805 = vmatpush1.msra.mxu0 0.0
  %2806 = vmatprep.subr.mxu0 0.0
  %2807 = vmatpush1.msra.mxu0 0.0
  %2808 = vmatprep.subr.mxu0 0.0
  %2809 = vmatpush1.msra.mxu0 0.0
  %2810 = vmatprep.subr.mxu0 0.0
  %2811 = vmatpush1.msra.mxu0 0.0
  %2812 = vmatprep.subr.mxu0 0.0
  %2813 = vmatpush1.msra.mxu0 0.0
  %2814 = vmatprep.subr.mxu0 0.0
  %2815 = vmatpush1.msra.mxu0 0.0
  %2816 = vmatprep.subr.mxu0 0.0
  %2817 = vmatpush1.msra.mxu0 0.0
  %2818 = vmatprep.subr.mxu0 0.0
  %2819 = vmatpush1.msra.mxu0 0.0
  %2820 = vmatprep.subr.mxu0 0.0
  %2821 = vmatpush1.msra.mxu0 0.0
  %2822 = vmatprep.subr.mxu0 0.0
  %2823 = vmatpush1.msra.mxu0 0.0
  %2824 = vmatprep.subr.mxu0 0.0
  %2825 = vmatpush1.msra.mxu0 0.0
  %2826 = vmatprep.subr.mxu0 0.0
  %2827 = vmatpush1.msra.mxu0 0.0
  %2828 = vmatprep.subr.mxu0 0.0
  %2829 = vmatpush1.msra.mxu0 0.0
  %2830 = vmatprep.subr.mxu0 0.0
  %2831 = vmatpush1.msra.mxu0 0.0
  %2832 = vmatprep.subr.mxu0 0.0
  %2833 = vmatpush1.msra.mxu0 0.0
  %2834 = vmatprep.subr.mxu0 0.0
  %2835 = vmatpush1.msra.mxu0 0.0
  %2836 = vmatprep.subr.mxu0 0.0
  %2837 = vmatpush1.msra.mxu0 0.0
  %2838 = vmatprep.subr.mxu0 0.0
  %2839 = vmatpush1.msra.mxu0 0.0
  %2840 = vmatprep.subr.mxu0 0.0
  %2841 = vmatpush1.msra.mxu0 0.0
  %2842 = vmatprep.subr.mxu0 0.0
  %2843 = vmatpush1.msra.mxu0 0.0
  %2844 = vmatprep.subr.mxu0 0.0
  %2845 = vmatpush1.msra.mxu0 0.0
  %2846 = vmatprep.mubr.f32.mxu0 0.0
  %2847 = vmatmul.mubr.f32.gmra.mrb[0].mxu0 %v2768
  %v2848 = vpop.f32.mrb[0].mxu0
  %v2849 = vadd.f32 0.0, %v2848
  %v2850 = vpop.f32.mrb[0].mxu0
  %v2851 = vadd.f32 0.0, %v2850
  %2852 = vdwg.mxu0
  %2853 = vmatprep.subr.mxu0 %v2780
  %2854 = vmatpush1.msra.mxu0 %v2777
  %2855 = vmatprep.subr.mxu0 0.0
  %2856 = vmatpush1.msra.mxu0 0.0
  %2857 = vmatprep.subr.mxu0 0.0
  %2858 = vmatpush1.msra.mxu0 0.0
  %2859 = vmatprep.subr.mxu0 0.0
  %2860 = vmatpush1.msra.mxu0 0.0
  %2861 = vmatprep.subr.mxu0 0.0
  %2862 = vmatpush1.msra.mxu0 0.0
  %2863 = vmatprep.subr.mxu0 0.0
  %2864 = vmatpush1.msra.mxu0 0.0
  %2865 = vmatprep.subr.mxu0 0.0
  %2866 = vmatpush1.msra.mxu0 0.0
  %2867 = vmatprep.subr.mxu0 0.0
  %2868 = vmatpush1.msra.mxu0 0.0
  %2869 = vmatprep.subr.mxu0 0.0
  %2870 = vmatpush1.msra.mxu0 0.0
  %2871 = vmatprep.subr.mxu0 0.0
  %2872 = vmatpush1.msra.mxu0 0.0
  %2873 = vmatprep.subr.mxu0 0.0
  %2874 = vmatpush1.msra.mxu0 0.0
  %2875 = vmatprep.subr.mxu0 0.0
  %2876 = vmatpush1.msra.mxu0 0.0
  %2877 = vmatprep.subr.mxu0 0.0
  %2878 = vmatpush1.msra.mxu0 0.0
  %2879 = vmatprep.subr.mxu0 0.0
  %2880 = vmatpush1.msra.mxu0 0.0
  %2881 = vmatprep.subr.mxu0 0.0
  %2882 = vmatpush1.msra.mxu0 0.0
  %2883 = vmatprep.subr.mxu0 0.0
  %2884 = vmatpush1.msra.mxu0 0.0
  %2885 = vmatprep.subr.mxu0 0.0
  %2886 = vmatpush1.msra.mxu0 0.0
  %2887 = vmatprep.subr.mxu0 0.0
  %2888 = vmatpush1.msra.mxu0 0.0
  %2889 = vmatprep.subr.mxu0 0.0
  %2890 = vmatpush1.msra.mxu0 0.0
  %2891 = vmatprep.subr.mxu0 0.0
  %2892 = vmatpush1.msra.mxu0 0.0
  %2893 = vmatprep.subr.mxu0 0.0
  %2894 = vmatpush1.msra.mxu0 0.0
  %2895 = vmatprep.subr.mxu0 0.0
  %2896 = vmatpush1.msra.mxu0 0.0
  %2897 = vmatprep.subr.mxu0 0.0
  %2898 = vmatpush1.msra.mxu0 0.0
  %2899 = vmatprep.subr.mxu0 0.0
  %2900 = vmatpush1.msra.mxu0 0.0
  %2901 = vmatprep.subr.mxu0 0.0
  %2902 = vmatpush1.msra.mxu0 0.0
  %2903 = vmatprep.subr.mxu0 0.0
  %2904 = vmatpush1.msra.mxu0 0.0
  %2905 = vmatprep.subr.mxu0 0.0
  %2906 = vmatpush1.msra.mxu0 0.0
  %2907 = vmatprep.subr.mxu0 0.0
  %2908 = vmatpush1.msra.mxu0 0.0
  %2909 = vmatprep.subr.mxu0 0.0
  %2910 = vmatpush1.msra.mxu0 0.0
  %2911 = vmatprep.subr.mxu0 0.0
  %2912 = vmatpush1.msra.mxu0 0.0
  %2913 = vmatprep.subr.mxu0 0.0
  %2914 = vmatpush1.msra.mxu0 0.0
  %2915 = vmatprep.subr.mxu0 0.0
  %2916 = vmatpush1.msra.mxu0 0.0
  %2917 = vmatprep.mubr.f32.mxu0 0.0
  %2918 = vmatmul.mubr.f32.gmra.mrb[0].mxu0 %v2768
  %v2919 = vpop.f32.mrb[0].mxu0
  %v2920 = vadd.f32 0.0, %v2919
  %v2921 = vpop.f32.mrb[0].mxu0
  %v2922 = vadd.f32 0.0, %v2921
  %2923 = vdwg.mxu0
  %v2924 = vadd.f32 %v2745, %v2849
  %v2925 = vadd.f32 %v2746, %v2851
  %v2926 = vadd.f32 %v2747, %v2920
  %v2927 = vadd.f32 %v2748, %v2922
  %2928 = vrot.lane.b32.xlu0 %v1866, 113
  %v2929 = vpop.permute.xlu0 %2928
  %2930 = vrot.lane.b32.xlu0 %v1868, 113
  %v2931 = vpop.permute.xlu0 %2930
  %2932 = vrot.lane.b32.xlu0 %v1870, 113
  %v2933 = vpop.permute.xlu0 %2932
  %2934 = vrot.lane.b32.xlu0 %v1872, 113
  %v2935 = vpop.permute.xlu0 %2934
  %v2936 = vsel %vm1238, %v2933, %v2935
  %v2937 = vsel %vm1238, %v2931, %v2933
  %v2938 = vsel %vm1238, %v2929, %v2931
  %v2939 = vsel %vm1238, %v2935, %v2929
  %v2940 = vmul.f32 %v2938, %v1249
  %v2941 = vmul.f32 %v2937, %v1253
  %v2942 = vmul.f32 %v2936, %v1257
  %v2943 = vmul.f32 %v2939, %v1261
  %s2944 = scalar_lea.vmem %s4, 24
  %v2945 = vld [vmem:[%s2944] sm:$0xf]
  %v2947 = vsel %vm1908, %v2945, 0
  %v2950 = vsel %vm1912, %v2940, 0
  %v2953 = vsel %vm1912, %v2941, 0
  %v2956 = vsel %vm1912, %v2942, 0
  %v2959 = vsel %vm1912, %v2943, 0
  %2961 = vmatprep.subr.mxu0 %v2953
  %2962 = vmatpush1.msra.mxu0 %v2950
  %2963 = vmatprep.subr.mxu0 0.0
  %2964 = vmatpush1.msra.mxu0 0.0
  %2965 = vmatprep.subr.mxu0 0.0
  %2966 = vmatpush1.msra.mxu0 0.0
  %2967 = vmatprep.subr.mxu0 0.0
  %2968 = vmatpush1.msra.mxu0 0.0
  %2969 = vmatprep.subr.mxu0 0.0
  %2970 = vmatpush1.msra.mxu0 0.0
  %2971 = vmatprep.subr.mxu0 0.0
  %2972 = vmatpush1.msra.mxu0 0.0
  %2973 = vmatprep.subr.mxu0 0.0
  %2974 = vmatpush1.msra.mxu0 0.0
  %2975 = vmatprep.subr.mxu0 0.0
  %2976 = vmatpush1.msra.mxu0 0.0
  %2977 = vmatprep.subr.mxu0 0.0
  %2978 = vmatpush1.msra.mxu0 0.0
  %2979 = vmatprep.subr.mxu0 0.0
  %2980 = vmatpush1.msra.mxu0 0.0
  %2981 = vmatprep.subr.mxu0 0.0
  %2982 = vmatpush1.msra.mxu0 0.0
  %2983 = vmatprep.subr.mxu0 0.0
  %2984 = vmatpush1.msra.mxu0 0.0
  %2985 = vmatprep.subr.mxu0 0.0
  %2986 = vmatpush1.msra.mxu0 0.0
  %2987 = vmatprep.subr.mxu0 0.0
  %2988 = vmatpush1.msra.mxu0 0.0
  %2989 = vmatprep.subr.mxu0 0.0
  %2990 = vmatpush1.msra.mxu0 0.0
  %2991 = vmatprep.subr.mxu0 0.0
  %2992 = vmatpush1.msra.mxu0 0.0
  %2993 = vmatprep.subr.mxu0 0.0
  %2994 = vmatpush1.msra.mxu0 0.0
  %2995 = vmatprep.subr.mxu0 0.0
  %2996 = vmatpush1.msra.mxu0 0.0
  %2997 = vmatprep.subr.mxu0 0.0
  %2998 = vmatpush1.msra.mxu0 0.0
  %2999 = vmatprep.subr.mxu0 0.0
  %3000 = vmatpush1.msra.mxu0 0.0
  %3001 = vmatprep.subr.mxu0 0.0
  %3002 = vmatpush1.msra.mxu0 0.0
  %3003 = vmatprep.subr.mxu0 0.0
  %3004 = vmatpush1.msra.mxu0 0.0
  %3005 = vmatprep.subr.mxu0 0.0
  %3006 = vmatpush1.msra.mxu0 0.0
  %3007 = vmatprep.subr.mxu0 0.0
  %3008 = vmatpush1.msra.mxu0 0.0
  %3009 = vmatprep.subr.mxu0 0.0
  %3010 = vmatpush1.msra.mxu0 0.0
  %3011 = vmatprep.subr.mxu0 0.0
  %3012 = vmatpush1.msra.mxu0 0.0
  %3013 = vmatprep.subr.mxu0 0.0
  %3014 = vmatpush1.msra.mxu0 0.0
  %3015 = vmatprep.subr.mxu0 0.0
  %3016 = vmatpush1.msra.mxu0 0.0
  %3017 = vmatprep.subr.mxu0 0.0
  %3018 = vmatpush1.msra.mxu0 0.0
  %3019 = vmatprep.subr.mxu0 0.0
  %3020 = vmatpush1.msra.mxu0 0.0
  %3021 = vmatprep.subr.mxu0 0.0
  %3022 = vmatpush1.msra.mxu0 0.0
  %3023 = vmatprep.subr.mxu0 0.0
  %3024 = vmatpush1.msra.mxu0 0.0
  %3025 = vmatprep.mubr.f32.mxu0 0.0
  %3026 = vmatmul.mubr.f32.gmra.mrb[0].mxu0 %v2947
  %v3027 = vpop.f32.mrb[0].mxu0
  %v3028 = vadd.f32 0.0, %v3027
  %v3029 = vpop.f32.mrb[0].mxu0
  %v3030 = vadd.f32 0.0, %v3029
  %3031 = vdwg.mxu0
  %3032 = vmatprep.subr.mxu0 %v2959
  %3033 = vmatpush1.msra.mxu0 %v2956
  %3034 = vmatprep.subr.mxu0 0.0
  %3035 = vmatpush1.msra.mxu0 0.0
  %3036 = vmatprep.subr.mxu0 0.0
  %3037 = vmatpush1.msra.mxu0 0.0
  %3038 = vmatprep.subr.mxu0 0.0
  %3039 = vmatpush1.msra.mxu0 0.0
  %3040 = vmatprep.subr.mxu0 0.0
  %3041 = vmatpush1.msra.mxu0 0.0
  %3042 = vmatprep.subr.mxu0 0.0
  %3043 = vmatpush1.msra.mxu0 0.0
  %3044 = vmatprep.subr.mxu0 0.0
  %3045 = vmatpush1.msra.mxu0 0.0
  %3046 = vmatprep.subr.mxu0 0.0
  %3047 = vmatpush1.msra.mxu0 0.0
  %3048 = vmatprep.subr.mxu0 0.0
  %3049 = vmatpush1.msra.mxu0 0.0
  %3050 = vmatprep.subr.mxu0 0.0
  %3051 = vmatpush1.msra.mxu0 0.0
  %3052 = vmatprep.subr.mxu0 0.0
  %3053 = vmatpush1.msra.mxu0 0.0
  %3054 = vmatprep.subr.mxu0 0.0
  %3055 = vmatpush1.msra.mxu0 0.0
  %3056 = vmatprep.subr.mxu0 0.0
  %3057 = vmatpush1.msra.mxu0 0.0
  %3058 = vmatprep.subr.mxu0 0.0
  %3059 = vmatpush1.msra.mxu0 0.0
  %3060 = vmatprep.subr.mxu0 0.0
  %3061 = vmatpush1.msra.mxu0 0.0
  %3062 = vmatprep.subr.mxu0 0.0
  %3063 = vmatpush1.msra.mxu0 0.0
  %3064 = vmatprep.subr.mxu0 0.0
  %3065 = vmatpush1.msra.mxu0 0.0
  %3066 = vmatprep.subr.mxu0 0.0
  %3067 = vmatpush1.msra.mxu0 0.0
  %3068 = vmatprep.subr.mxu0 0.0
  %3069 = vmatpush1.msra.mxu0 0.0
  %3070 = vmatprep.subr.mxu0 0.0
  %3071 = vmatpush1.msra.mxu0 0.0
  %3072 = vmatprep.subr.mxu0 0.0
  %3073 = vmatpush1.msra.mxu0 0.0
  %3074 = vmatprep.subr.mxu0 0.0
  %3075 = vmatpush1.msra.mxu0 0.0
  %3076 = vmatprep.subr.mxu0 0.0
  %3077 = vmatpush1.msra.mxu0 0.0
  %3078 = vmatprep.subr.mxu0 0.0
  %3079 = vmatpush1.msra.mxu0 0.0
  %3080 = vmatprep.subr.mxu0 0.0
  %3081 = vmatpush1.msra.mxu0 0.0
  %3082 = vmatprep.subr.mxu0 0.0
  %3083 = vmatpush1.msra.mxu0 0.0
  %3084 = vmatprep.subr.mxu0 0.0
  %3085 = vmatpush1.msra.mxu0 0.0
  %3086 = vmatprep.subr.mxu0 0.0
  %3087 = vmatpush1.msra.mxu0 0.0
  %3088 = vmatprep.subr.mxu0 0.0
  %3089 = vmatpush1.msra.mxu0 0.0
  %3090 = vmatprep.subr.mxu0 0.0
  %3091 = vmatpush1.msra.mxu0 0.0
  %3092 = vmatprep.subr.mxu0 0.0
  %3093 = vmatpush1.msra.mxu0 0.0
  %3094 = vmatprep.subr.mxu0 0.0
  %3095 = vmatpush1.msra.mxu0 0.0
  %3096 = vmatprep.mubr.f32.mxu0 0.0
  %3097 = vmatmul.mubr.f32.gmra.mrb[0].mxu0 %v2947
  %v3098 = vpop.f32.mrb[0].mxu0
  %v3099 = vadd.f32 0.0, %v3098
  %v3100 = vpop.f32.mrb[0].mxu0
  %v3101 = vadd.f32 0.0, %v3100
  %3102 = vdwg.mxu0
  %v3103 = vadd.f32 %v2924, %v3028
  %v3104 = vadd.f32 %v2925, %v3030
  %v3105 = vadd.f32 %v2926, %v3099
  %v3106 = vadd.f32 %v2927, %v3101
  %3107 = vrot.lane.b32.xlu0 %v1866, 112
  %v3108 = vpop.permute.xlu0 %3107
  %3109 = vrot.lane.b32.xlu0 %v1868, 112
  %v3110 = vpop.permute.xlu0 %3109
  %3111 = vrot.lane.b32.xlu0 %v1870, 112
  %v3112 = vpop.permute.xlu0 %3111
  %3113 = vrot.lane.b32.xlu0 %v1872, 112
  %v3114 = vpop.permute.xlu0 %3113
  %v3115 = vsel %vm1441, %v3112, %v3114
  %v3116 = vsel %vm1441, %v3110, %v3112
  %v3117 = vsel %vm1441, %v3108, %v3110
  %v3118 = vsel %vm1441, %v3114, %v3108
  %v3119 = vmul.f32 %v3117, %v1452
  %v3120 = vmul.f32 %v3116, %v1456
  %v3121 = vmul.f32 %v3115, %v1460
  %v3122 = vmul.f32 %v3118, %v1464
  %s3123 = scalar_lea.vmem %s4, 28
  %v3124 = vld [vmem:[%s3123] sm:$0xf]
  %v3126 = vsel %vm1908, %v3124, 0
  %v3129 = vsel %vm1912, %v3119, 0
  %v3132 = vsel %vm1912, %v3120, 0
  %v3135 = vsel %vm1912, %v3121, 0
  %v3138 = vsel %vm1912, %v3122, 0
  %3140 = vmatprep.subr.mxu0 %v3132
  %3141 = vmatpush1.msra.mxu0 %v3129
  %3142 = vmatprep.subr.mxu0 0.0
  %3143 = vmatpush1.msra.mxu0 0.0
  %3144 = vmatprep.subr.mxu0 0.0
  %3145 = vmatpush1.msra.mxu0 0.0
  %3146 = vmatprep.subr.mxu0 0.0
  %3147 = vmatpush1.msra.mxu0 0.0
  %3148 = vmatprep.subr.mxu0 0.0
  %3149 = vmatpush1.msra.mxu0 0.0
  %3150 = vmatprep.subr.mxu0 0.0
  %3151 = vmatpush1.msra.mxu0 0.0
  %3152 = vmatprep.subr.mxu0 0.0
  %3153 = vmatpush1.msra.mxu0 0.0
  %3154 = vmatprep.subr.mxu0 0.0
  %3155 = vmatpush1.msra.mxu0 0.0
  %3156 = vmatprep.subr.mxu0 0.0
  %3157 = vmatpush1.msra.mxu0 0.0
  %3158 = vmatprep.subr.mxu0 0.0
  %3159 = vmatpush1.msra.mxu0 0.0
  %3160 = vmatprep.subr.mxu0 0.0
  %3161 = vmatpush1.msra.mxu0 0.0
  %3162 = vmatprep.subr.mxu0 0.0
  %3163 = vmatpush1.msra.mxu0 0.0
  %3164 = vmatprep.subr.mxu0 0.0
  %3165 = vmatpush1.msra.mxu0 0.0
  %3166 = vmatprep.subr.mxu0 0.0
  %3167 = vmatpush1.msra.mxu0 0.0
  %3168 = vmatprep.subr.mxu0 0.0
  %3169 = vmatpush1.msra.mxu0 0.0
  %3170 = vmatprep.subr.mxu0 0.0
  %3171 = vmatpush1.msra.mxu0 0.0
  %3172 = vmatprep.subr.mxu0 0.0
  %3173 = vmatpush1.msra.mxu0 0.0
  %3174 = vmatprep.subr.mxu0 0.0
  %3175 = vmatpush1.msra.mxu0 0.0
  %3176 = vmatprep.subr.mxu0 0.0
  %3177 = vmatpush1.msra.mxu0 0.0
  %3178 = vmatprep.subr.mxu0 0.0
  %3179 = vmatpush1.msra.mxu0 0.0
  %3180 = vmatprep.subr.mxu0 0.0
  %3181 = vmatpush1.msra.mxu0 0.0
  %3182 = vmatprep.subr.mxu0 0.0
  %3183 = vmatpush1.msra.mxu0 0.0
  %3184 = vmatprep.subr.mxu0 0.0
  %3185 = vmatpush1.msra.mxu0 0.0
  %3186 = vmatprep.subr.mxu0 0.0
  %3187 = vmatpush1.msra.mxu0 0.0
  %3188 = vmatprep.subr.mxu0 0.0
  %3189 = vmatpush1.msra.mxu0 0.0
  %3190 = vmatprep.subr.mxu0 0.0
  %3191 = vmatpush1.msra.mxu0 0.0
  %3192 = vmatprep.subr.mxu0 0.0
  %3193 = vmatpush1.msra.mxu0 0.0
  %3194 = vmatprep.subr.mxu0 0.0
  %3195 = vmatpush1.msra.mxu0 0.0
  %3196 = vmatprep.subr.mxu0 0.0
  %3197 = vmatpush1.msra.mxu0 0.0
  %3198 = vmatprep.subr.mxu0 0.0
  %3199 = vmatpush1.msra.mxu0 0.0
  %3200 = vmatprep.subr.mxu0 0.0
  %3201 = vmatpush1.msra.mxu0 0.0
  %3202 = vmatprep.subr.mxu0 0.0
  %3203 = vmatpush1.msra.mxu0 0.0
  %3204 = vmatprep.mubr.f32.mxu0 0.0
  %3205 = vmatmul.mubr.f32.gmra.mrb[0].mxu0 %v3126
  %v3206 = vpop.f32.mrb[0].mxu0
  %v3207 = vadd.f32 0.0, %v3206
  %v3208 = vpop.f32.mrb[0].mxu0
  %v3209 = vadd.f32 0.0, %v3208
  %3210 = vdwg.mxu0
  %3211 = vmatprep.subr.mxu0 %v3138
  %3212 = vmatpush1.msra.mxu0 %v3135
  %3213 = vmatprep.subr.mxu0 0.0
  %3214 = vmatpush1.msra.mxu0 0.0
  %3215 = vmatprep.subr.mxu0 0.0
  %3216 = vmatpush1.msra.mxu0 0.0
  %3217 = vmatprep.subr.mxu0 0.0
  %3218 = vmatpush1.msra.mxu0 0.0
  %3219 = vmatprep.subr.mxu0 0.0
  %3220 = vmatpush1.msra.mxu0 0.0
  %3221 = vmatprep.subr.mxu0 0.0
  %3222 = vmatpush1.msra.mxu0 0.0
  %3223 = vmatprep.subr.mxu0 0.0
  %3224 = vmatpush1.msra.mxu0 0.0
  %3225 = vmatprep.subr.mxu0 0.0
  %3226 = vmatpush1.msra.mxu0 0.0
  %3227 = vmatprep.subr.mxu0 0.0
  %3228 = vmatpush1.msra.mxu0 0.0
  %3229 = vmatprep.subr.mxu0 0.0
  %3230 = vmatpush1.msra.mxu0 0.0
  %3231 = vmatprep.subr.mxu0 0.0
  %3232 = vmatpush1.msra.mxu0 0.0
  %3233 = vmatprep.subr.mxu0 0.0
  %3234 = vmatpush1.msra.mxu0 0.0
  %3235 = vmatprep.subr.mxu0 0.0
  %3236 = vmatpush1.msra.mxu0 0.0
  %3237 = vmatprep.subr.mxu0 0.0
  %3238 = vmatpush1.msra.mxu0 0.0
  %3239 = vmatprep.subr.mxu0 0.0
  %3240 = vmatpush1.msra.mxu0 0.0
  %3241 = vmatprep.subr.mxu0 0.0
  %3242 = vmatpush1.msra.mxu0 0.0
  %3243 = vmatprep.subr.mxu0 0.0
  %3244 = vmatpush1.msra.mxu0 0.0
  %3245 = vmatprep.subr.mxu0 0.0
  %3246 = vmatpush1.msra.mxu0 0.0
  %3247 = vmatprep.subr.mxu0 0.0
  %3248 = vmatpush1.msra.mxu0 0.0
  %3249 = vmatprep.subr.mxu0 0.0
  %3250 = vmatpush1.msra.mxu0 0.0
  %3251 = vmatprep.subr.mxu0 0.0
  %3252 = vmatpush1.msra.mxu0 0.0
  %3253 = vmatprep.subr.mxu0 0.0
  %3254 = vmatpush1.msra.mxu0 0.0
  %3255 = vmatprep.subr.mxu0 0.0
  %3256 = vmatpush1.msra.mxu0 0.0
  %3257 = vmatprep.subr.mxu0 0.0
  %3258 = vmatpush1.msra.mxu0 0.0
  %3259 = vmatprep.subr.mxu0 0.0
  %3260 = vmatpush1.msra.mxu0 0.0
  %3261 = vmatprep.subr.mxu0 0.0
  %3262 = vmatpush1.msra.mxu0 0.0
  %3263 = vmatprep.subr.mxu0 0.0
  %3264 = vmatpush1.msra.mxu0 0.0
  %3265 = vmatprep.subr.mxu0 0.0
  %3266 = vmatpush1.msra.mxu0 0.0
  %3267 = vmatprep.subr.mxu0 0.0
  %3268 = vmatpush1.msra.mxu0 0.0
  %3269 = vmatprep.subr.mxu0 0.0
  %3270 = vmatpush1.msra.mxu0 0.0
  %3271 = vmatprep.subr.mxu0 0.0
  %3272 = vmatpush1.msra.mxu0 0.0
  %3273 = vmatprep.subr.mxu0 0.0
  %3274 = vmatpush1.msra.mxu0 0.0
  %3275 = vmatprep.mubr.f32.mxu0 0.0
  %3276 = vmatmul.mubr.f32.gmra.mrb[0].mxu0 %v3126
  %v3277 = vpop.f32.mrb[0].mxu0
  %v3278 = vadd.f32 0.0, %v3277
  %v3279 = vpop.f32.mrb[0].mxu0
  %v3280 = vadd.f32 0.0, %v3279
  %3281 = vdwg.mxu0
  %v3282 = vadd.f32 %v3103, %v3207
  %v3283 = vadd.f32 %v3104, %v3209
  %v3284 = vadd.f32 %v3105, %v3278
  %v3285 = vadd.f32 %v3106, %v3280
  %3286 = vrot.lane.b32.xlu0 %v1866, 111
  %v3287 = vpop.permute.xlu0 %3286
  %3288 = vrot.lane.b32.xlu0 %v1868, 111
  %v3289 = vpop.permute.xlu0 %3288
  %3290 = vrot.lane.b32.xlu0 %v1870, 111
  %v3291 = vpop.permute.xlu0 %3290
  %3292 = vrot.lane.b32.xlu0 %v1872, 111
  %v3293 = vpop.permute.xlu0 %3292
  %v3294 = vsel %vm1644, %v3291, %v3293
  %v3295 = vsel %vm1644, %v3289, %v3291
  %v3296 = vsel %vm1644, %v3287, %v3289
  %v3297 = vsel %vm1644, %v3293, %v3287
  %v3298 = vmul.f32 %v3296, %v1655
  %v3299 = vmul.f32 %v3295, %v1659
  %v3300 = vmul.f32 %v3294, %v1663
  %v3301 = vmul.f32 %v3297, %v1667
  %s3302 = scalar_lea.vmem %s4, 32
  %v3303 = vld [vmem:[%s3302] sm:$0xf]
  %v3305 = vsel %vm1908, %v3303, 0
  %v3308 = vsel %vm1912, %v3298, 0
  %v3311 = vsel %vm1912, %v3299, 0
  %v3314 = vsel %vm1912, %v3300, 0
  %v3317 = vsel %vm1912, %v3301, 0
  %3319 = vmatprep.subr.mxu0 %v3311
  %3320 = vmatpush1.msra.mxu0 %v3308
  %3321 = vmatprep.subr.mxu0 0.0
  %3322 = vmatpush1.msra.mxu0 0.0
  %3323 = vmatprep.subr.mxu0 0.0
  %3324 = vmatpush1.msra.mxu0 0.0
  %3325 = vmatprep.subr.mxu0 0.0
  %3326 = vmatpush1.msra.mxu0 0.0
  %3327 = vmatprep.subr.mxu0 0.0
  %3328 = vmatpush1.msra.mxu0 0.0
  %3329 = vmatprep.subr.mxu0 0.0
  %3330 = vmatpush1.msra.mxu0 0.0
  %3331 = vmatprep.subr.mxu0 0.0
  %3332 = vmatpush1.msra.mxu0 0.0
  %3333 = vmatprep.subr.mxu0 0.0
  %3334 = vmatpush1.msra.mxu0 0.0
  %3335 = vmatprep.subr.mxu0 0.0
  %3336 = vmatpush1.msra.mxu0 0.0
  %3337 = vmatprep.subr.mxu0 0.0
  %3338 = vmatpush1.msra.mxu0 0.0
  %3339 = vmatprep.subr.mxu0 0.0
  %3340 = vmatpush1.msra.mxu0 0.0
  %3341 = vmatprep.subr.mxu0 0.0
  %3342 = vmatpush1.msra.mxu0 0.0
  %3343 = vmatprep.subr.mxu0 0.0
  %3344 = vmatpush1.msra.mxu0 0.0
  %3345 = vmatprep.subr.mxu0 0.0
  %3346 = vmatpush1.msra.mxu0 0.0
  %3347 = vmatprep.subr.mxu0 0.0
  %3348 = vmatpush1.msra.mxu0 0.0
  %3349 = vmatprep.subr.mxu0 0.0
  %3350 = vmatpush1.msra.mxu0 0.0
  %3351 = vmatprep.subr.mxu0 0.0
  %3352 = vmatpush1.msra.mxu0 0.0
  %3353 = vmatprep.subr.mxu0 0.0
  %3354 = vmatpush1.msra.mxu0 0.0
  %3355 = vmatprep.subr.mxu0 0.0
  %3356 = vmatpush1.msra.mxu0 0.0
  %3357 = vmatprep.subr.mxu0 0.0
  %3358 = vmatpush1.msra.mxu0 0.0
  %3359 = vmatprep.subr.mxu0 0.0
  %3360 = vmatpush1.msra.mxu0 0.0
  %3361 = vmatprep.subr.mxu0 0.0
  %3362 = vmatpush1.msra.mxu0 0.0
  %3363 = vmatprep.subr.mxu0 0.0
  %3364 = vmatpush1.msra.mxu0 0.0
  %3365 = vmatprep.subr.mxu0 0.0
  %3366 = vmatpush1.msra.mxu0 0.0
  %3367 = vmatprep.subr.mxu0 0.0
  %3368 = vmatpush1.msra.mxu0 0.0
  %3369 = vmatprep.subr.mxu0 0.0
  %3370 = vmatpush1.msra.mxu0 0.0
  %3371 = vmatprep.subr.mxu0 0.0
  %3372 = vmatpush1.msra.mxu0 0.0
  %3373 = vmatprep.subr.mxu0 0.0
  %3374 = vmatpush1.msra.mxu0 0.0
  %3375 = vmatprep.subr.mxu0 0.0
  %3376 = vmatpush1.msra.mxu0 0.0
  %3377 = vmatprep.subr.mxu0 0.0
  %3378 = vmatpush1.msra.mxu0 0.0
  %3379 = vmatprep.subr.mxu0 0.0
  %3380 = vmatpush1.msra.mxu0 0.0
  %3381 = vmatprep.subr.mxu0 0.0
  %3382 = vmatpush1.msra.mxu0 0.0
  %3383 = vmatprep.mubr.f32.mxu0 0.0
  %3384 = vmatmul.mubr.f32.gmra.mrb[0].mxu0 %v3305
  %v3385 = vpop.f32.mrb[0].mxu0
  %v3386 = vadd.f32 0.0, %v3385
  %v3387 = vpop.f32.mrb[0].mxu0
  %v3388 = vadd.f32 0.0, %v3387
  %3389 = vdwg.mxu0
  %3390 = vmatprep.subr.mxu0 %v3317
  %3391 = vmatpush1.msra.mxu0 %v3314
  %3392 = vmatprep.subr.mxu0 0.0
  %3393 = vmatpush1.msra.mxu0 0.0
  %3394 = vmatprep.subr.mxu0 0.0
  %3395 = vmatpush1.msra.mxu0 0.0
  %3396 = vmatprep.subr.mxu0 0.0
  %3397 = vmatpush1.msra.mxu0 0.0
  %3398 = vmatprep.subr.mxu0 0.0
  %3399 = vmatpush1.msra.mxu0 0.0
  %3400 = vmatprep.subr.mxu0 0.0
  %3401 = vmatpush1.msra.mxu0 0.0
  %3402 = vmatprep.subr.mxu0 0.0
  %3403 = vmatpush1.msra.mxu0 0.0
  %3404 = vmatprep.subr.mxu0 0.0
  %3405 = vmatpush1.msra.mxu0 0.0
  %3406 = vmatprep.subr.mxu0 0.0
  %3407 = vmatpush1.msra.mxu0 0.0
  %3408 = vmatprep.subr.mxu0 0.0
  %3409 = vmatpush1.msra.mxu0 0.0
  %3410 = vmatprep.subr.mxu0 0.0
  %3411 = vmatpush1.msra.mxu0 0.0
  %3412 = vmatprep.subr.mxu0 0.0
  %3413 = vmatpush1.msra.mxu0 0.0
  %3414 = vmatprep.subr.mxu0 0.0
  %3415 = vmatpush1.msra.mxu0 0.0
  %3416 = vmatprep.subr.mxu0 0.0
  %3417 = vmatpush1.msra.mxu0 0.0
  %3418 = vmatprep.subr.mxu0 0.0
  %3419 = vmatpush1.msra.mxu0 0.0
  %3420 = vmatprep.subr.mxu0 0.0
  %3421 = vmatpush1.msra.mxu0 0.0
  %3422 = vmatprep.subr.mxu0 0.0
  %3423 = vmatpush1.msra.mxu0 0.0
  %3424 = vmatprep.subr.mxu0 0.0
  %3425 = vmatpush1.msra.mxu0 0.0
  %3426 = vmatprep.subr.mxu0 0.0
  %3427 = vmatpush1.msra.mxu0 0.0
  %3428 = vmatprep.subr.mxu0 0.0
  %3429 = vmatpush1.msra.mxu0 0.0
  %3430 = vmatprep.subr.mxu0 0.0
  %3431 = vmatpush1.msra.mxu0 0.0
  %3432 = vmatprep.subr.mxu0 0.0
  %3433 = vmatpush1.msra.mxu0 0.0
  %3434 = vmatprep.subr.mxu0 0.0
  %3435 = vmatpush1.msra.mxu0 0.0
  %3436 = vmatprep.subr.mxu0 0.0
  %3437 = vmatpush1.msra.mxu0 0.0
  %3438 = vmatprep.subr.mxu0 0.0
  %3439 = vmatpush1.msra.mxu0 0.0
  %3440 = vmatprep.subr.mxu0 0.0
  %3441 = vmatpush1.msra.mxu0 0.0
  %3442 = vmatprep.subr.mxu0 0.0
  %3443 = vmatpush1.msra.mxu0 0.0
  %3444 = vmatprep.subr.mxu0 0.0
  %3445 = vmatpush1.msra.mxu0 0.0
  %3446 = vmatprep.subr.mxu0 0.0
  %3447 = vmatpush1.msra.mxu0 0.0
  %3448 = vmatprep.subr.mxu0 0.0
  %3449 = vmatpush1.msra.mxu0 0.0
  %3450 = vmatprep.subr.mxu0 0.0
  %3451 = vmatpush1.msra.mxu0 0.0
  %3452 = vmatprep.subr.mxu0 0.0
  %3453 = vmatpush1.msra.mxu0 0.0
  %3454 = vmatprep.mubr.f32.mxu0 0.0
  %3455 = vmatmul.mubr.f32.gmra.mrb[0].mxu0 %v3305
  %v3456 = vpop.f32.mrb[0].mxu0
  %v3457 = vadd.f32 0.0, %v3456
  %v3458 = vpop.f32.mrb[0].mxu0
  %v3459 = vadd.f32 0.0, %v3458
  %3460 = vdwg.mxu0
  %v3461 = vadd.f32 %v3282, %v3386
  %v3462 = vadd.f32 %v3283, %v3388
  %v3463 = vadd.f32 %v3284, %v3457
  %v3464 = vadd.f32 %v3285, %v3459
  %v3465 = vld [vmem:[%s5] sm:$0xf]
  %3467 = vset.pattern.permute.xlu0 0
  %3468 = vperm.xlu0 %3467, %v3465
  %v3469 = vpop.permute.xlu0 %3468
  %v3471 = vadd.f32 %v3461, %v3469
  %v3472 = vadd.f32 %v3462, %v3469
  %v3473 = vadd.f32 %v3463, %v3469
  %v3474 = vadd.f32 %v3464, %v3469
  %v3475 = vxor.u32 %v3471, 2147483648
  %v3476 = vxor.u32 %v3472, 2147483648
  %v3477 = vxor.u32 %v3473, 2147483648
  %v3478 = vxor.u32 %v3474, 2147483648
  %v3479 = vmul.f32 %v3475, 1.442695
  %v3480 = vpow.pop %v3479
  %v3481 = vmul.f32 %v3476, 1.442695
  %v3482 = vpow.pop %v3481
  %v3483 = vmul.f32 %v3477, 1.442695
  %v3484 = vpow.pop %v3483
  %v3485 = vmul.f32 %v3478, 1.442695
  %v3486 = vpow.pop %v3485
  %v3487 = vadd.f32 %v3480, 1.0
  %v3488 = vadd.f32 %v3482, 1.0
  %v3489 = vadd.f32 %v3484, 1.0
  %v3490 = vadd.f32 %v3486, 1.0
  %v3491 = vrcp.pop %v3487
  %v3492 = vmul.f32 1.0, %v3491
  %v3493 = vrcp.pop %v3488
  %v3494 = vmul.f32 1.0, %v3493
  %v3495 = vrcp.pop %v3489
  %v3496 = vmul.f32 1.0, %v3495
  %v3497 = vrcp.pop %v3490
  %v3498 = vmul.f32 1.0, %v3497
  %v3503 = vcombine.low %v3492, %v3494
  %v3504 = vcombine.low %v3496, %v3498
  %3507 = vst [vmem:[%s6] sm:$0xff] %v3503
  %3508 = vst [vmem:[%s6 + $0x8] sm:$0xff] %v3504
  // Predicated region
  $region26: #{model_forward.1} parent=0 // pred_check
    _
  $region27: #{model_forward.1} parent=0 // pred_check_branch
    %3510 = sbr.rel (0) target = $region29
  $region28: #{model_forward.1} parent=0 // pred_region
    _
  $region29: #{model_forward.1} parent=0 // pred_fallthru
    _
  // Predicated region
  $region30: #{model_forward.1} parent=0 // pred_check
    _
  $region31: #{model_forward.1} parent=0 // pred_check_branch
    %3512 = sbr.rel (0) target = $region33
  $region32: #{model_forward.1} parent=0 // pred_region
    _
  $region33: #{model_forward.1} parent=0 // pred_fallthru
    _

</llo_original>
